<compile_context>
chip_gen: v6e
topology: v6e:2x2x1
jax: 0.10.0
libtpu: 0.0.40
codegen_flags: <defaults>
</compile_context>

<pallas_src>
import functools

import numpy as np
import jax
import jax.numpy as jnp
from jax import lax
from jax.experimental import pallas as pl
from jax.experimental.pallas import tpu as pltpu

EPS = 1e-5                      # te.RMSNorm default eps
LANE = 128                      # TPU lane width
VMEM_LIMIT = 32 * 1024 * 1024   # scoped-VMEM budget; actual use here is << 1 MiB.
# TODO(synk): for large H*W, pick bB / token tiles from a per-generation VMEM
# budget (v7x: 64 MiB physical, v5e/v6e: 128 MiB) instead of one constant.


# ----------------------------------------------------------------------------
# Small helpers
# ----------------------------------------------------------------------------
def _round_up(n, m):
    return ((n + m - 1) // m) * m


def _round8(n):
    return _round_up(n, 8)


def _pad_to_lane(n):
    return max(LANE, _round_up(n, LANE))


def _pad_last(x, target):
    pad = target - x.shape[-1]
    if pad == 0:
        return x
    cfg = [(0, 0)] * (x.ndim - 1) + [(0, pad)]
    return jnp.pad(x, cfg)


def _pad_axis(x, axis, target):
    pad = target - x.shape[axis]
    if pad == 0:
        return x
    cfg = [(0, 0)] * x.ndim
    cfg[axis] = (0, pad)
    return jnp.pad(x, cfg)


def _geom(H, W, rh, rw):
    """Row-strided token geometry.

    Tokens of an image live at strided flat positions p = i*Ws + j (j < W);
    columns j in [W, Ws) are padding.  Inside the halo scratch, real token
    (0, 0) sits at `base` (a multiple of 8), so all dj==0 conv taps are
    sublane-aligned window loads.
    """
    Ws = _round8(W + 2 * rw)
    Ls = H * Ws
    pad8 = _round8(max(rw, 1))
    base = rh * Ws + pad8
    halo_rows = base + Ls + rh * Ws + pad8
    return Ws, Ls, base, halo_rows


def _resident(shape):
    """BlockSpec for a full-array (weight) input that stays resident."""
    return pl.BlockSpec(tuple(shape), lambda *_: (0,) * len(shape))


# ----------------------------------------------------------------------------
# Kernel 1: stem patchify matmul + bias + fused post-stem RMSNorm.
# Input patches are laid out in the stage-0 strided token order so the stage
# kernel can consume the output directly.
# ----------------------------------------------------------------------------
def _stem_kernel(p_ref, w_ref, b_ref, g_ref, o_ref, *, real_n):
    x = p_ref[...].astype(jnp.bfloat16)                 # bf16 operands -> MXU
    y = jnp.dot(x, w_ref[...], preferred_element_type=jnp.float32) + b_ref[...]
    inv = lax.rsqrt(jnp.sum(y * y, axis=-1, keepdims=True) * (1.0 / real_n) + EPS)
    o_ref[...] = (y * inv * g_ref[...]).astype(o_ref.dtype)


def stem(patches, w, b, g, *, real_n, bM):
    M, K = patches.shape
    N = w.shape[-1]
    # TODO(synk): add a K grid axis + accumulator scratch if K ever outgrows VMEM.
    return pl.pallas_call(
        functools.partial(_stem_kernel, real_n=real_n),
        out_shape=jax.ShapeDtypeStruct((M, N), jnp.bfloat16),
        grid=(M // bM,),
        in_specs=[
            pl.BlockSpec((bM, K), lambda i: (i, 0)),
            pl.BlockSpec((K, N), lambda i: (0, 0)),      # weights stay resident
            pl.BlockSpec((1, N), lambda i: (0, 0)),
            pl.BlockSpec((1, N), lambda i: (0, 0)),
        ],
        out_specs=pl.BlockSpec((bM, N), lambda i: (i, 0)),
        compiler_params=pltpu.CompilerParams(
            dimension_semantics=("parallel",), vmem_limit_bytes=VMEM_LIMIT),
    )(patches, w, b, g)


# ----------------------------------------------------------------------------
# Kernel 2: fused ConvNext STAGE.
#   for d in range(depth):
#     depthwise KHxKW conv (unmasked window loads from a row-strided zero-halo
#     scratch) -> RMSNorm -> fc1 -> srelu -> fc2 -> + residual
#   then either:
#     * fused 2x2/stride-2 downsample conv (space-to-depth done on the MXU via
#       constant 0/1 selection matrices), output in the NEXT stage's strided
#       token layout, or
#     * fused final embedding RMSNorm (last stage).
# ----------------------------------------------------------------------------
def _stage_kernel(*refs, depth, bB, H, W, KH, KW, Ws, Ls, base, halo_rows,
                  real_c, final_norm, downsample, M2):
    it = iter(refs)
    x_ref = next(it)
    if depth > 0:
        dww_ref, dwb_ref, g_ref, w1_ref, b1_ref, w2_ref, b2_ref = (
            next(it) for _ in range(7))
    gout_ref = next(it) if final_norm else None
    if downsample:
        s_ref, wd_ref, bd_ref = next(it), next(it), next(it)
    o_ref = next(it)
    halo_ref = next(it) if depth > 0 else None

    rh, rw = KH // 2, KW // 2
    M = bB * Ls
    t = x_ref[...].astype(jnp.float32)          # (M, Cp) residual stream (strided)
    Cp = t.shape[-1]

    if depth > 0:
        # Zero ONLY the top/tail halo pad regions (done every step so the
        # kernel is safe under megacore grid sharding).  The interior,
        # including its padding columns, is fully rewritten by the masked
        # staging store each block.
        halo_ref[:, :base, :] = jnp.zeros((bB, base, Cp), jnp.float32)
        halo_ref[:, base + Ls:, :] = jnp.zeros(
            (bB, halo_rows - base - Ls, Cp), jnp.float32)
        # Strided-column validity ((p mod Ws) < W), hoisted across blocks.
        col = lax.broadcasted_iota(jnp.int32, (1, Ls, 1), 1) % Ws
        colmask = col < W

    for d in range(depth):
        # -- depthwise conv: shift-and-accumulate on the zero-halo scratch --
        halo_ref[:, base:base + Ls, :] = jnp.where(
            colmask, t.reshape(bB, Ls, Cp), 0.0)
        acc = jnp.zeros((bB, Ls, Cp), jnp.float32)
        for ki in range(KH):
            for kj in range(KW):
                off = base + (ki - rh) * Ws + (kj - rw)
                win = halo_ref[:, off:off + Ls, :]         # unmasked window load
                k_idx = ki * KW + kj
                tap = dww_ref[d, k_idx:k_idx + 1, :]       # (1, Cp)
                acc = acc + win * tap
        a2 = acc.reshape(M, Cp) + dwb_ref[d]

        # -- LayerNormMLP (RMSNorm -> fc1 -> srelu -> fc2) + residual --
        inv = lax.rsqrt(jnp.sum(a2 * a2, axis=-1, keepdims=True)
                        * (1.0 / real_c) + EPS)
        h = (a2 * inv * g_ref[d]).astype(jnp.bfloat16)
        h1 = jnp.dot(h, w1_ref[d], preferred_element_type=jnp.float32) + b1_ref[d]
        h1 = jnp.maximum(h1, 0.0)
        h1 = (h1 * h1).astype(jnp.bfloat16)                # srelu = squared ReLU
        y = jnp.dot(h1, w2_ref[d], preferred_element_type=jnp.float32) + b2_ref[d]
        t = t + y

    if downsample:
        # Fused 2x2/stride-2 conv.  The space-to-depth gather is expressed as
        # 4 tiny 0/1 selection matmuls (MXU), so no strided relayouts and no
        # XLA transpose / extra HBM round trip of the activation.
        t16 = t.astype(jnp.bfloat16)
        Cp2 = wd_ref.shape[-1]
        acc_d = jnp.zeros((M2, Cp2), jnp.float32)
        for k in range(4):
            gathered = jnp.dot(s_ref[k], t16, preferred_element_type=jnp.float32)
            acc_d = acc_d + jnp.dot(gathered.astype(jnp.bfloat16), wd_ref[k],
                                    preferred_element_type=jnp.float32)
        o_ref[...] = (acc_d + bd_ref[...]).astype(o_ref.dtype)
    elif final_norm:
        inv2 = lax.rsqrt(jnp.sum(t * t, axis=-1, keepdims=True)
                         * (1.0 / real_c) + EPS)
        o_ref[...] = (t * inv2 * gout_ref[...]).astype(o_ref.dtype)
    else:
        o_ref[...] = t.astype(o_ref.dtype)


def convnext_stage(tokens, sp, *, depth, bB, H, W, KH, KW, real_c,
                   final_gamma=None, ds=None):
    """tokens: (B*Ls, Cp) in this stage's strided token layout."""
    rh, rw = KH // 2, KW // 2
    Ws, Ls, base, halo_rows = _geom(H, W, rh, rw)
    Cp = tokens.shape[-1]
    Btot = tokens.shape[0] // Ls
    grid = (Btot // bB,)
    final_norm = final_gamma is not None
    downsample = ds is not None
    assert not (final_norm and downsample)

    args = [tokens]
    in_specs = [pl.BlockSpec((bB * Ls, Cp), lambda b: (b, 0))]

    if depth > 0:
        for name in ("dw_w", "dw_b", "gamma", "w1", "b1", "w2", "b2"):
            arr = sp[name]
            args.append(arr)
            in_specs.append(_resident(arr.shape))

    M2 = 0
    if final_norm:
        args.append(final_gamma)
        in_specs.append(_resident(final_gamma.shape))
        out_shape = jax.ShapeDtypeStruct((Btot * Ls, Cp), jnp.float32)
        out_spec = pl.BlockSpec((bB * Ls, Cp), lambda b: (b, 0))
    elif downsample:
        S, wd, bd, Ls2 = ds
        M2 = bB * Ls2
        Cp2 = wd.shape[-1]
        for arr in (S, wd, bd):
            args.append(arr)
            in_specs.append(_resident(arr.shape))
        out_shape = jax.ShapeDtypeStruct((Btot * Ls2, Cp2), jnp.bfloat16)
        out_spec = pl.BlockSpec((bB * Ls2, Cp2), lambda b: (b, 0))
    else:
        out_shape = jax.ShapeDtypeStruct((Btot * Ls, Cp), jnp.bfloat16)
        out_spec = pl.BlockSpec((bB * Ls, Cp), lambda b: (b, 0))

    kern = functools.partial(
        _stage_kernel, depth=depth, bB=bB, H=H, W=W, KH=KH, KW=KW, Ws=Ws,
        Ls=Ls, base=base, halo_rows=halo_rows, real_c=real_c,
        final_norm=final_norm, downsample=downsample, M2=M2)
    scratch = [pltpu.VMEM((bB, halo_rows, Cp), jnp.float32)] if depth > 0 else []

    return pl.pallas_call(
        kern,
        out_shape=out_shape,
        grid=grid,
        in_specs=in_specs,
        out_specs=out_spec,
        scratch_shapes=scratch,
        compiler_params=pltpu.CompilerParams(
            dimension_semantics=("parallel",), vmem_limit_bytes=VMEM_LIMIT),
    )(*args)


def _build_sel(bB, H, W, Ws, H2, W2, Ws2):
    """0/1 selection matrices implementing the 2x2/stride-2 gather on the MXU."""
    Ls, Ls2 = H * Ws, H2 * Ws2
    S = np.zeros((4, bB * Ls2, bB * Ls), np.float32)
    for b in range(bB):
        for i2 in range(H2):
            for j2 in range(W2):
                q = b * Ls2 + i2 * Ws2 + j2
                for di in range(2):
                    for dj in range(2):
                        p = b * Ls + (2 * i2 + di) * Ws + (2 * j2 + dj)
                        S[di * 2 + dj, q, p] = 1.0
    return jnp.asarray(S, dtype=jnp.bfloat16)


# ----------------------------------------------------------------------------
# Forward pass (thin XLA layout plumbing; all hot math in the kernels above)
# ----------------------------------------------------------------------------
def convnext2d_forward(kp, x, cfg, reshape=True):
    ph, pw = cfg["patch_size"]
    kh, kw = cfg["kernel_size"]
    hs = cfg["hidden_sizes"]
    depths = cfg["depths"]
    rh, rw = kh // 2, kw // 2

    B, Cin, H, W = x.shape
    H0, W0 = H // ph, W // pw
    # >= 2 parallel grid steps per call (keeps both v7x TensorCores busy) while
    # folding the remaining images of the batch into the MXU M dimension.
    bB = B // 2 if (B >= 2 and B % 2 == 0) else 1

    # --- stem patchify conv + fused post-stem RMSNorm (strided token output) ---
    # TODO(synk): the patchify 6-D transpose still runs in XLA; fuse it into the
    # stem kernel if the input ever becomes large enough to matter.
    Ws0, Ls0, _, _ = _geom(H0, W0, rh, rw)
    patches = x.reshape(B, Cin, H0, ph, W0, pw).transpose(0, 2, 4, 1, 3, 5)
    patches = patches.reshape(B, H0, W0, Cin * ph * pw)
    patches = _pad_axis(patches, 2, Ws0)                 # strided pad columns
    patches = patches.reshape(B * Ls0, Cin * ph * pw)
    patches = _pad_last(patches, kp["stem_w"].shape[0])  # lane-pad K
    tokens = stem(patches, kp["stem_w"], kp["stem_b"], kp["norm_gamma"],
                  real_n=hs[0], bM=bB * Ls0)
    size = (H0, W0)

    n_stages = len(depths)
    for si in range(n_stages):
        Hc, Wc = size
        last = si == n_stages - 1
        ds = None
        if not last:
            H2, W2 = Hc // 2, Wc // 2
            Ws_c, _, _, _ = _geom(Hc, Wc, rh, rw)
            Ws2, Ls2, _, _ = _geom(H2, W2, rh, rw)
            S = _build_sel(bB, Hc, Wc, Ws_c, H2, W2, Ws2)
            wd, bd = kp["downsample"][si]
            ds = (S, wd, bd, Ls2)
        tokens = convnext_stage(
            tokens, kp["stages"][si], depth=depths[si], bB=bB, H=Hc, W=Wc,
            KH=kh, KW=kw, real_c=hs[si],
            final_gamma=kp["embedding_norm_gamma"] if last else None,
            ds=ds)
        if not last:
            size = (Hc // 2, Wc // 2)

    # TODO(synk): up_depths / ConvTranspose2d up-sampling path not implemented;
    # with the module default up_depths=[] this branch is empty in the
    # reference forward as well.

    # densify the strided tokens + drop lane padding at the API edge
    Hl, Wl = size
    Wsl, _, _, _ = _geom(Hl, Wl, rh, rw)
    Cp = tokens.shape[-1]
    out = tokens.reshape(B, Hl, Wsl, Cp)[:, :, :Wl, :hs[-1]]
    if reshape:
        return out.transpose(0, 3, 1, 2)
    return out.reshape(B, Hl * Wl, hs[-1])


# ----------------------------------------------------------------------------
# Parameter initialization (PyTorch layouts / fan-in bounds) and conversion to
# padded, kernel-ready layouts (bf16 matmul weights, lane-dense last dims,
# per-stage stacked block weights).
# ----------------------------------------------------------------------------
def init_params(key, cfg):
    keys = iter(jax.random.split(key, 256))
    cin = cfg["in_channels"]
    ph, pw = cfg["patch_size"]
    kh, kw = cfg["kernel_size"]
    hs, ffn, depths = cfg["hidden_sizes"], cfg["ffn_hidden_sizes"], cfg["depths"]

    def u(shape, bound):
        return jax.random.uniform(next(keys), shape, jnp.float32, -bound, bound)

    params = {}
    b_stem = 1.0 / np.sqrt(cin * ph * pw)
    params["stem_w"] = u((hs[0], cin, ph, pw), b_stem)      # torch Conv2d layout
    params["stem_b"] = u((hs[0],), b_stem)
    params["norm_gamma"] = jnp.ones((hs[0],), jnp.float32)

    params["down_stages"] = []
    for si in range(len(depths)):
        D, F = hs[si], ffn[si]
        stage = []
        for _ in range(depths[si]):
            b_dw = 1.0 / np.sqrt(kh * kw)
            b1 = 1.0 / np.sqrt(D)
            b2 = 1.0 / np.sqrt(F)
            stage.append(dict(
                dw_w=u((D, 1, kh, kw), b_dw),               # depthwise Conv2d layout
                dw_b=u((D,), b_dw),
                gamma=jnp.ones((D,), jnp.float32),
                w1=u((F, D), b1),                           # te fc1 layout
                b1=u((F,), b1),
                w2=u((D, F), b2),                           # te fc2 layout
                b2=u((D,), b2),
            ))
        params["down_stages"].append(stage)

    params["downsample"] = []
    for si in range(len(depths) - 1):
        bd = 1.0 / np.sqrt(hs[si] * 4)
        params["downsample"].append((
            u((hs[si + 1], hs[si], 2, 2), bd),
            u((hs[si + 1],), bd),
        ))

    params["embedding_norm_gamma"] = jnp.ones((hs[-1],), jnp.float32)
    return params


def prepare_params(params, cfg):
    cin = cfg["in_channels"]
    ph, pw = cfg["patch_size"]
    kh, kw = cfg["kernel_size"]
    hs, ffn, depths = cfg["hidden_sizes"], cfg["ffn_hidden_sizes"], cfg["depths"]

    kp = {}
    K = cin * ph * pw
    Kp = _pad_to_lane(K)
    d0p = _pad_to_lane(hs[0])
    sw = params["stem_w"].reshape(hs[0], K).T                 # (K, Cout)
    sw = _pad_axis(sw, 0, Kp)
    kp["stem_w"] = _pad_last(sw, d0p).astype(jnp.bfloat16)
    kp["stem_b"] = _pad_last(params["stem_b"], d0p).reshape(1, d0p)
    kp["norm_gamma"] = _pad_last(params["norm_gamma"], d0p).reshape(1, d0p)

    kp["stages"] = []
    for si in range(len(depths)):
        if depths[si] == 0:
            kp["stages"].append({})
            continue
        D, F = hs[si], ffn[si]
        Dp, Fp = _pad_to_lane(D), _pad_to_lane(F)
        blks = params["down_stages"][si]
        stage = dict(
            dw_w=jnp.stack([_pad_last(bp["dw_w"].reshape(D, kh * kw).T, Dp)
                            for bp in blks], 0),
            dw_b=jnp.stack([_pad_last(bp["dw_b"], Dp).reshape(1, Dp)
                            for bp in blks], 0),
            gamma=jnp.stack([_pad_last(bp["gamma"], Dp).reshape(1, Dp)
                             for bp in blks], 0),
            w1=jnp.stack([_pad_last(_pad_axis(bp["w1"].T, 0, Dp), Fp)
                          for bp in blks], 0).astype(jnp.bfloat16),
            b1=jnp.stack([_pad_last(bp["b1"], Fp).reshape(1, Fp)
                          for bp in blks], 0),
            w2=jnp.stack([_pad_last(_pad_axis(bp["w2"].T, 0, Fp), Dp)
                          for bp in blks], 0).astype(jnp.bfloat16),
            b2=jnp.stack([_pad_last(bp["b2"], Dp).reshape(1, Dp)
                          for bp in blks], 0),
        )
        kp["stages"].append(stage)

    kp["downsample"] = []
    for si in range(len(depths) - 1):
        w, b = params["downsample"][si]                       # (Co, Ci, 2, 2)
        Ci, Co = hs[si], hs[si + 1]
        Cip, Cop = _pad_to_lane(Ci), _pad_to_lane(Co)
        taps = []
        for di in range(2):
            for dj in range(2):
                wt = w[:, :, di, dj].T                        # (Ci, Co)
                taps.append(_pad_last(_pad_axis(wt, 0, Cip), Cop))
        kp["downsample"].append((jnp.stack(taps, 0).astype(jnp.bfloat16),
                                 _pad_last(b, Cop).reshape(1, Cop)))

    dlp = _pad_to_lane(hs[-1])
    kp["embedding_norm_gamma"] = _pad_last(
        params["embedding_norm_gamma"], dlp).reshape(1, dlp)
    return kp


# ----------------------------------------------------------------------------
if __name__ == "__main__":
    cfg = dict(
        in_channels=4,
        patch_size=(4, 4),
        kernel_size=(3, 3),
        depths=(2, 2),
        hidden_sizes=(32, 64),
        ffn_hidden_sizes=(64, 128),
    )
    key = jax.random.PRNGKey(0)
    kx, kparam = jax.random.split(key)
    x = jax.random.normal(kx, (2, 4, 16, 16), jnp.float32)

    params = init_params(kparam, cfg)
    kparams = prepare_params(params, cfg)

    fwd = jax.jit(functools.partial(convnext2d_forward, cfg=cfg, reshape=True))
    out = jax.block_until_ready(fwd(kparams, x))
    assert out.shape == (2, 64, 2, 2), out.shape
    assert bool(jnp.all(jnp.isfinite(out)))
    print("KERNEL_OK")
</pallas_src>

<mosaic_0001>
module attributes {stable_mosaic.version = 11 : i64} {
  func.func @_stem_kernel(%arg0: i32, %arg1: memref<32x128xf32, #tpu.memory_space<vmem>>, %arg2: memref<128x128xbf16, #tpu.memory_space<vmem>>, %arg3: memref<1x128xf32, #tpu.memory_space<vmem>>, %arg4: memref<1x128xf32, #tpu.memory_space<vmem>>, %arg5: memref<32x128xbf16, #tpu.memory_space<vmem>>) attributes {dimension_semantics = [#tpu.dimension_semantics<parallel>], iteration_bounds = array<i64: 2>, scalar_prefetch = 0 : i64, scratch_operands = 0 : i64, tpu.core_type = #tpu.core_type<tc>, window_params = [{transform_indices = @transform_0, window_bounds = array<i64: 32, 128>}, {pipeline_mode = #tpu.pipeline_mode<synchronous>, transform_indices = @transform_1, window_bounds = array<i64: 128, 128>}, {pipeline_mode = #tpu.pipeline_mode<synchronous>, transform_indices = @transform_2, window_bounds = array<i64: 1, 128>}, {pipeline_mode = #tpu.pipeline_mode<synchronous>, transform_indices = @transform_3, window_bounds = array<i64: 1, 128>}, {transform_indices = @transform_4, window_bounds = array<i64: 32, 128>}]} {
    %c0 = arith.constant 0 : index
    %c0_0 = arith.constant 0 : index
    %0 = vector.load %arg1[%c0, %c0_0] : memref<32x128xf32, #tpu.memory_space<vmem>>, vector<32x128xf32>
    %1 = arith.truncf %0 : vector<32x128xf32> to vector<32x128xbf16>
    %c0_1 = arith.constant 0 : index
    %c0_2 = arith.constant 0 : index
    %2 = vector.load %arg2[%c0_1, %c0_2] : memref<128x128xbf16, #tpu.memory_space<vmem>>, vector<128x128xbf16>
    %cst = arith.constant dense<0.000000e+00> : vector<32x128xf32>
    %3 = tpu.matmul %1, %2, %cst {dimension_numbers = #tpu.dot_dimension_numbers<[1], [0], [0], [1], [0, 0, 1, 1], [], []>} : vector<32x128xbf16>, vector<128x128xbf16>, vector<32x128xf32> -> vector<32x128xf32>
    %c0_3 = arith.constant 0 : index
    %c0_4 = arith.constant 0 : index
    %4 = vector.load %arg3[%c0_3, %c0_4] : memref<1x128xf32, #tpu.memory_space<vmem>>, vector<1x128xf32>
    %5 = vector.broadcast %4 : vector<1x128xf32> to vector<32x128xf32>
    %6 = arith.addf %3, %5 : vector<32x128xf32>
    %7 = arith.mulf %6, %6 : vector<32x128xf32>
    %cst_5 = arith.constant dense<0.000000e+00> : vector<32xf32>
    %8 = vector.multi_reduction <add>, %7, %cst_5 [1] : vector<32x128xf32> to vector<32xf32>
    %9 = vector.shape_cast %8 : vector<32xf32> to vector<32x1xf32>
    %cst_6 = arith.constant 3.125000e-02 : f32
    %10 = vector.broadcast %cst_6 : f32 to vector<32x1xf32>
    %11 = arith.mulf %9, %10 : vector<32x1xf32>
    %cst_7 = arith.constant 9.99999974E-6 : f32
    %12 = vector.broadcast %cst_7 : f32 to vector<32x1xf32>
    %13 = arith.addf %11, %12 : vector<32x1xf32>
    %14 = math.rsqrt %13 : vector<32x1xf32>
    %15 = vector.broadcast %14 : vector<32x1xf32> to vector<32x128xf32>
    %16 = arith.mulf %6, %15 : vector<32x128xf32>
    %c0_8 = arith.constant 0 : index
    %c0_9 = arith.constant 0 : index
    %17 = vector.load %arg4[%c0_8, %c0_9] : memref<1x128xf32, #tpu.memory_space<vmem>>, vector<1x128xf32>
    %18 = vector.broadcast %17 : vector<1x128xf32> to vector<32x128xf32>
    %19 = arith.mulf %16, %18 : vector<32x128xf32>
    %20 = arith.truncf %19 : vector<32x128xf32> to vector<32x128xbf16>
    %c0_10 = arith.constant 0 : index
    %c0_11 = arith.constant 0 : index
    %21 = vector.load %arg5[%c0_10, %c0_11] : memref<32x128xbf16, #tpu.memory_space<vmem>>, vector<32x128xbf16>
    tpu.vector_store %arg5[%c0_10, %c0_11], %20 {strides = array<i32>} : memref<32x128xbf16, #tpu.memory_space<vmem>>, vector<32x128xbf16>,
    return
  }
  func.func @transform_0(%arg0: i32) -> (i32, i32) {
    %c0_i32 = arith.constant 0 : i32
    %c0_i32_0 = arith.constant 0 : i32
    return %arg0, %c0_i32 : i32, i32
  }
  func.func @transform_1(%arg0: i32) -> (i32, i32) {
    %c0_i32 = arith.constant 0 : i32
    %c0_i32_0 = arith.constant 0 : i32
    %c0_i32_1 = arith.constant 0 : i32
    return %c0_i32, %c0_i32_0 : i32, i32
  }
  func.func @transform_2(%arg0: i32) -> (i32, i32) {
    %c0_i32 = arith.constant 0 : i32
    %c0_i32_0 = arith.constant 0 : i32
    %c0_i32_1 = arith.constant 0 : i32
    return %c0_i32, %c0_i32_0 : i32, i32
  }
  func.func @transform_3(%arg0: i32) -> (i32, i32) {
    %c0_i32 = arith.constant 0 : i32
    %c0_i32_0 = arith.constant 0 : i32
    %c0_i32_1 = arith.constant 0 : i32
    return %c0_i32, %c0_i32_0 : i32, i32
  }
  func.func @transform_4(%arg0: i32) -> (i32, i32) {
    %c0_i32 = arith.constant 0 : i32
    %c0_i32_0 = arith.constant 0 : i32
    return %arg0, %c0_i32 : i32, i32
  }
}

module attributes {stable_mosaic.version = 11 : i64} {
  func.func @_stage_kernel(%arg0: i32, %arg1: memref<32x128xbf16, #tpu.memory_space<vmem>>, %arg2: memref<2x9x128xf32, #tpu.memory_space<vmem>>, %arg3: memref<2x1x128xf32, #tpu.memory_space<vmem>>, %arg4: memref<2x1x128xf32, #tpu.memory_space<vmem>>, %arg5: memref<2x128x128xbf16, #tpu.memory_space<vmem>>, %arg6: memref<2x1x128xf32, #tpu.memory_space<vmem>>, %arg7: memref<2x128x128xbf16, #tpu.memory_space<vmem>>, %arg8: memref<2x1x128xf32, #tpu.memory_space<vmem>>, %arg9: memref<4x16x32xbf16, #tpu.memory_space<vmem>>, %arg10: memref<4x128x128xbf16, #tpu.memory_space<vmem>>, %arg11: memref<1x128xf32, #tpu.memory_space<vmem>>, %arg12: memref<16x128xbf16, #tpu.memory_space<vmem>>, %arg13: memref<1x64x128xf32, #tpu.memory_space<vmem>>) attributes {dimension_semantics = [#tpu.dimension_semantics<parallel>], iteration_bounds = array<i64: 2>, scalar_prefetch = 0 : i64, scratch_operands = 1 : i64, tpu.core_type = #tpu.core_type<tc>, window_params = [{transform_indices = @transform_0, window_bounds = array<i64: 32, 128>}, {pipeline_mode = #tpu.pipeline_mode<synchronous>, transform_indices = @transform_1, window_bounds = array<i64: 2, 9, 128>}, {pipeline_mode = #tpu.pipeline_mode<synchronous>, transform_indices = @transform_2, window_bounds = array<i64: 2, 1, 128>}, {pipeline_mode = #tpu.pipeline_mode<synchronous>, transform_indices = @transform_3, window_bounds = array<i64: 2, 1, 128>}, {pipeline_mode = #tpu.pipeline_mode<synchronous>, transform_indices = @transform_4, window_bounds = array<i64: 2, 128, 128>}, {pipeline_mode = #tpu.pipeline_mode<synchronous>, transform_indices = @transform_5, window_bounds = array<i64: 2, 1, 128>}, {pipeline_mode = #tpu.pipeline_mode<synchronous>, transform_indices = @transform_6, window_bounds = array<i64: 2, 128, 128>}, {pipeline_mode = #tpu.pipeline_mode<synchronous>, transform_indices = @transform_7, window_bounds = array<i64: 2, 1, 128>}, {pipeline_mode = #tpu.pipeline_mode<synchronous>, transform_indices = @transform_8, window_bounds = array<i64: 4, 16, 32>}, {pipeline_mode = #tpu.pipeline_mode<synchronous>, transform_indices = @transform_9, window_bounds = array<i64: 4, 128, 128>}, {pipeline_mode = #tpu.pipeline_mode<synchronous>, transform_indices = @transform_10, window_bounds = array<i64: 1, 128>}, {transform_indices = @transform_11, window_bounds = array<i64: 16, 128>}]} {
    %c0 = arith.constant 0 : index
    %c0_0 = arith.constant 0 : index
    %0 = vector.load %arg1[%c0, %c0_0] : memref<32x128xbf16, #tpu.memory_space<vmem>>, vector<32x128xbf16>
    %1 = arith.extf %0 : vector<32x128xbf16> to vector<32x128xf32>
    %cst = arith.constant 0.000000e+00 : f32
    %2 = vector.broadcast %cst : f32 to vector<1x16x128xf32>
    %c0_1 = arith.constant 0 : index
    %c0_2 = arith.constant 0 : index
    %c0_3 = arith.constant 0 : index
    %3 = vector.load %arg13[%c0_1, %c0_2, %c0_3] : memref<1x64x128xf32, #tpu.memory_space<vmem>>, vector<1x16x128xf32>
    tpu.vector_store %arg13[%c0_1, %c0_2, %c0_3], %2 {strides = array<i32>} : memref<1x64x128xf32, #tpu.memory_space<vmem>>, vector<1x16x128xf32>,
    %cst_4 = arith.constant 0.000000e+00 : f32
    %4 = vector.broadcast %cst_4 : f32 to vector<1x16x128xf32>
    %c0_5 = arith.constant 0 : index
    %c48 = arith.constant 48 : index
    %c0_6 = arith.constant 0 : index
    %5 = vector.load %arg13[%c0_5, %c48, %c0_6] : memref<1x64x128xf32, #tpu.memory_space<vmem>>, vector<1x16x128xf32>
    tpu.vector_store %arg13[%c0_5, %c48, %c0_6], %4 {strides = array<i32>} : memref<1x64x128xf32, #tpu.memory_space<vmem>>, vector<1x16x128xf32>,
    %6 = tpu.iota {dimensions = array<i32: 1>} : vector<1x32x1xi32>
    %c8_i32 = arith.constant 8 : i32
    %c0_i32 = arith.constant 0 : i32
    %7 = arith.cmpi eq, %c8_i32, %c0_i32 : i32
    %c1_i32 = arith.constant 1 : i32
    %8 = arith.select %7, %c1_i32, %c8_i32 : i32
    %9 = vector.broadcast %8 : i32 to vector<1x32x1xi32>
    %10 = arith.remsi %6, %9 : vector<1x32x1xi32>
    %c0_i32_7 = arith.constant 0 : i32
    %11 = vector.broadcast %c0_i32_7 : i32 to vector<1x32x1xi32>
    %12 = arith.cmpi ne, %10, %11 : vector<1x32x1xi32>
    %c0_i32_8 = arith.constant 0 : i32
    %13 = vector.broadcast %c0_i32_8 : i32 to vector<1x32x1xi32>
    %14 = arith.cmpi slt, %10, %13 : vector<1x32x1xi32>
    %c0_i32_9 = arith.constant 0 : i32
    %15 = arith.cmpi slt, %8, %c0_i32_9 : i32
    %16 = vector.broadcast %15 : i1 to vector<1x32x1xi1>
    %17 = vector.broadcast %16 : vector<1x32x1xi1> to vector<1x32x1xi1>
    %18 = arith.xori %14, %17 : vector<1x32x1xi1>
    %19 = arith.andi %18, %12 : vector<1x32x1xi1>
    %20 = vector.broadcast %8 : i32 to vector<1x32x1xi32>
    %21 = arith.addi %10, %20 : vector<1x32x1xi32>
    %22 = arith.select %19, %21, %10 : vector<1x32x1xi1>, vector<1x32x1xi32>
    %c4_i32 = arith.constant 4 : i32
    %23 = vector.broadcast %c4_i32 : i32 to vector<1x32x1xi32>
    %24 = arith.cmpi slt, %22, %23 : vector<1x32x1xi32>
    %25 = vector.shape_cast %1 : vector<32x128xf32> to vector<1x32x128xf32>
    %cst_10 = arith.constant 0.000000e+00 : f32
    %26 = vector.shape_cast %24 : vector<1x32x1xi1> to vector<1x32x1xi1>
    %27 = vector.broadcast %26 : vector<1x32x1xi1> to vector<1x32x128xi1>
    %28 = vector.broadcast %cst_10 : f32 to vector<1x32x128xf32>
    %29 = arith.select %27, %25, %28 : vector<1x32x128xi1>, vector<1x32x128xf32>
    %c0_11 = arith.constant 0 : index
    %c16 = arith.constant 16 : index
    %c0_12 = arith.constant 0 : index
    %30 = vector.load %arg13[%c0_11, %c16, %c0_12] : memref<1x64x128xf32, #tpu.memory_space<vmem>>, vector<1x32x128xf32>
    tpu.vector_store %arg13[%c0_11, %c16, %c0_12], %29 {strides = array<i32>} : memref<1x64x128xf32, #tpu.memory_space<vmem>>, vector<1x32x128xf32>,
    %cst_13 = arith.constant 0.000000e+00 : f32
    %31 = vector.broadcast %cst_13 : f32 to vector<1x32x128xf32>
    %c0_14 = arith.constant 0 : index
    %c7 = arith.constant 7 : index
    %c0_15 = arith.constant 0 : index
    %32 = vector.load %arg13[%c0_14, %c7, %c0_15] : memref<1x64x128xf32, #tpu.memory_space<vmem>>, vector<1x32x128xf32>
    %c0_16 = arith.constant 0 : index
    %c0_17 = arith.constant 0 : index
    %c0_18 = arith.constant 0 : index
    %33 = vector.load %arg2[%c0_16, %c0_17, %c0_18] : memref<2x9x128xf32, #tpu.memory_space<vmem>>, vector<1x1x128xf32>
    %34 = vector.shape_cast %33 : vector<1x1x128xf32> to vector<1x128xf32>
    %35 = vector.shape_cast %34 : vector<1x128xf32> to vector<1x1x128xf32>
    %36 = vector.broadcast %35 : vector<1x1x128xf32> to vector<1x32x128xf32>
    %37 = arith.mulf %32, %36 : vector<1x32x128xf32>
    %38 = arith.addf %31, %37 : vector<1x32x128xf32>
    %c0_19 = arith.constant 0 : index
    %c8 = arith.constant 8 : index
    %c0_20 = arith.constant 0 : index
    %39 = vector.load %arg13[%c0_19, %c8, %c0_20] : memref<1x64x128xf32, #tpu.memory_space<vmem>>, vector<1x32x128xf32>
    %c0_21 = arith.constant 0 : index
    %c1 = arith.constant 1 : index
    %c0_22 = arith.constant 0 : index
    %40 = vector.load %arg2[%c0_21, %c1, %c0_22] : memref<2x9x128xf32, #tpu.memory_space<vmem>>, vector<1x1x128xf32>
    %41 = vector.shape_cast %40 : vector<1x1x128xf32> to vector<1x128xf32>
    %42 = vector.shape_cast %41 : vector<1x128xf32> to vector<1x1x128xf32>
    %43 = vector.broadcast %42 : vector<1x1x128xf32> to vector<1x32x128xf32>
    %44 = arith.mulf %39, %43 : vector<1x32x128xf32>
    %45 = arith.addf %38, %44 : vector<1x32x128xf32>
    %c0_23 = arith.constant 0 : index
    %c9 = arith.constant 9 : index
    %c0_24 = arith.constant 0 : index
    %46 = vector.load %arg13[%c0_23, %c9, %c0_24] : memref<1x64x128xf32, #tpu.memory_space<vmem>>, vector<1x32x128xf32>
    %c0_25 = arith.constant 0 : index
    %c2 = arith.constant 2 : index
    %c0_26 = arith.constant 0 : index
    %47 = vector.load %arg2[%c0_25, %c2, %c0_26] : memref<2x9x128xf32, #tpu.memory_space<vmem>>, vector<1x1x128xf32>
    %48 = vector.shape_cast %47 : vector<1x1x128xf32> to vector<1x128xf32>
    %49 = vector.shape_cast %48 : vector<1x128xf32> to vector<1x1x128xf32>
    %50 = vector.broadcast %49 : vector<1x1x128xf32> to vector<1x32x128xf32>
    %51 = arith.mulf %46, %50 : vector<1x32x128xf32>
    %52 = arith.addf %45, %51 : vector<1x32x128xf32>
    %c0_27 = arith.constant 0 : index
    %c15 = arith.constant 15 : index
    %c0_28 = arith.constant 0 : index
    %53 = vector.load %arg13[%c0_27, %c15, %c0_28] : memref<1x64x128xf32, #tpu.memory_space<vmem>>, vector<1x32x128xf32>
    %c0_29 = arith.constant 0 : index
    %c3 = arith.constant 3 : index
    %c0_30 = arith.constant 0 : index
    %54 = vector.load %arg2[%c0_29, %c3, %c0_30] : memref<2x9x128xf32, #tpu.memory_space<vmem>>, vector<1x1x128xf32>
    %55 = vector.shape_cast %54 : vector<1x1x128xf32> to vector<1x128xf32>
    %56 = vector.shape_cast %55 : vector<1x128xf32> to vector<1x1x128xf32>
    %57 = vector.broadcast %56 : vector<1x1x128xf32> to vector<1x32x128xf32>
    %58 = arith.mulf %53, %57 : vector<1x32x128xf32>
    %59 = arith.addf %52, %58 : vector<1x32x128xf32>
    %c0_31 = arith.constant 0 : index
    %c16_32 = arith.constant 16 : index
    %c0_33 = arith.constant 0 : index
    %60 = vector.load %arg13[%c0_31, %c16_32, %c0_33] : memref<1x64x128xf32, #tpu.memory_space<vmem>>, vector<1x32x128xf32>
    %c0_34 = arith.constant 0 : index
    %c4 = arith.constant 4 : index
    %c0_35 = arith.constant 0 : index
    %61 = vector.load %arg2[%c0_34, %c4, %c0_35] : memref<2x9x128xf32, #tpu.memory_space<vmem>>, vector<1x1x128xf32>
    %62 = vector.shape_cast %61 : vector<1x1x128xf32> to vector<1x128xf32>
    %63 = vector.shape_cast %62 : vector<1x128xf32> to vector<1x1x128xf32>
    %64 = vector.broadcast %63 : vector<1x1x128xf32> to vector<1x32x128xf32>
    %65 = arith.mulf %60, %64 : vector<1x32x128xf32>
    %66 = arith.addf %59, %65 : vector<1x32x128xf32>
    %c0_36 = arith.constant 0 : index
    %c17 = arith.constant 17 : index
    %c0_37 = arith.constant 0 : index
    %67 = vector.load %arg13[%c0_36, %c17, %c0_37] : memref<1x64x128xf32, #tpu.memory_space<vmem>>, vector<1x32x128xf32>
    %c0_38 = arith.constant 0 : index
    %c5 = arith.constant 5 : index
    %c0_39 = arith.constant 0 : index
    %68 = vector.load %arg2[%c0_38, %c5, %c0_39] : memref<2x9x128xf32, #tpu.memory_space<vmem>>, vector<1x1x128xf32>
    %69 = vector.shape_cast %68 : vector<1x1x128xf32> to vector<1x128xf32>
    %70 = vector.shape_cast %69 : vector<1x128xf32> to vector<1x1x128xf32>
    %71 = vector.broadcast %70 : vector<1x1x128xf32> to vector<1x32x128xf32>
    %72 = arith.mulf %67, %71 : vector<1x32x128xf32>
    %73 = arith.addf %66, %72 : vector<1x32x128xf32>
    %c0_40 = arith.constant 0 : index
    %c23 = arith.constant 23 : index
    %c0_41 = arith.constant 0 : index
    %74 = vector.load %arg13[%c0_40, %c23, %c0_41] : memref<1x64x128xf32, #tpu.memory_space<vmem>>, vector<1x32x128xf32>
    %c0_42 = arith.constant 0 : index
    %c6 = arith.constant 6 : index
    %c0_43 = arith.constant 0 : index
    %75 = vector.load %arg2[%c0_42, %c6, %c0_43] : memref<2x9x128xf32, #tpu.memory_space<vmem>>, vector<1x1x128xf32>
    %76 = vector.shape_cast %75 : vector<1x1x128xf32> to vector<1x128xf32>
    %77 = vector.shape_cast %76 : vector<1x128xf32> to vector<1x1x128xf32>
    %78 = vector.broadcast %77 : vector<1x1x128xf32> to vector<1x32x128xf32>
    %79 = arith.mulf %74, %78 : vector<1x32x128xf32>
    %80 = arith.addf %73, %79 : vector<1x32x128xf32>
    %c0_44 = arith.constant 0 : index
    %c24 = arith.constant 24 : index
    %c0_45 = arith.constant 0 : index
    %81 = vector.load %arg13[%c0_44, %c24, %c0_45] : memref<1x64x128xf32, #tpu.memory_space<vmem>>, vector<1x32x128xf32>
    %c0_46 = arith.constant 0 : index
    %c7_47 = arith.constant 7 : index
    %c0_48 = arith.constant 0 : index
    %82 = vector.load %arg2[%c0_46, %c7_47, %c0_48] : memref<2x9x128xf32, #tpu.memory_space<vmem>>, vector<1x1x128xf32>
    %83 = vector.shape_cast %82 : vector<1x1x128xf32> to vector<1x128xf32>
    %84 = vector.shape_cast %83 : vector<1x128xf32> to vector<1x1x128xf32>
    %85 = vector.broadcast %84 : vector<1x1x128xf32> to vector<1x32x128xf32>
    %86 = arith.mulf %81, %85 : vector<1x32x128xf32>
    %87 = arith.addf %80, %86 : vector<1x32x128xf32>
    %c0_49 = arith.constant 0 : index
    %c25 = arith.constant 25 : index
    %c0_50 = arith.constant 0 : index
    %88 = vector.load %arg13[%c0_49, %c25, %c0_50] : memref<1x64x128xf32, #tpu.memory_space<vmem>>, vector<1x32x128xf32>
    %c0_51 = arith.constant 0 : index
    %c8_52 = arith.constant 8 : index
    %c0_53 = arith.constant 0 : index
    %89 = vector.load %arg2[%c0_51, %c8_52, %c0_53] : memref<2x9x128xf32, #tpu.memory_space<vmem>>, vector<1x1x128xf32>
    %90 = vector.shape_cast %89 : vector<1x1x128xf32> to vector<1x128xf32>
    %91 = vector.shape_cast %90 : vector<1x128xf32> to vector<1x1x128xf32>
    %92 = vector.broadcast %91 : vector<1x1x128xf32> to vector<1x32x128xf32>
    %93 = arith.mulf %88, %92 : vector<1x32x128xf32>
    %94 = arith.addf %87, %93 : vector<1x32x128xf32>
    %95 = vector.shape_cast %94 : vector<1x32x128xf32> to vector<32x128xf32>
    %c0_54 = arith.constant 0 : index
    %c0_55 = arith.constant 0 : index
    %c0_56 = arith.constant 0 : index
    %96 = vector.load %arg3[%c0_54, %c0_55, %c0_56] : memref<2x1x128xf32, #tpu.memory_space<vmem>>, vector<1x1x128xf32>
    %97 = vector.shape_cast %96 : vector<1x1x128xf32> to vector<1x128xf32>
    %98 = vector.broadcast %97 : vector<1x128xf32> to vector<32x128xf32>
    %99 = arith.addf %95, %98 : vector<32x128xf32>
    %100 = arith.mulf %99, %99 : vector<32x128xf32>
    %cst_57 = arith.constant dense<0.000000e+00> : vector<32xf32>
    %101 = vector.multi_reduction <add>, %100, %cst_57 [1] : vector<32x128xf32> to vector<32xf32>
    %102 = vector.shape_cast %101 : vector<32xf32> to vector<32x1xf32>
    %cst_58 = arith.constant 3.125000e-02 : f32
    %103 = vector.broadcast %cst_58 : f32 to vector<32x1xf32>
    %104 = arith.mulf %102, %103 : vector<32x1xf32>
    %cst_59 = arith.constant 9.99999974E-6 : f32
    %105 = vector.broadcast %cst_59 : f32 to vector<32x1xf32>
    %106 = arith.addf %104, %105 : vector<32x1xf32>
    %107 = math.rsqrt %106 : vector<32x1xf32>
    %108 = vector.broadcast %107 : vector<32x1xf32> to vector<32x128xf32>
    %109 = arith.mulf %99, %108 : vector<32x128xf32>
    %c0_60 = arith.constant 0 : index
    %c0_61 = arith.constant 0 : index
    %c0_62 = arith.constant 0 : index
    %110 = vector.load %arg4[%c0_60, %c0_61, %c0_62] : memref<2x1x128xf32, #tpu.memory_space<vmem>>, vector<1x1x128xf32>
    %111 = vector.shape_cast %110 : vector<1x1x128xf32> to vector<1x128xf32>
    %112 = vector.broadcast %111 : vector<1x128xf32> to vector<32x128xf32>
    %113 = arith.mulf %109, %112 : vector<32x128xf32>
    %114 = arith.truncf %113 : vector<32x128xf32> to vector<32x128xbf16>
    %c0_63 = arith.constant 0 : index
    %c0_64 = arith.constant 0 : index
    %c0_65 = arith.constant 0 : index
    %115 = vector.load %arg5[%c0_63, %c0_64, %c0_65] : memref<2x128x128xbf16, #tpu.memory_space<vmem>>, vector<1x128x128xbf16>
    %116 = vector.shape_cast %115 : vector<1x128x128xbf16> to vector<128x128xbf16>
    %cst_66 = arith.constant dense<0.000000e+00> : vector<32x128xf32>
    %117 = tpu.matmul %114, %116, %cst_66 {dimension_numbers = #tpu.dot_dimension_numbers<[1], [0], [0], [1], [0, 0, 1, 1], [], []>} : vector<32x128xbf16>, vector<128x128xbf16>, vector<32x128xf32> -> vector<32x128xf32>
    %c0_67 = arith.constant 0 : index
    %c0_68 = arith.constant 0 : index
    %c0_69 = arith.constant 0 : index
    %118 = vector.load %arg6[%c0_67, %c0_68, %c0_69] : memref<2x1x128xf32, #tpu.memory_space<vmem>>, vector<1x1x128xf32>
    %119 = vector.shape_cast %118 : vector<1x1x128xf32> to vector<1x128xf32>
    %120 = vector.broadcast %119 : vector<1x128xf32> to vector<32x128xf32>
    %121 = arith.addf %117, %120 : vector<32x128xf32>
    %cst_70 = arith.constant 0.000000e+00 : f32
    %122 = vector.broadcast %cst_70 : f32 to vector<32x128xf32>
    %123 = arith.maximumf %121, %122 : vector<32x128xf32>
    %124 = arith.mulf %123, %123 : vector<32x128xf32>
    %125 = arith.truncf %124 : vector<32x128xf32> to vector<32x128xbf16>
    %c0_71 = arith.constant 0 : index
    %c0_72 = arith.constant 0 : index
    %c0_73 = arith.constant 0 : index
    %126 = vector.load %arg7[%c0_71, %c0_72, %c0_73] : memref<2x128x128xbf16, #tpu.memory_space<vmem>>, vector<1x128x128xbf16>
    %127 = vector.shape_cast %126 : vector<1x128x128xbf16> to vector<128x128xbf16>
    %cst_74 = arith.constant dense<0.000000e+00> : vector<32x128xf32>
    %128 = tpu.matmul %125, %127, %cst_74 {dimension_numbers = #tpu.dot_dimension_numbers<[1], [0], [0], [1], [0, 0, 1, 1], [], []>} : vector<32x128xbf16>, vector<128x128xbf16>, vector<32x128xf32> -> vector<32x128xf32>
    %c0_75 = arith.constant 0 : index
    %c0_76 = arith.constant 0 : index
    %c0_77 = arith.constant 0 : index
    %129 = vector.load %arg8[%c0_75, %c0_76, %c0_77] : memref<2x1x128xf32, #tpu.memory_space<vmem>>, vector<1x1x128xf32>
    %130 = vector.shape_cast %129 : vector<1x1x128xf32> to vector<1x128xf32>
    %131 = vector.broadcast %130 : vector<1x128xf32> to vector<32x128xf32>
    %132 = arith.addf %128, %131 : vector<32x128xf32>
    %133 = arith.addf %1, %132 : vector<32x128xf32>
    %134 = vector.shape_cast %133 : vector<32x128xf32> to vector<1x32x128xf32>
    %cst_78 = arith.constant 0.000000e+00 : f32
    %135 = vector.shape_cast %24 : vector<1x32x1xi1> to vector<1x32x1xi1>
    %136 = vector.broadcast %135 : vector<1x32x1xi1> to vector<1x32x128xi1>
    %137 = vector.broadcast %cst_78 : f32 to vector<1x32x128xf32>
    %138 = arith.select %136, %134, %137 : vector<1x32x128xi1>, vector<1x32x128xf32>
    %c0_79 = arith.constant 0 : index
    %c16_80 = arith.constant 16 : index
    %c0_81 = arith.constant 0 : index
    %139 = vector.load %arg13[%c0_79, %c16_80, %c0_81] : memref<1x64x128xf32, #tpu.memory_space<vmem>>, vector<1x32x128xf32>
    tpu.vector_store %arg13[%c0_79, %c16_80, %c0_81], %138 {strides = array<i32>} : memref<1x64x128xf32, #tpu.memory_space<vmem>>, vector<1x32x128xf32>,
    %cst_82 = arith.constant 0.000000e+00 : f32
    %140 = vector.broadcast %cst_82 : f32 to vector<1x32x128xf32>
    %c0_83 = arith.constant 0 : index
    %c7_84 = arith.constant 7 : index
    %c0_85 = arith.constant 0 : index
    %141 = vector.load %arg13[%c0_83, %c7_84, %c0_85] : memref<1x64x128xf32, #tpu.memory_space<vmem>>, vector<1x32x128xf32>
    %c1_86 = arith.constant 1 : index
    %c0_87 = arith.constant 0 : index
    %c0_88 = arith.constant 0 : index
    %142 = vector.load %arg2[%c1_86, %c0_87, %c0_88] : memref<2x9x128xf32, #tpu.memory_space<vmem>>, vector<1x1x128xf32>
    %143 = vector.shape_cast %142 : vector<1x1x128xf32> to vector<1x128xf32>
    %144 = vector.shape_cast %143 : vector<1x128xf32> to vector<1x1x128xf32>
    %145 = vector.broadcast %144 : vector<1x1x128xf32> to vector<1x32x128xf32>
    %146 = arith.mulf %141, %145 : vector<1x32x128xf32>
    %147 = arith.addf %140, %146 : vector<1x32x128xf32>
    %c0_89 = arith.constant 0 : index
    %c8_90 = arith.constant 8 : index
    %c0_91 = arith.constant 0 : index
    %148 = vector.load %arg13[%c0_89, %c8_90, %c0_91] : memref<1x64x128xf32, #tpu.memory_space<vmem>>, vector<1x32x128xf32>
    %c1_92 = arith.constant 1 : index
    %c1_93 = arith.constant 1 : index
    %c0_94 = arith.constant 0 : index
    %149 = vector.load %arg2[%c1_92, %c1_93, %c0_94] : memref<2x9x128xf32, #tpu.memory_space<vmem>>, vector<1x1x128xf32>
    %150 = vector.shape_cast %149 : vector<1x1x128xf32> to vector<1x128xf32>
    %151 = vector.shape_cast %150 : vector<1x128xf32> to vector<1x1x128xf32>
    %152 = vector.broadcast %151 : vector<1x1x128xf32> to vector<1x32x128xf32>
    %153 = arith.mulf %148, %152 : vector<1x32x128xf32>
    %154 = arith.addf %147, %153 : vector<1x32x128xf32>
    %c0_95 = arith.constant 0 : index
    %c9_96 = arith.constant 9 : index
    %c0_97 = arith.constant 0 : index
    %155 = vector.load %arg13[%c0_95, %c9_96, %c0_97] : memref<1x64x128xf32, #tpu.memory_space<vmem>>, vector<1x32x128xf32>
    %c1_98 = arith.constant 1 : index
    %c2_99 = arith.constant 2 : index
    %c0_100 = arith.constant 0 : index
    %156 = vector.load %arg2[%c1_98, %c2_99, %c0_100] : memref<2x9x128xf32, #tpu.memory_space<vmem>>, vector<1x1x128xf32>
    %157 = vector.shape_cast %156 : vector<1x1x128xf32> to vector<1x128xf32>
    %158 = vector.shape_cast %157 : vector<1x128xf32> to vector<1x1x128xf32>
    %159 = vector.broadcast %158 : vector<1x1x128xf32> to vector<1x32x128xf32>
    %160 = arith.mulf %155, %159 : vector<1x32x128xf32>
    %161 = arith.addf %154, %160 : vector<1x32x128xf32>
    %c0_101 = arith.constant 0 : index
    %c15_102 = arith.constant 15 : index
    %c0_103 = arith.constant 0 : index
    %162 = vector.load %arg13[%c0_101, %c15_102, %c0_103] : memref<1x64x128xf32, #tpu.memory_space<vmem>>, vector<1x32x128xf32>
    %c1_104 = arith.constant 1 : index
    %c3_105 = arith.constant 3 : index
    %c0_106 = arith.constant 0 : index
    %163 = vector.load %arg2[%c1_104, %c3_105, %c0_106] : memref<2x9x128xf32, #tpu.memory_space<vmem>>, vector<1x1x128xf32>
    %164 = vector.shape_cast %163 : vector<1x1x128xf32> to vector<1x128xf32>
    %165 = vector.shape_cast %164 : vector<1x128xf32> to vector<1x1x128xf32>
    %166 = vector.broadcast %165 : vector<1x1x128xf32> to vector<1x32x128xf32>
    %167 = arith.mulf %162, %166 : vector<1x32x128xf32>
    %168 = arith.addf %161, %167 : vector<1x32x128xf32>
    %c0_107 = arith.constant 0 : index
    %c16_108 = arith.constant 16 : index
    %c0_109 = arith.constant 0 : index
    %169 = vector.load %arg13[%c0_107, %c16_108, %c0_109] : memref<1x64x128xf32, #tpu.memory_space<vmem>>, vector<1x32x128xf32>
    %c1_110 = arith.constant 1 : index
    %c4_111 = arith.constant 4 : index
    %c0_112 = arith.constant 0 : index
    %170 = vector.load %arg2[%c1_110, %c4_111, %c0_112] : memref<2x9x128xf32, #tpu.memory_space<vmem>>, vector<1x1x128xf32>
    %171 = vector.shape_cast %170 : vector<1x1x128xf32> to vector<1x128xf32>
    %172 = vector.shape_cast %171 : vector<1x128xf32> to vector<1x1x128xf32>
    %173 = vector.broadcast %172 : vector<1x1x128xf32> to vector<1x32x128xf32>
    %174 = arith.mulf %169, %173 : vector<1x32x128xf32>
    %175 = arith.addf %168, %174 : vector<1x32x128xf32>
    %c0_113 = arith.constant 0 : index
    %c17_114 = arith.constant 17 : index
    %c0_115 = arith.constant 0 : index
    %176 = vector.load %arg13[%c0_113, %c17_114, %c0_115] : memref<1x64x128xf32, #tpu.memory_space<vmem>>, vector<1x32x128xf32>
    %c1_116 = arith.constant 1 : index
    %c5_117 = arith.constant 5 : index
    %c0_118 = arith.constant 0 : index
    %177 = vector.load %arg2[%c1_116, %c5_117, %c0_118] : memref<2x9x128xf32, #tpu.memory_space<vmem>>, vector<1x1x128xf32>
    %178 = vector.shape_cast %177 : vector<1x1x128xf32> to vector<1x128xf32>
    %179 = vector.shape_cast %178 : vector<1x128xf32> to vector<1x1x128xf32>
    %180 = vector.broadcast %179 : vector<1x1x128xf32> to vector<1x32x128xf32>
    %181 = arith.mulf %176, %180 : vector<1x32x128xf32>
    %182 = arith.addf %175, %181 : vector<1x32x128xf32>
    %c0_119 = arith.constant 0 : index
    %c23_120 = arith.constant 23 : index
    %c0_121 = arith.constant 0 : index
    %183 = vector.load %arg13[%c0_119, %c23_120, %c0_121] : memref<1x64x128xf32, #tpu.memory_space<vmem>>, vector<1x32x128xf32>
    %c1_122 = arith.constant 1 : index
    %c6_123 = arith.constant 6 : index
    %c0_124 = arith.constant 0 : index
    %184 = vector.load %arg2[%c1_122, %c6_123, %c0_124] : memref<2x9x128xf32, #tpu.memory_space<vmem>>, vector<1x1x128xf32>
    %185 = vector.shape_cast %184 : vector<1x1x128xf32> to vector<1x128xf32>
    %186 = vector.shape_cast %185 : vector<1x128xf32> to vector<1x1x128xf32>
    %187 = vector.broadcast %186 : vector<1x1x128xf32> to vector<1x32x128xf32>
    %188 = arith.mulf %183, %187 : vector<1x32x128xf32>
    %189 = arith.addf %182, %188 : vector<1x32x128xf32>
    %c0_125 = arith.constant 0 : index
    %c24_126 = arith.constant 24 : index
    %c0_127 = arith.constant 0 : index
    %190 = vector.load %arg13[%c0_125, %c24_126, %c0_127] : memref<1x64x128xf32, #tpu.memory_space<vmem>>, vector<1x32x128xf32>
    %c1_128 = arith.constant 1 : index
    %c7_129 = arith.constant 7 : index
    %c0_130 = arith.constant 0 : index
    %191 = vector.load %arg2[%c1_128, %c7_129, %c0_130] : memref<2x9x128xf32, #tpu.memory_space<vmem>>, vector<1x1x128xf32>
    %192 = vector.shape_cast %191 : vector<1x1x128xf32> to vector<1x128xf32>
    %193 = vector.shape_cast %192 : vector<1x128xf32> to vector<1x1x128xf32>
    %194 = vector.broadcast %193 : vector<1x1x128xf32> to vector<1x32x128xf32>
    %195 = arith.mulf %190, %194 : vector<1x32x128xf32>
    %196 = arith.addf %189, %195 : vector<1x32x128xf32>
    %c0_131 = arith.constant 0 : index
    %c25_132 = arith.constant 25 : index
    %c0_133 = arith.constant 0 : index
    %197 = vector.load %arg13[%c0_131, %c25_132, %c0_133] : memref<1x64x128xf32, #tpu.memory_space<vmem>>, vector<1x32x128xf32>
    %c1_134 = arith.constant 1 : index
    %c8_135 = arith.constant 8 : index
    %c0_136 = arith.constant 0 : index
    %198 = vector.load %arg2[%c1_134, %c8_135, %c0_136] : memref<2x9x128xf32, #tpu.memory_space<vmem>>, vector<1x1x128xf32>
    %199 = vector.shape_cast %198 : vector<1x1x128xf32> to vector<1x128xf32>
    %200 = vector.shape_cast %199 : vector<1x128xf32> to vector<1x1x128xf32>
    %201 = vector.broadcast %200 : vector<1x1x128xf32> to vector<1x32x128xf32>
    %202 = arith.mulf %197, %201 : vector<1x32x128xf32>
    %203 = arith.addf %196, %202 : vector<1x32x128xf32>
    %204 = vector.shape_cast %203 : vector<1x32x128xf32> to vector<32x128xf32>
    %c1_137 = arith.constant 1 : index
    %c0_138 = arith.constant 0 : index
    %c0_139 = arith.constant 0 : index
    %205 = vector.load %arg3[%c1_137, %c0_138, %c0_139] : memref<2x1x128xf32, #tpu.memory_space<vmem>>, vector<1x1x128xf32>
    %206 = vector.shape_cast %205 : vector<1x1x128xf32> to vector<1x128xf32>
    %207 = vector.broadcast %206 : vector<1x128xf32> to vector<32x128xf32>
    %208 = arith.addf %204, %207 : vector<32x128xf32>
    %209 = arith.mulf %208, %208 : vector<32x128xf32>
    %cst_140 = arith.constant dense<0.000000e+00> : vector<32xf32>
    %210 = vector.multi_reduction <add>, %209, %cst_140 [1] : vector<32x128xf32> to vector<32xf32>
    %211 = vector.shape_cast %210 : vector<32xf32> to vector<32x1xf32>
    %cst_141 = arith.constant 3.125000e-02 : f32
    %212 = vector.broadcast %cst_141 : f32 to vector<32x1xf32>
    %213 = arith.mulf %211, %212 : vector<32x1xf32>
    %cst_142 = arith.constant 9.99999974E-6 : f32
    %214 = vector.broadcast %cst_142 : f32 to vector<32x1xf32>
    %215 = arith.addf %213, %214 : vector<32x1xf32>
    %216 = math.rsqrt %215 : vector<32x1xf32>
    %217 = vector.broadcast %216 : vector<32x1xf32> to vector<32x128xf32>
    %218 = arith.mulf %208, %217 : vector<32x128xf32>
    %c1_143 = arith.constant 1 : index
    %c0_144 = arith.constant 0 : index
    %c0_145 = arith.constant 0 : index
    %219 = vector.load %arg4[%c1_143, %c0_144, %c0_145] : memref<2x1x128xf32, #tpu.memory_space<vmem>>, vector<1x1x128xf32>
    %220 = vector.shape_cast %219 : vector<1x1x128xf32> to vector<1x128xf32>
    %221 = vector.broadcast %220 : vector<1x128xf32> to vector<32x128xf32>
    %222 = arith.mulf %218, %221 : vector<32x128xf32>
    %223 = arith.truncf %222 : vector<32x128xf32> to vector<32x128xbf16>
    %c1_146 = arith.constant 1 : index
    %c0_147 = arith.constant 0 : index
    %c0_148 = arith.constant 0 : index
    %224 = vector.load %arg5[%c1_146, %c0_147, %c0_148] : memref<2x128x128xbf16, #tpu.memory_space<vmem>>, vector<1x128x128xbf16>
    %225 = vector.shape_cast %224 : vector<1x128x128xbf16> to vector<128x128xbf16>
    %cst_149 = arith.constant dense<0.000000e+00> : vector<32x128xf32>
    %226 = tpu.matmul %223, %225, %cst_149 {dimension_numbers = #tpu.dot_dimension_numbers<[1], [0], [0], [1], [0, 0, 1, 1], [], []>} : vector<32x128xbf16>, vector<128x128xbf16>, vector<32x128xf32> -> vector<32x128xf32>
    %c1_150 = arith.constant 1 : index
    %c0_151 = arith.constant 0 : index
    %c0_152 = arith.constant 0 : index
    %227 = vector.load %arg6[%c1_150, %c0_151, %c0_152] : memref<2x1x128xf32, #tpu.memory_space<vmem>>, vector<1x1x128xf32>
    %228 = vector.shape_cast %227 : vector<1x1x128xf32> to vector<1x128xf32>
    %229 = vector.broadcast %228 : vector<1x128xf32> to vector<32x128xf32>
    %230 = arith.addf %226, %229 : vector<32x128xf32>
    %cst_153 = arith.constant 0.000000e+00 : f32
    %231 = vector.broadcast %cst_153 : f32 to vector<32x128xf32>
    %232 = arith.maximumf %230, %231 : vector<32x128xf32>
    %233 = arith.mulf %232, %232 : vector<32x128xf32>
    %234 = arith.truncf %233 : vector<32x128xf32> to vector<32x128xbf16>
    %c1_154 = arith.constant 1 : index
    %c0_155 = arith.constant 0 : index
    %c0_156 = arith.constant 0 : index
    %235 = vector.load %arg7[%c1_154, %c0_155, %c0_156] : memref<2x128x128xbf16, #tpu.memory_space<vmem>>, vector<1x128x128xbf16>
    %236 = vector.shape_cast %235 : vector<1x128x128xbf16> to vector<128x128xbf16>
    %cst_157 = arith.constant dense<0.000000e+00> : vector<32x128xf32>
    %237 = tpu.matmul %234, %236, %cst_157 {dimension_numbers = #tpu.dot_dimension_numbers<[1], [0], [0], [1], [0, 0, 1, 1], [], []>} : vector<32x128xbf16>, vector<128x128xbf16>, vector<32x128xf32> -> vector<32x128xf32>
    %c1_158 = arith.constant 1 : index
    %c0_159 = arith.constant 0 : index
    %c0_160 = arith.constant 0 : index
    %238 = vector.load %arg8[%c1_158, %c0_159, %c0_160] : memref<2x1x128xf32, #tpu.memory_space<vmem>>, vector<1x1x128xf32>
    %239 = vector.shape_cast %238 : vector<1x1x128xf32> to vector<1x128xf32>
    %240 = vector.broadcast %239 : vector<1x128xf32> to vector<32x128xf32>
    %241 = arith.addf %237, %240 : vector<32x128xf32>
    %242 = arith.addf %133, %241 : vector<32x128xf32>
    %243 = arith.truncf %242 : vector<32x128xf32> to vector<32x128xbf16>
    %cst_161 = arith.constant 0.000000e+00 : f32
    %244 = vector.broadcast %cst_161 : f32 to vector<16x128xf32>
    %c0_162 = arith.constant 0 : index
    %c0_163 = arith.constant 0 : index
    %c0_164 = arith.constant 0 : index
    %245 = vector.load %arg9[%c0_162, %c0_163, %c0_164] : memref<4x16x32xbf16, #tpu.memory_space<vmem>>, vector<1x16x32xbf16>
    %246 = vector.shape_cast %245 : vector<1x16x32xbf16> to vector<16x32xbf16>
    %cst_165 = arith.constant dense<0.000000e+00> : vector<16x128xf32>
    %247 = tpu.matmul %246, %243, %cst_165 {dimension_numbers = #tpu.dot_dimension_numbers<[1], [0], [0], [1], [0, 0, 1, 1], [], []>} : vector<16x32xbf16>, vector<32x128xbf16>, vector<16x128xf32> -> vector<16x128xf32>
    %248 = arith.truncf %247 : vector<16x128xf32> to vector<16x128xbf16>
    %c0_166 = arith.constant 0 : index
    %c0_167 = arith.constant 0 : index
    %c0_168 = arith.constant 0 : index
    %249 = vector.load %arg10[%c0_166, %c0_167, %c0_168] : memref<4x128x128xbf16, #tpu.memory_space<vmem>>, vector<1x128x128xbf16>
    %250 = vector.shape_cast %249 : vector<1x128x128xbf16> to vector<128x128xbf16>
    %cst_169 = arith.constant dense<0.000000e+00> : vector<16x128xf32>
    %251 = tpu.matmul %248, %250, %cst_169 {dimension_numbers = #tpu.dot_dimension_numbers<[1], [0], [0], [1], [0, 0, 1, 1], [], []>} : vector<16x128xbf16>, vector<128x128xbf16>, vector<16x128xf32> -> vector<16x128xf32>
    %252 = arith.addf %244, %251 : vector<16x128xf32>
    %c1_170 = arith.constant 1 : index
    %c0_171 = arith.constant 0 : index
    %c0_172 = arith.constant 0 : index
    %253 = vector.load %arg9[%c1_170, %c0_171, %c0_172] : memref<4x16x32xbf16, #tpu.memory_space<vmem>>, vector<1x16x32xbf16>
    %254 = vector.shape_cast %253 : vector<1x16x32xbf16> to vector<16x32xbf16>
    %cst_173 = arith.constant dense<0.000000e+00> : vector<16x128xf32>
    %255 = tpu.matmul %254, %243, %cst_173 {dimension_numbers = #tpu.dot_dimension_numbers<[1], [0], [0], [1], [0, 0, 1, 1], [], []>} : vector<16x32xbf16>, vector<32x128xbf16>, vector<16x128xf32> -> vector<16x128xf32>
    %256 = arith.truncf %255 : vector<16x128xf32> to vector<16x128xbf16>
    %c1_174 = arith.constant 1 : index
    %c0_175 = arith.constant 0 : index
    %c0_176 = arith.constant 0 : index
    %257 = vector.load %arg10[%c1_174, %c0_175, %c0_176] : memref<4x128x128xbf16, #tpu.memory_space<vmem>>, vector<1x128x128xbf16>
    %258 = vector.shape_cast %257 : vector<1x128x128xbf16> to vector<128x128xbf16>
    %cst_177 = arith.constant dense<0.000000e+00> : vector<16x128xf32>
    %259 = tpu.matmul %256, %258, %cst_177 {dimension_numbers = #tpu.dot_dimension_numbers<[1], [0], [0], [1], [0, 0, 1, 1], [], []>} : vector<16x128xbf16>, vector<128x128xbf16>, vector<16x128xf32> -> vector<16x128xf32>
    %260 = arith.addf %252, %259 : vector<16x128xf32>
    %c2_178 = arith.constant 2 : index
    %c0_179 = arith.constant 0 : index
    %c0_180 = arith.constant 0 : index
    %261 = vector.load %arg9[%c2_178, %c0_179, %c0_180] : memref<4x16x32xbf16, #tpu.memory_space<vmem>>, vector<1x16x32xbf16>
    %262 = vector.shape_cast %261 : vector<1x16x32xbf16> to vector<16x32xbf16>
    %cst_181 = arith.constant dense<0.000000e+00> : vector<16x128xf32>
    %263 = tpu.matmul %262, %243, %cst_181 {dimension_numbers = #tpu.dot_dimension_numbers<[1], [0], [0], [1], [0, 0, 1, 1], [], []>} : vector<16x32xbf16>, vector<32x128xbf16>, vector<16x128xf32> -> vector<16x128xf32>
    %264 = arith.truncf %263 : vector<16x128xf32> to vector<16x128xbf16>
    %c2_182 = arith.constant 2 : index
    %c0_183 = arith.constant 0 : index
    %c0_184 = arith.constant 0 : index
    %265 = vector.load %arg10[%c2_182, %c0_183, %c0_184] : memref<4x128x128xbf16, #tpu.memory_space<vmem>>, vector<1x128x128xbf16>
    %266 = vector.shape_cast %265 : vector<1x128x128xbf16> to vector<128x128xbf16>
    %cst_185 = arith.constant dense<0.000000e+00> : vector<16x128xf32>
    %267 = tpu.matmul %264, %266, %cst_185 {dimension_numbers = #tpu.dot_dimension_numbers<[1], [0], [0], [1], [0, 0, 1, 1], [], []>} : vector<16x128xbf16>, vector<128x128xbf16>, vector<16x128xf32> -> vector<16x128xf32>
    %268 = arith.addf %260, %267 : vector<16x128xf32>
    %c3_186 = arith.constant 3 : index
    %c0_187 = arith.constant 0 : index
    %c0_188 = arith.constant 0 : index
    %269 = vector.load %arg9[%c3_186, %c0_187, %c0_188] : memref<4x16x32xbf16, #tpu.memory_space<vmem>>, vector<1x16x32xbf16>
    %270 = vector.shape_cast %269 : vector<1x16x32xbf16> to vector<16x32xbf16>
    %cst_189 = arith.constant dense<0.000000e+00> : vector<16x128xf32>
    %271 = tpu.matmul %270, %243, %cst_189 {dimension_numbers = #tpu.dot_dimension_numbers<[1], [0], [0], [1], [0, 0, 1, 1], [], []>} : vector<16x32xbf16>, vector<32x128xbf16>, vector<16x128xf32> -> vector<16x128xf32>
    %272 = arith.truncf %271 : vector<16x128xf32> to vector<16x128xbf16>
    %c3_190 = arith.constant 3 : index
    %c0_191 = arith.constant 0 : index
    %c0_192 = arith.constant 0 : index
    %273 = vector.load %arg10[%c3_190, %c0_191, %c0_192] : memref<4x128x128xbf16, #tpu.memory_space<vmem>>, vector<1x128x128xbf16>
    %274 = vector.shape_cast %273 : vector<1x128x128xbf16> to vector<128x128xbf16>
    %cst_193 = arith.constant dense<0.000000e+00> : vector<16x128xf32>
    %275 = tpu.matmul %272, %274, %cst_193 {dimension_numbers = #tpu.dot_dimension_numbers<[1], [0], [0], [1], [0, 0, 1, 1], [], []>} : vector<16x128xbf16>, vector<128x128xbf16>, vector<16x128xf32> -> vector<16x128xf32>
    %276 = arith.addf %268, %275 : vector<16x128xf32>
    %c0_194 = arith.constant 0 : index
    %c0_195 = arith.constant 0 : index
    %277 = vector.load %arg11[%c0_194, %c0_195] : memref<1x128xf32, #tpu.memory_space<vmem>>, vector<1x128xf32>
    %278 = vector.broadcast %277 : vector<1x128xf32> to vector<16x128xf32>
    %279 = arith.addf %276, %278 : vector<16x128xf32>
    %280 = arith.truncf %279 : vector<16x128xf32> to vector<16x128xbf16>
    %c0_196 = arith.constant 0 : index
    %c0_197 = arith.constant 0 : index
    %281 = vector.load %arg12[%c0_196, %c0_197] : memref<16x128xbf16, #tpu.memory_space<vmem>>, vector<16x128xbf16>
    tpu.vector_store %arg12[%c0_196, %c0_197], %280 {strides = array<i32>} : memref<16x128xbf16, #tpu.memory_space<vmem>>, vector<16x128xbf16>,
    return
  }
  func.func @transform_0(%arg0: i32) -> (i32, i32) {
    %c0_i32 = arith.constant 0 : i32
    %c0_i32_0 = arith.constant 0 : i32
    return %arg0, %c0_i32 : i32, i32
  }
  func.func @transform_1(%arg0: i32) -> (i32, i32, i32) {
    %c0_i32 = arith.constant 0 : i32
    %c0_i32_0 = arith.constant 0 : i32
    %c0_i32_1 = arith.constant 0 : i32
    %c0_i32_2 = arith.constant 0 : i32
    return %c0_i32, %c0_i32_0, %c0_i32_1 : i32, i32, i32
  }
  func.func @transform_2(%arg0: i32) -> (i32, i32, i32) {
    %c0_i32 = arith.constant 0 : i32
    %c0_i32_0 = arith.constant 0 : i32
    %c0_i32_1 = arith.constant 0 : i32
    %c0_i32_2 = arith.constant 0 : i32
    return %c0_i32, %c0_i32_0, %c0_i32_1 : i32, i32, i32
  }
  func.func @transform_3(%arg0: i32) -> (i32, i32, i32) {
    %c0_i32 = arith.constant 0 : i32
    %c0_i32_0 = arith.constant 0 : i32
    %c0_i32_1 = arith.constant 0 : i32
    %c0_i32_2 = arith.constant 0 : i32
    return %c0_i32, %c0_i32_0, %c0_i32_1 : i32, i32, i32
  }
  func.func @transform_4(%arg0: i32) -> (i32, i32, i32) {
    %c0_i32 = arith.constant 0 : i32
    %c0_i32_0 = arith.constant 0 : i32
    %c0_i32_1 = arith.constant 0 : i32
    %c0_i32_2 = arith.constant 0 : i32
    return %c0_i32, %c0_i32_0, %c0_i32_1 : i32, i32, i32
  }
  func.func @transform_5(%arg0: i32) -> (i32, i32, i32) {
    %c0_i32 = arith.constant 0 : i32
    %c0_i32_0 = arith.constant 0 : i32
    %c0_i32_1 = arith.constant 0 : i32
    %c0_i32_2 = arith.constant 0 : i32
    return %c0_i32, %c0_i32_0, %c0_i32_1 : i32, i32, i32
  }
  func.func @transform_6(%arg0: i32) -> (i32, i32, i32) {
    %c0_i32 = arith.constant 0 : i32
    %c0_i32_0 = arith.constant 0 : i32
    %c0_i32_1 = arith.constant 0 : i32
    %c0_i32_2 = arith.constant 0 : i32
    return %c0_i32, %c0_i32_0, %c0_i32_1 : i32, i32, i32
  }
  func.func @transform_7(%arg0: i32) -> (i32, i32, i32) {
    %c0_i32 = arith.constant 0 : i32
    %c0_i32_0 = arith.constant 0 : i32
    %c0_i32_1 = arith.constant 0 : i32
    %c0_i32_2 = arith.constant 0 : i32
    return %c0_i32, %c0_i32_0, %c0_i32_1 : i32, i32, i32
  }
  func.func @transform_8(%arg0: i32) -> (i32, i32, i32) {
    %c0_i32 = arith.constant 0 : i32
    %c0_i32_0 = arith.constant 0 : i32
    %c0_i32_1 = arith.constant 0 : i32
    %c0_i32_2 = arith.constant 0 : i32
    return %c0_i32, %c0_i32_0, %c0_i32_1 : i32, i32, i32
  }
  func.func @transform_9(%arg0: i32) -> (i32, i32, i32) {
    %c0_i32 = arith.constant 0 : i32
    %c0_i32_0 = arith.constant 0 : i32
    %c0_i32_1 = arith.constant 0 : i32
    %c0_i32_2 = arith.constant 0 : i32
    return %c0_i32, %c0_i32_0, %c0_i32_1 : i32, i32, i32
  }
  func.func @transform_10(%arg0: i32) -> (i32, i32) {
    %c0_i32 = arith.constant 0 : i32
    %c0_i32_0 = arith.constant 0 : i32
    %c0_i32_1 = arith.constant 0 : i32
    return %c0_i32, %c0_i32_0 : i32, i32
  }
  func.func @transform_11(%arg0: i32) -> (i32, i32) {
    %c0_i32 = arith.constant 0 : i32
    %c0_i32_0 = arith.constant 0 : i32
    return %arg0, %c0_i32 : i32, i32
  }
}

module attributes {stable_mosaic.version = 11 : i64} {
  func.func @_stage_kernel(%arg0: i32, %arg1: memref<16x128xbf16, #tpu.memory_space<vmem>>, %arg2: memref<2x9x128xf32, #tpu.memory_space<vmem>>, %arg3: memref<2x1x128xf32, #tpu.memory_space<vmem>>, %arg4: memref<2x1x128xf32, #tpu.memory_space<vmem>>, %arg5: memref<2x128x128xbf16, #tpu.memory_space<vmem>>, %arg6: memref<2x1x128xf32, #tpu.memory_space<vmem>>, %arg7: memref<2x128x128xbf16, #tpu.memory_space<vmem>>, %arg8: memref<2x1x128xf32, #tpu.memory_space<vmem>>, %arg9: memref<1x128xf32, #tpu.memory_space<vmem>>, %arg10: memref<16x128xf32, #tpu.memory_space<vmem>>, %arg11: memref<1x48x128xf32, #tpu.memory_space<vmem>>) attributes {dimension_semantics = [#tpu.dimension_semantics<parallel>], iteration_bounds = array<i64: 2>, scalar_prefetch = 0 : i64, scratch_operands = 1 : i64, tpu.core_type = #tpu.core_type<tc>, window_params = [{transform_indices = @transform_0, window_bounds = array<i64: 16, 128>}, {pipeline_mode = #tpu.pipeline_mode<synchronous>, transform_indices = @transform_1, window_bounds = array<i64: 2, 9, 128>}, {pipeline_mode = #tpu.pipeline_mode<synchronous>, transform_indices = @transform_2, window_bounds = array<i64: 2, 1, 128>}, {pipeline_mode = #tpu.pipeline_mode<synchronous>, transform_indices = @transform_3, window_bounds = array<i64: 2, 1, 128>}, {pipeline_mode = #tpu.pipeline_mode<synchronous>, transform_indices = @transform_4, window_bounds = array<i64: 2, 128, 128>}, {pipeline_mode = #tpu.pipeline_mode<synchronous>, transform_indices = @transform_5, window_bounds = array<i64: 2, 1, 128>}, {pipeline_mode = #tpu.pipeline_mode<synchronous>, transform_indices = @transform_6, window_bounds = array<i64: 2, 128, 128>}, {pipeline_mode = #tpu.pipeline_mode<synchronous>, transform_indices = @transform_7, window_bounds = array<i64: 2, 1, 128>}, {pipeline_mode = #tpu.pipeline_mode<synchronous>, transform_indices = @transform_8, window_bounds = array<i64: 1, 128>}, {transform_indices = @transform_9, window_bounds = array<i64: 16, 128>}]} {
    %c0 = arith.constant 0 : index
    %c0_0 = arith.constant 0 : index
    %0 = vector.load %arg1[%c0, %c0_0] : memref<16x128xbf16, #tpu.memory_space<vmem>>, vector<16x128xbf16>
    %1 = arith.extf %0 : vector<16x128xbf16> to vector<16x128xf32>
    %cst = arith.constant 0.000000e+00 : f32
    %2 = vector.broadcast %cst : f32 to vector<1x16x128xf32>
    %c0_1 = arith.constant 0 : index
    %c0_2 = arith.constant 0 : index
    %c0_3 = arith.constant 0 : index
    %3 = vector.load %arg11[%c0_1, %c0_2, %c0_3] : memref<1x48x128xf32, #tpu.memory_space<vmem>>, vector<1x16x128xf32>
    tpu.vector_store %arg11[%c0_1, %c0_2, %c0_3], %2 {strides = array<i32>} : memref<1x48x128xf32, #tpu.memory_space<vmem>>, vector<1x16x128xf32>,
    %cst_4 = arith.constant 0.000000e+00 : f32
    %4 = vector.broadcast %cst_4 : f32 to vector<1x16x128xf32>
    %c0_5 = arith.constant 0 : index
    %c32 = arith.constant 32 : index
    %c0_6 = arith.constant 0 : index
    %5 = vector.load %arg11[%c0_5, %c32, %c0_6] : memref<1x48x128xf32, #tpu.memory_space<vmem>>, vector<1x16x128xf32>
    tpu.vector_store %arg11[%c0_5, %c32, %c0_6], %4 {strides = array<i32>} : memref<1x48x128xf32, #tpu.memory_space<vmem>>, vector<1x16x128xf32>,
    %6 = tpu.iota {dimensions = array<i32: 1>} : vector<1x16x1xi32>
    %c8_i32 = arith.constant 8 : i32
    %c0_i32 = arith.constant 0 : i32
    %7 = arith.cmpi eq, %c8_i32, %c0_i32 : i32
    %c1_i32 = arith.constant 1 : i32
    %8 = arith.select %7, %c1_i32, %c8_i32 : i32
    %9 = vector.broadcast %8 : i32 to vector<1x16x1xi32>
    %10 = arith.remsi %6, %9 : vector<1x16x1xi32>
    %c0_i32_7 = arith.constant 0 : i32
    %11 = vector.broadcast %c0_i32_7 : i32 to vector<1x16x1xi32>
    %12 = arith.cmpi ne, %10, %11 : vector<1x16x1xi32>
    %c0_i32_8 = arith.constant 0 : i32
    %13 = vector.broadcast %c0_i32_8 : i32 to vector<1x16x1xi32>
    %14 = arith.cmpi slt, %10, %13 : vector<1x16x1xi32>
    %c0_i32_9 = arith.constant 0 : i32
    %15 = arith.cmpi slt, %8, %c0_i32_9 : i32
    %16 = vector.broadcast %15 : i1 to vector<1x16x1xi1>
    %17 = vector.broadcast %16 : vector<1x16x1xi1> to vector<1x16x1xi1>
    %18 = arith.xori %14, %17 : vector<1x16x1xi1>
    %19 = arith.andi %18, %12 : vector<1x16x1xi1>
    %20 = vector.broadcast %8 : i32 to vector<1x16x1xi32>
    %21 = arith.addi %10, %20 : vector<1x16x1xi32>
    %22 = arith.select %19, %21, %10 : vector<1x16x1xi1>, vector<1x16x1xi32>
    %c2_i32 = arith.constant 2 : i32
    %23 = vector.broadcast %c2_i32 : i32 to vector<1x16x1xi32>
    %24 = arith.cmpi slt, %22, %23 : vector<1x16x1xi32>
    %25 = vector.shape_cast %1 : vector<16x128xf32> to vector<1x16x128xf32>
    %cst_10 = arith.constant 0.000000e+00 : f32
    %26 = vector.shape_cast %24 : vector<1x16x1xi1> to vector<1x16x1xi1>
    %27 = vector.broadcast %26 : vector<1x16x1xi1> to vector<1x16x128xi1>
    %28 = vector.broadcast %cst_10 : f32 to vector<1x16x128xf32>
    %29 = arith.select %27, %25, %28 : vector<1x16x128xi1>, vector<1x16x128xf32>
    %c0_11 = arith.constant 0 : index
    %c16 = arith.constant 16 : index
    %c0_12 = arith.constant 0 : index
    %30 = vector.load %arg11[%c0_11, %c16, %c0_12] : memref<1x48x128xf32, #tpu.memory_space<vmem>>, vector<1x16x128xf32>
    tpu.vector_store %arg11[%c0_11, %c16, %c0_12], %29 {strides = array<i32>} : memref<1x48x128xf32, #tpu.memory_space<vmem>>, vector<1x16x128xf32>,
    %cst_13 = arith.constant 0.000000e+00 : f32
    %31 = vector.broadcast %cst_13 : f32 to vector<1x16x128xf32>
    %c0_14 = arith.constant 0 : index
    %c7 = arith.constant 7 : index
    %c0_15 = arith.constant 0 : index
    %32 = vector.load %arg11[%c0_14, %c7, %c0_15] : memref<1x48x128xf32, #tpu.memory_space<vmem>>, vector<1x16x128xf32>
    %c0_16 = arith.constant 0 : index
    %c0_17 = arith.constant 0 : index
    %c0_18 = arith.constant 0 : index
    %33 = vector.load %arg2[%c0_16, %c0_17, %c0_18] : memref<2x9x128xf32, #tpu.memory_space<vmem>>, vector<1x1x128xf32>
    %34 = vector.shape_cast %33 : vector<1x1x128xf32> to vector<1x128xf32>
    %35 = vector.shape_cast %34 : vector<1x128xf32> to vector<1x1x128xf32>
    %36 = vector.broadcast %35 : vector<1x1x128xf32> to vector<1x16x128xf32>
    %37 = arith.mulf %32, %36 : vector<1x16x128xf32>
    %38 = arith.addf %31, %37 : vector<1x16x128xf32>
    %c0_19 = arith.constant 0 : index
    %c8 = arith.constant 8 : index
    %c0_20 = arith.constant 0 : index
    %39 = vector.load %arg11[%c0_19, %c8, %c0_20] : memref<1x48x128xf32, #tpu.memory_space<vmem>>, vector<1x16x128xf32>
    %c0_21 = arith.constant 0 : index
    %c1 = arith.constant 1 : index
    %c0_22 = arith.constant 0 : index
    %40 = vector.load %arg2[%c0_21, %c1, %c0_22] : memref<2x9x128xf32, #tpu.memory_space<vmem>>, vector<1x1x128xf32>
    %41 = vector.shape_cast %40 : vector<1x1x128xf32> to vector<1x128xf32>
    %42 = vector.shape_cast %41 : vector<1x128xf32> to vector<1x1x128xf32>
    %43 = vector.broadcast %42 : vector<1x1x128xf32> to vector<1x16x128xf32>
    %44 = arith.mulf %39, %43 : vector<1x16x128xf32>
    %45 = arith.addf %38, %44 : vector<1x16x128xf32>
    %c0_23 = arith.constant 0 : index
    %c9 = arith.constant 9 : index
    %c0_24 = arith.constant 0 : index
    %46 = vector.load %arg11[%c0_23, %c9, %c0_24] : memref<1x48x128xf32, #tpu.memory_space<vmem>>, vector<1x16x128xf32>
    %c0_25 = arith.constant 0 : index
    %c2 = arith.constant 2 : index
    %c0_26 = arith.constant 0 : index
    %47 = vector.load %arg2[%c0_25, %c2, %c0_26] : memref<2x9x128xf32, #tpu.memory_space<vmem>>, vector<1x1x128xf32>
    %48 = vector.shape_cast %47 : vector<1x1x128xf32> to vector<1x128xf32>
    %49 = vector.shape_cast %48 : vector<1x128xf32> to vector<1x1x128xf32>
    %50 = vector.broadcast %49 : vector<1x1x128xf32> to vector<1x16x128xf32>
    %51 = arith.mulf %46, %50 : vector<1x16x128xf32>
    %52 = arith.addf %45, %51 : vector<1x16x128xf32>
    %c0_27 = arith.constant 0 : index
    %c15 = arith.constant 15 : index
    %c0_28 = arith.constant 0 : index
    %53 = vector.load %arg11[%c0_27, %c15, %c0_28] : memref<1x48x128xf32, #tpu.memory_space<vmem>>, vector<1x16x128xf32>
    %c0_29 = arith.constant 0 : index
    %c3 = arith.constant 3 : index
    %c0_30 = arith.constant 0 : index
    %54 = vector.load %arg2[%c0_29, %c3, %c0_30] : memref<2x9x128xf32, #tpu.memory_space<vmem>>, vector<1x1x128xf32>
    %55 = vector.shape_cast %54 : vector<1x1x128xf32> to vector<1x128xf32>
    %56 = vector.shape_cast %55 : vector<1x128xf32> to vector<1x1x128xf32>
    %57 = vector.broadcast %56 : vector<1x1x128xf32> to vector<1x16x128xf32>
    %58 = arith.mulf %53, %57 : vector<1x16x128xf32>
    %59 = arith.addf %52, %58 : vector<1x16x128xf32>
    %c0_31 = arith.constant 0 : index
    %c16_32 = arith.constant 16 : index
    %c0_33 = arith.constant 0 : index
    %60 = vector.load %arg11[%c0_31, %c16_32, %c0_33] : memref<1x48x128xf32, #tpu.memory_space<vmem>>, vector<1x16x128xf32>
    %c0_34 = arith.constant 0 : index
    %c4 = arith.constant 4 : index
    %c0_35 = arith.constant 0 : index
    %61 = vector.load %arg2[%c0_34, %c4, %c0_35] : memref<2x9x128xf32, #tpu.memory_space<vmem>>, vector<1x1x128xf32>
    %62 = vector.shape_cast %61 : vector<1x1x128xf32> to vector<1x128xf32>
    %63 = vector.shape_cast %62 : vector<1x128xf32> to vector<1x1x128xf32>
    %64 = vector.broadcast %63 : vector<1x1x128xf32> to vector<1x16x128xf32>
    %65 = arith.mulf %60, %64 : vector<1x16x128xf32>
    %66 = arith.addf %59, %65 : vector<1x16x128xf32>
    %c0_36 = arith.constant 0 : index
    %c17 = arith.constant 17 : index
    %c0_37 = arith.constant 0 : index
    %67 = vector.load %arg11[%c0_36, %c17, %c0_37] : memref<1x48x128xf32, #tpu.memory_space<vmem>>, vector<1x16x128xf32>
    %c0_38 = arith.constant 0 : index
    %c5 = arith.constant 5 : index
    %c0_39 = arith.constant 0 : index
    %68 = vector.load %arg2[%c0_38, %c5, %c0_39] : memref<2x9x128xf32, #tpu.memory_space<vmem>>, vector<1x1x128xf32>
    %69 = vector.shape_cast %68 : vector<1x1x128xf32> to vector<1x128xf32>
    %70 = vector.shape_cast %69 : vector<1x128xf32> to vector<1x1x128xf32>
    %71 = vector.broadcast %70 : vector<1x1x128xf32> to vector<1x16x128xf32>
    %72 = arith.mulf %67, %71 : vector<1x16x128xf32>
    %73 = arith.addf %66, %72 : vector<1x16x128xf32>
    %c0_40 = arith.constant 0 : index
    %c23 = arith.constant 23 : index
    %c0_41 = arith.constant 0 : index
    %74 = vector.load %arg11[%c0_40, %c23, %c0_41] : memref<1x48x128xf32, #tpu.memory_space<vmem>>, vector<1x16x128xf32>
    %c0_42 = arith.constant 0 : index
    %c6 = arith.constant 6 : index
    %c0_43 = arith.constant 0 : index
    %75 = vector.load %arg2[%c0_42, %c6, %c0_43] : memref<2x9x128xf32, #tpu.memory_space<vmem>>, vector<1x1x128xf32>
    %76 = vector.shape_cast %75 : vector<1x1x128xf32> to vector<1x128xf32>
    %77 = vector.shape_cast %76 : vector<1x128xf32> to vector<1x1x128xf32>
    %78 = vector.broadcast %77 : vector<1x1x128xf32> to vector<1x16x128xf32>
    %79 = arith.mulf %74, %78 : vector<1x16x128xf32>
    %80 = arith.addf %73, %79 : vector<1x16x128xf32>
    %c0_44 = arith.constant 0 : index
    %c24 = arith.constant 24 : index
    %c0_45 = arith.constant 0 : index
    %81 = vector.load %arg11[%c0_44, %c24, %c0_45] : memref<1x48x128xf32, #tpu.memory_space<vmem>>, vector<1x16x128xf32>
    %c0_46 = arith.constant 0 : index
    %c7_47 = arith.constant 7 : index
    %c0_48 = arith.constant 0 : index
    %82 = vector.load %arg2[%c0_46, %c7_47, %c0_48] : memref<2x9x128xf32, #tpu.memory_space<vmem>>, vector<1x1x128xf32>
    %83 = vector.shape_cast %82 : vector<1x1x128xf32> to vector<1x128xf32>
    %84 = vector.shape_cast %83 : vector<1x128xf32> to vector<1x1x128xf32>
    %85 = vector.broadcast %84 : vector<1x1x128xf32> to vector<1x16x128xf32>
    %86 = arith.mulf %81, %85 : vector<1x16x128xf32>
    %87 = arith.addf %80, %86 : vector<1x16x128xf32>
    %c0_49 = arith.constant 0 : index
    %c25 = arith.constant 25 : index
    %c0_50 = arith.constant 0 : index
    %88 = vector.load %arg11[%c0_49, %c25, %c0_50] : memref<1x48x128xf32, #tpu.memory_space<vmem>>, vector<1x16x128xf32>
    %c0_51 = arith.constant 0 : index
    %c8_52 = arith.constant 8 : index
    %c0_53 = arith.constant 0 : index
    %89 = vector.load %arg2[%c0_51, %c8_52, %c0_53] : memref<2x9x128xf32, #tpu.memory_space<vmem>>, vector<1x1x128xf32>
    %90 = vector.shape_cast %89 : vector<1x1x128xf32> to vector<1x128xf32>
    %91 = vector.shape_cast %90 : vector<1x128xf32> to vector<1x1x128xf32>
    %92 = vector.broadcast %91 : vector<1x1x128xf32> to vector<1x16x128xf32>
    %93 = arith.mulf %88, %92 : vector<1x16x128xf32>
    %94 = arith.addf %87, %93 : vector<1x16x128xf32>
    %95 = vector.shape_cast %94 : vector<1x16x128xf32> to vector<16x128xf32>
    %c0_54 = arith.constant 0 : index
    %c0_55 = arith.constant 0 : index
    %c0_56 = arith.constant 0 : index
    %96 = vector.load %arg3[%c0_54, %c0_55, %c0_56] : memref<2x1x128xf32, #tpu.memory_space<vmem>>, vector<1x1x128xf32>
    %97 = vector.shape_cast %96 : vector<1x1x128xf32> to vector<1x128xf32>
    %98 = vector.broadcast %97 : vector<1x128xf32> to vector<16x128xf32>
    %99 = arith.addf %95, %98 : vector<16x128xf32>
    %100 = arith.mulf %99, %99 : vector<16x128xf32>
    %cst_57 = arith.constant dense<0.000000e+00> : vector<16xf32>
    %101 = vector.multi_reduction <add>, %100, %cst_57 [1] : vector<16x128xf32> to vector<16xf32>
    %102 = vector.shape_cast %101 : vector<16xf32> to vector<16x1xf32>
    %cst_58 = arith.constant 1.562500e-02 : f32
    %103 = vector.broadcast %cst_58 : f32 to vector<16x1xf32>
    %104 = arith.mulf %102, %103 : vector<16x1xf32>
    %cst_59 = arith.constant 9.99999974E-6 : f32
    %105 = vector.broadcast %cst_59 : f32 to vector<16x1xf32>
    %106 = arith.addf %104, %105 : vector<16x1xf32>
    %107 = math.rsqrt %106 : vector<16x1xf32>
    %108 = vector.broadcast %107 : vector<16x1xf32> to vector<16x128xf32>
    %109 = arith.mulf %99, %108 : vector<16x128xf32>
    %c0_60 = arith.constant 0 : index
    %c0_61 = arith.constant 0 : index
    %c0_62 = arith.constant 0 : index
    %110 = vector.load %arg4[%c0_60, %c0_61, %c0_62] : memref<2x1x128xf32, #tpu.memory_space<vmem>>, vector<1x1x128xf32>
    %111 = vector.shape_cast %110 : vector<1x1x128xf32> to vector<1x128xf32>
    %112 = vector.broadcast %111 : vector<1x128xf32> to vector<16x128xf32>
    %113 = arith.mulf %109, %112 : vector<16x128xf32>
    %114 = arith.truncf %113 : vector<16x128xf32> to vector<16x128xbf16>
    %c0_63 = arith.constant 0 : index
    %c0_64 = arith.constant 0 : index
    %c0_65 = arith.constant 0 : index
    %115 = vector.load %arg5[%c0_63, %c0_64, %c0_65] : memref<2x128x128xbf16, #tpu.memory_space<vmem>>, vector<1x128x128xbf16>
    %116 = vector.shape_cast %115 : vector<1x128x128xbf16> to vector<128x128xbf16>
    %cst_66 = arith.constant dense<0.000000e+00> : vector<16x128xf32>
    %117 = tpu.matmul %114, %116, %cst_66 {dimension_numbers = #tpu.dot_dimension_numbers<[1], [0], [0], [1], [0, 0, 1, 1], [], []>} : vector<16x128xbf16>, vector<128x128xbf16>, vector<16x128xf32> -> vector<16x128xf32>
    %c0_67 = arith.constant 0 : index
    %c0_68 = arith.constant 0 : index
    %c0_69 = arith.constant 0 : index
    %118 = vector.load %arg6[%c0_67, %c0_68, %c0_69] : memref<2x1x128xf32, #tpu.memory_space<vmem>>, vector<1x1x128xf32>
    %119 = vector.shape_cast %118 : vector<1x1x128xf32> to vector<1x128xf32>
    %120 = vector.broadcast %119 : vector<1x128xf32> to vector<16x128xf32>
    %121 = arith.addf %117, %120 : vector<16x128xf32>
    %cst_70 = arith.constant 0.000000e+00 : f32
    %122 = vector.broadcast %cst_70 : f32 to vector<16x128xf32>
    %123 = arith.maximumf %121, %122 : vector<16x128xf32>
    %124 = arith.mulf %123, %123 : vector<16x128xf32>
    %125 = arith.truncf %124 : vector<16x128xf32> to vector<16x128xbf16>
    %c0_71 = arith.constant 0 : index
    %c0_72 = arith.constant 0 : index
    %c0_73 = arith.constant 0 : index
    %126 = vector.load %arg7[%c0_71, %c0_72, %c0_73] : memref<2x128x128xbf16, #tpu.memory_space<vmem>>, vector<1x128x128xbf16>
    %127 = vector.shape_cast %126 : vector<1x128x128xbf16> to vector<128x128xbf16>
    %cst_74 = arith.constant dense<0.000000e+00> : vector<16x128xf32>
    %128 = tpu.matmul %125, %127, %cst_74 {dimension_numbers = #tpu.dot_dimension_numbers<[1], [0], [0], [1], [0, 0, 1, 1], [], []>} : vector<16x128xbf16>, vector<128x128xbf16>, vector<16x128xf32> -> vector<16x128xf32>
    %c0_75 = arith.constant 0 : index
    %c0_76 = arith.constant 0 : index
    %c0_77 = arith.constant 0 : index
    %129 = vector.load %arg8[%c0_75, %c0_76, %c0_77] : memref<2x1x128xf32, #tpu.memory_space<vmem>>, vector<1x1x128xf32>
    %130 = vector.shape_cast %129 : vector<1x1x128xf32> to vector<1x128xf32>
    %131 = vector.broadcast %130 : vector<1x128xf32> to vector<16x128xf32>
    %132 = arith.addf %128, %131 : vector<16x128xf32>
    %133 = arith.addf %1, %132 : vector<16x128xf32>
    %134 = vector.shape_cast %133 : vector<16x128xf32> to vector<1x16x128xf32>
    %cst_78 = arith.constant 0.000000e+00 : f32
    %135 = vector.shape_cast %24 : vector<1x16x1xi1> to vector<1x16x1xi1>
    %136 = vector.broadcast %135 : vector<1x16x1xi1> to vector<1x16x128xi1>
    %137 = vector.broadcast %cst_78 : f32 to vector<1x16x128xf32>
    %138 = arith.select %136, %134, %137 : vector<1x16x128xi1>, vector<1x16x128xf32>
    %c0_79 = arith.constant 0 : index
    %c16_80 = arith.constant 16 : index
    %c0_81 = arith.constant 0 : index
    %139 = vector.load %arg11[%c0_79, %c16_80, %c0_81] : memref<1x48x128xf32, #tpu.memory_space<vmem>>, vector<1x16x128xf32>
    tpu.vector_store %arg11[%c0_79, %c16_80, %c0_81], %138 {strides = array<i32>} : memref<1x48x128xf32, #tpu.memory_space<vmem>>, vector<1x16x128xf32>,
    %cst_82 = arith.constant 0.000000e+00 : f32
    %140 = vector.broadcast %cst_82 : f32 to vector<1x16x128xf32>
    %c0_83 = arith.constant 0 : index
    %c7_84 = arith.constant 7 : index
    %c0_85 = arith.constant 0 : index
    %141 = vector.load %arg11[%c0_83, %c7_84, %c0_85] : memref<1x48x128xf32, #tpu.memory_space<vmem>>, vector<1x16x128xf32>
    %c1_86 = arith.constant 1 : index
    %c0_87 = arith.constant 0 : index
    %c0_88 = arith.constant 0 : index
    %142 = vector.load %arg2[%c1_86, %c0_87, %c0_88] : memref<2x9x128xf32, #tpu.memory_space<vmem>>, vector<1x1x128xf32>
    %143 = vector.shape_cast %142 : vector<1x1x128xf32> to vector<1x128xf32>
    %144 = vector.shape_cast %143 : vector<1x128xf32> to vector<1x1x128xf32>
    %145 = vector.broadcast %144 : vector<1x1x128xf32> to vector<1x16x128xf32>
    %146 = arith.mulf %141, %145 : vector<1x16x128xf32>
    %147 = arith.addf %140, %146 : vector<1x16x128xf32>
    %c0_89 = arith.constant 0 : index
    %c8_90 = arith.constant 8 : index
    %c0_91 = arith.constant 0 : index
    %148 = vector.load %arg11[%c0_89, %c8_90, %c0_91] : memref<1x48x128xf32, #tpu.memory_space<vmem>>, vector<1x16x128xf32>
    %c1_92 = arith.constant 1 : index
    %c1_93 = arith.constant 1 : index
    %c0_94 = arith.constant 0 : index
    %149 = vector.load %arg2[%c1_92, %c1_93, %c0_94] : memref<2x9x128xf32, #tpu.memory_space<vmem>>, vector<1x1x128xf32>
    %150 = vector.shape_cast %149 : vector<1x1x128xf32> to vector<1x128xf32>
    %151 = vector.shape_cast %150 : vector<1x128xf32> to vector<1x1x128xf32>
    %152 = vector.broadcast %151 : vector<1x1x128xf32> to vector<1x16x128xf32>
    %153 = arith.mulf %148, %152 : vector<1x16x128xf32>
    %154 = arith.addf %147, %153 : vector<1x16x128xf32>
    %c0_95 = arith.constant 0 : index
    %c9_96 = arith.constant 9 : index
    %c0_97 = arith.constant 0 : index
    %155 = vector.load %arg11[%c0_95, %c9_96, %c0_97] : memref<1x48x128xf32, #tpu.memory_space<vmem>>, vector<1x16x128xf32>
    %c1_98 = arith.constant 1 : index
    %c2_99 = arith.constant 2 : index
    %c0_100 = arith.constant 0 : index
    %156 = vector.load %arg2[%c1_98, %c2_99, %c0_100] : memref<2x9x128xf32, #tpu.memory_space<vmem>>, vector<1x1x128xf32>
    %157 = vector.shape_cast %156 : vector<1x1x128xf32> to vector<1x128xf32>
    %158 = vector.shape_cast %157 : vector<1x128xf32> to vector<1x1x128xf32>
    %159 = vector.broadcast %158 : vector<1x1x128xf32> to vector<1x16x128xf32>
    %160 = arith.mulf %155, %159 : vector<1x16x128xf32>
    %161 = arith.addf %154, %160 : vector<1x16x128xf32>
    %c0_101 = arith.constant 0 : index
    %c15_102 = arith.constant 15 : index
    %c0_103 = arith.constant 0 : index
    %162 = vector.load %arg11[%c0_101, %c15_102, %c0_103] : memref<1x48x128xf32, #tpu.memory_space<vmem>>, vector<1x16x128xf32>
    %c1_104 = arith.constant 1 : index
    %c3_105 = arith.constant 3 : index
    %c0_106 = arith.constant 0 : index
    %163 = vector.load %arg2[%c1_104, %c3_105, %c0_106] : memref<2x9x128xf32, #tpu.memory_space<vmem>>, vector<1x1x128xf32>
    %164 = vector.shape_cast %163 : vector<1x1x128xf32> to vector<1x128xf32>
    %165 = vector.shape_cast %164 : vector<1x128xf32> to vector<1x1x128xf32>
    %166 = vector.broadcast %165 : vector<1x1x128xf32> to vector<1x16x128xf32>
    %167 = arith.mulf %162, %166 : vector<1x16x128xf32>
    %168 = arith.addf %161, %167 : vector<1x16x128xf32>
    %c0_107 = arith.constant 0 : index
    %c16_108 = arith.constant 16 : index
    %c0_109 = arith.constant 0 : index
    %169 = vector.load %arg11[%c0_107, %c16_108, %c0_109] : memref<1x48x128xf32, #tpu.memory_space<vmem>>, vector<1x16x128xf32>
    %c1_110 = arith.constant 1 : index
    %c4_111 = arith.constant 4 : index
    %c0_112 = arith.constant 0 : index
    %170 = vector.load %arg2[%c1_110, %c4_111, %c0_112] : memref<2x9x128xf32, #tpu.memory_space<vmem>>, vector<1x1x128xf32>
    %171 = vector.shape_cast %170 : vector<1x1x128xf32> to vector<1x128xf32>
    %172 = vector.shape_cast %171 : vector<1x128xf32> to vector<1x1x128xf32>
    %173 = vector.broadcast %172 : vector<1x1x128xf32> to vector<1x16x128xf32>
    %174 = arith.mulf %169, %173 : vector<1x16x128xf32>
    %175 = arith.addf %168, %174 : vector<1x16x128xf32>
    %c0_113 = arith.constant 0 : index
    %c17_114 = arith.constant 17 : index
    %c0_115 = arith.constant 0 : index
    %176 = vector.load %arg11[%c0_113, %c17_114, %c0_115] : memref<1x48x128xf32, #tpu.memory_space<vmem>>, vector<1x16x128xf32>
    %c1_116 = arith.constant 1 : index
    %c5_117 = arith.constant 5 : index
    %c0_118 = arith.constant 0 : index
    %177 = vector.load %arg2[%c1_116, %c5_117, %c0_118] : memref<2x9x128xf32, #tpu.memory_space<vmem>>, vector<1x1x128xf32>
    %178 = vector.shape_cast %177 : vector<1x1x128xf32> to vector<1x128xf32>
    %179 = vector.shape_cast %178 : vector<1x128xf32> to vector<1x1x128xf32>
    %180 = vector.broadcast %179 : vector<1x1x128xf32> to vector<1x16x128xf32>
    %181 = arith.mulf %176, %180 : vector<1x16x128xf32>
    %182 = arith.addf %175, %181 : vector<1x16x128xf32>
    %c0_119 = arith.constant 0 : index
    %c23_120 = arith.constant 23 : index
    %c0_121 = arith.constant 0 : index
    %183 = vector.load %arg11[%c0_119, %c23_120, %c0_121] : memref<1x48x128xf32, #tpu.memory_space<vmem>>, vector<1x16x128xf32>
    %c1_122 = arith.constant 1 : index
    %c6_123 = arith.constant 6 : index
    %c0_124 = arith.constant 0 : index
    %184 = vector.load %arg2[%c1_122, %c6_123, %c0_124] : memref<2x9x128xf32, #tpu.memory_space<vmem>>, vector<1x1x128xf32>
    %185 = vector.shape_cast %184 : vector<1x1x128xf32> to vector<1x128xf32>
    %186 = vector.shape_cast %185 : vector<1x128xf32> to vector<1x1x128xf32>
    %187 = vector.broadcast %186 : vector<1x1x128xf32> to vector<1x16x128xf32>
    %188 = arith.mulf %183, %187 : vector<1x16x128xf32>
    %189 = arith.addf %182, %188 : vector<1x16x128xf32>
    %c0_125 = arith.constant 0 : index
    %c24_126 = arith.constant 24 : index
    %c0_127 = arith.constant 0 : index
    %190 = vector.load %arg11[%c0_125, %c24_126, %c0_127] : memref<1x48x128xf32, #tpu.memory_space<vmem>>, vector<1x16x128xf32>
    %c1_128 = arith.constant 1 : index
    %c7_129 = arith.constant 7 : index
    %c0_130 = arith.constant 0 : index
    %191 = vector.load %arg2[%c1_128, %c7_129, %c0_130] : memref<2x9x128xf32, #tpu.memory_space<vmem>>, vector<1x1x128xf32>
    %192 = vector.shape_cast %191 : vector<1x1x128xf32> to vector<1x128xf32>
    %193 = vector.shape_cast %192 : vector<1x128xf32> to vector<1x1x128xf32>
    %194 = vector.broadcast %193 : vector<1x1x128xf32> to vector<1x16x128xf32>
    %195 = arith.mulf %190, %194 : vector<1x16x128xf32>
    %196 = arith.addf %189, %195 : vector<1x16x128xf32>
    %c0_131 = arith.constant 0 : index
    %c25_132 = arith.constant 25 : index
    %c0_133 = arith.constant 0 : index
    %197 = vector.load %arg11[%c0_131, %c25_132, %c0_133] : memref<1x48x128xf32, #tpu.memory_space<vmem>>, vector<1x16x128xf32>
    %c1_134 = arith.constant 1 : index
    %c8_135 = arith.constant 8 : index
    %c0_136 = arith.constant 0 : index
    %198 = vector.load %arg2[%c1_134, %c8_135, %c0_136] : memref<2x9x128xf32, #tpu.memory_space<vmem>>, vector<1x1x128xf32>
    %199 = vector.shape_cast %198 : vector<1x1x128xf32> to vector<1x128xf32>
    %200 = vector.shape_cast %199 : vector<1x128xf32> to vector<1x1x128xf32>
    %201 = vector.broadcast %200 : vector<1x1x128xf32> to vector<1x16x128xf32>
    %202 = arith.mulf %197, %201 : vector<1x16x128xf32>
    %203 = arith.addf %196, %202 : vector<1x16x128xf32>
    %204 = vector.shape_cast %203 : vector<1x16x128xf32> to vector<16x128xf32>
    %c1_137 = arith.constant 1 : index
    %c0_138 = arith.constant 0 : index
    %c0_139 = arith.constant 0 : index
    %205 = vector.load %arg3[%c1_137, %c0_138, %c0_139] : memref<2x1x128xf32, #tpu.memory_space<vmem>>, vector<1x1x128xf32>
    %206 = vector.shape_cast %205 : vector<1x1x128xf32> to vector<1x128xf32>
    %207 = vector.broadcast %206 : vector<1x128xf32> to vector<16x128xf32>
    %208 = arith.addf %204, %207 : vector<16x128xf32>
    %209 = arith.mulf %208, %208 : vector<16x128xf32>
    %cst_140 = arith.constant dense<0.000000e+00> : vector<16xf32>
    %210 = vector.multi_reduction <add>, %209, %cst_140 [1] : vector<16x128xf32> to vector<16xf32>
    %211 = vector.shape_cast %210 : vector<16xf32> to vector<16x1xf32>
    %cst_141 = arith.constant 1.562500e-02 : f32
    %212 = vector.broadcast %cst_141 : f32 to vector<16x1xf32>
    %213 = arith.mulf %211, %212 : vector<16x1xf32>
    %cst_142 = arith.constant 9.99999974E-6 : f32
    %214 = vector.broadcast %cst_142 : f32 to vector<16x1xf32>
    %215 = arith.addf %213, %214 : vector<16x1xf32>
    %216 = math.rsqrt %215 : vector<16x1xf32>
    %217 = vector.broadcast %216 : vector<16x1xf32> to vector<16x128xf32>
    %218 = arith.mulf %208, %217 : vector<16x128xf32>
    %c1_143 = arith.constant 1 : index
    %c0_144 = arith.constant 0 : index
    %c0_145 = arith.constant 0 : index
    %219 = vector.load %arg4[%c1_143, %c0_144, %c0_145] : memref<2x1x128xf32, #tpu.memory_space<vmem>>, vector<1x1x128xf32>
    %220 = vector.shape_cast %219 : vector<1x1x128xf32> to vector<1x128xf32>
    %221 = vector.broadcast %220 : vector<1x128xf32> to vector<16x128xf32>
    %222 = arith.mulf %218, %221 : vector<16x128xf32>
    %223 = arith.truncf %222 : vector<16x128xf32> to vector<16x128xbf16>
    %c1_146 = arith.constant 1 : index
    %c0_147 = arith.constant 0 : index
    %c0_148 = arith.constant 0 : index
    %224 = vector.load %arg5[%c1_146, %c0_147, %c0_148] : memref<2x128x128xbf16, #tpu.memory_space<vmem>>, vector<1x128x128xbf16>
    %225 = vector.shape_cast %224 : vector<1x128x128xbf16> to vector<128x128xbf16>
    %cst_149 = arith.constant dense<0.000000e+00> : vector<16x128xf32>
    %226 = tpu.matmul %223, %225, %cst_149 {dimension_numbers = #tpu.dot_dimension_numbers<[1], [0], [0], [1], [0, 0, 1, 1], [], []>} : vector<16x128xbf16>, vector<128x128xbf16>, vector<16x128xf32> -> vector<16x128xf32>
    %c1_150 = arith.constant 1 : index
    %c0_151 = arith.constant 0 : index
    %c0_152 = arith.constant 0 : index
    %227 = vector.load %arg6[%c1_150, %c0_151, %c0_152] : memref<2x1x128xf32, #tpu.memory_space<vmem>>, vector<1x1x128xf32>
    %228 = vector.shape_cast %227 : vector<1x1x128xf32> to vector<1x128xf32>
    %229 = vector.broadcast %228 : vector<1x128xf32> to vector<16x128xf32>
    %230 = arith.addf %226, %229 : vector<16x128xf32>
    %cst_153 = arith.constant 0.000000e+00 : f32
    %231 = vector.broadcast %cst_153 : f32 to vector<16x128xf32>
    %232 = arith.maximumf %230, %231 : vector<16x128xf32>
    %233 = arith.mulf %232, %232 : vector<16x128xf32>
    %234 = arith.truncf %233 : vector<16x128xf32> to vector<16x128xbf16>
    %c1_154 = arith.constant 1 : index
    %c0_155 = arith.constant 0 : index
    %c0_156 = arith.constant 0 : index
    %235 = vector.load %arg7[%c1_154, %c0_155, %c0_156] : memref<2x128x128xbf16, #tpu.memory_space<vmem>>, vector<1x128x128xbf16>
    %236 = vector.shape_cast %235 : vector<1x128x128xbf16> to vector<128x128xbf16>
    %cst_157 = arith.constant dense<0.000000e+00> : vector<16x128xf32>
    %237 = tpu.matmul %234, %236, %cst_157 {dimension_numbers = #tpu.dot_dimension_numbers<[1], [0], [0], [1], [0, 0, 1, 1], [], []>} : vector<16x128xbf16>, vector<128x128xbf16>, vector<16x128xf32> -> vector<16x128xf32>
    %c1_158 = arith.constant 1 : index
    %c0_159 = arith.constant 0 : index
    %c0_160 = arith.constant 0 : index
    %238 = vector.load %arg8[%c1_158, %c0_159, %c0_160] : memref<2x1x128xf32, #tpu.memory_space<vmem>>, vector<1x1x128xf32>
    %239 = vector.shape_cast %238 : vector<1x1x128xf32> to vector<1x128xf32>
    %240 = vector.broadcast %239 : vector<1x128xf32> to vector<16x128xf32>
    %241 = arith.addf %237, %240 : vector<16x128xf32>
    %242 = arith.addf %133, %241 : vector<16x128xf32>
    %243 = arith.mulf %242, %242 : vector<16x128xf32>
    %cst_161 = arith.constant dense<0.000000e+00> : vector<16xf32>
    %244 = vector.multi_reduction <add>, %243, %cst_161 [1] : vector<16x128xf32> to vector<16xf32>
    %245 = vector.shape_cast %244 : vector<16xf32> to vector<16x1xf32>
    %cst_162 = arith.constant 1.562500e-02 : f32
    %246 = vector.broadcast %cst_162 : f32 to vector<16x1xf32>
    %247 = arith.mulf %245, %246 : vector<16x1xf32>
    %cst_163 = arith.constant 9.99999974E-6 : f32
    %248 = vector.broadcast %cst_163 : f32 to vector<16x1xf32>
    %249 = arith.addf %247, %248 : vector<16x1xf32>
    %250 = math.rsqrt %249 : vector<16x1xf32>
    %251 = vector.broadcast %250 : vector<16x1xf32> to vector<16x128xf32>
    %252 = arith.mulf %242, %251 : vector<16x128xf32>
    %c0_164 = arith.constant 0 : index
    %c0_165 = arith.constant 0 : index
    %253 = vector.load %arg9[%c0_164, %c0_165] : memref<1x128xf32, #tpu.memory_space<vmem>>, vector<1x128xf32>
    %254 = vector.broadcast %253 : vector<1x128xf32> to vector<16x128xf32>
    %255 = arith.mulf %252, %254 : vector<16x128xf32>
    %c0_166 = arith.constant 0 : index
    %c0_167 = arith.constant 0 : index
    %256 = vector.load %arg10[%c0_166, %c0_167] : memref<16x128xf32, #tpu.memory_space<vmem>>, vector<16x128xf32>
    tpu.vector_store %arg10[%c0_166, %c0_167], %255 {strides = array<i32>} : memref<16x128xf32, #tpu.memory_space<vmem>>, vector<16x128xf32>,
    return
  }
  func.func @transform_0(%arg0: i32) -> (i32, i32) {
    %c0_i32 = arith.constant 0 : i32
    %c0_i32_0 = arith.constant 0 : i32
    return %arg0, %c0_i32 : i32, i32
  }
  func.func @transform_1(%arg0: i32) -> (i32, i32, i32) {
    %c0_i32 = arith.constant 0 : i32
    %c0_i32_0 = arith.constant 0 : i32
    %c0_i32_1 = arith.constant 0 : i32
    %c0_i32_2 = arith.constant 0 : i32
    return %c0_i32, %c0_i32_0, %c0_i32_1 : i32, i32, i32
  }
  func.func @transform_2(%arg0: i32) -> (i32, i32, i32) {
    %c0_i32 = arith.constant 0 : i32
    %c0_i32_0 = arith.constant 0 : i32
    %c0_i32_1 = arith.constant 0 : i32
    %c0_i32_2 = arith.constant 0 : i32
    return %c0_i32, %c0_i32_0, %c0_i32_1 : i32, i32, i32
  }
  func.func @transform_3(%arg0: i32) -> (i32, i32, i32) {
    %c0_i32 = arith.constant 0 : i32
    %c0_i32_0 = arith.constant 0 : i32
    %c0_i32_1 = arith.constant 0 : i32
    %c0_i32_2 = arith.constant 0 : i32
    return %c0_i32, %c0_i32_0, %c0_i32_1 : i32, i32, i32
  }
  func.func @transform_4(%arg0: i32) -> (i32, i32, i32) {
    %c0_i32 = arith.constant 0 : i32
    %c0_i32_0 = arith.constant 0 : i32
    %c0_i32_1 = arith.constant 0 : i32
    %c0_i32_2 = arith.constant 0 : i32
    return %c0_i32, %c0_i32_0, %c0_i32_1 : i32, i32, i32
  }
  func.func @transform_5(%arg0: i32) -> (i32, i32, i32) {
    %c0_i32 = arith.constant 0 : i32
    %c0_i32_0 = arith.constant 0 : i32
    %c0_i32_1 = arith.constant 0 : i32
    %c0_i32_2 = arith.constant 0 : i32
    return %c0_i32, %c0_i32_0, %c0_i32_1 : i32, i32, i32
  }
  func.func @transform_6(%arg0: i32) -> (i32, i32, i32) {
    %c0_i32 = arith.constant 0 : i32
    %c0_i32_0 = arith.constant 0 : i32
    %c0_i32_1 = arith.constant 0 : i32
    %c0_i32_2 = arith.constant 0 : i32
    return %c0_i32, %c0_i32_0, %c0_i32_1 : i32, i32, i32
  }
  func.func @transform_7(%arg0: i32) -> (i32, i32, i32) {
    %c0_i32 = arith.constant 0 : i32
    %c0_i32_0 = arith.constant 0 : i32
    %c0_i32_1 = arith.constant 0 : i32
    %c0_i32_2 = arith.constant 0 : i32
    return %c0_i32, %c0_i32_0, %c0_i32_1 : i32, i32, i32
  }
  func.func @transform_8(%arg0: i32) -> (i32, i32) {
    %c0_i32 = arith.constant 0 : i32
    %c0_i32_0 = arith.constant 0 : i32
    %c0_i32_1 = arith.constant 0 : i32
    return %c0_i32, %c0_i32_0 : i32, i32
  }
  func.func @transform_9(%arg0: i32) -> (i32, i32) {
    %c0_i32 = arith.constant 0 : i32
    %c0_i32_0 = arith.constant 0 : i32
    return %arg0, %c0_i32 : i32, i32
  }
}

</mosaic_0001>

<llo_original>
// kernel: convnext2d_forward.3
$region0: #{convnext2d_forward.3}
  #allocation0 [shape = 'u32[]', space=smem, size = 0x4, offset = 0x4, fixed_abs, tag = 'smem constant byte address 0x4 - core index']
  #allocation1 [shape = 'u32[144,128]{1,0:T(1,128)}', space=vmem, size = 0x12000, scoped, tag = 'internal scratch']
  %s0 = inlined_call_operand.vmem [shape: f32[64,128], index: 0, kind: input, shape index: {}]
  %s1 = inlined_call_operand.vmem [shape: bf16[128,128], index: 1, kind: input, shape index: {}]
  %s2 = inlined_call_operand.vmem [shape: f32[1,128], index: 2, kind: input, shape index: {}]
  %s3 = inlined_call_operand.vmem [shape: f32[1,128], index: 3, kind: input, shape index: {}]
  %s4 = inlined_call_operand.vmem [shape: bf16[64,128], index: 4, kind: output, shape index: {}]
  %s5 = sld [smem:[#allocation0]]
  $region49: #{convnext2d_forward.3} parent=0
    _
  %s7 = ssub.s32 1, %s5
  %s8 = scalar_select 0, %s7, %s5
  loop: start=0, step=1, limit=4
  $region2: #{convnext2d_forward.3} parent=0 // loop_pre_header
    _
  $region3: #{convnext2d_forward.3} parent=0 // loop_header
    %s10 = sphi 0, %s14
    %p11 = scmp.ge.s32.totalorder %s10, 4
    %s20 = sphi 0, %s22
    %s23 = sphi 0, %s20
    %s24 = sphi 0, %s23
    %s40 = sphi 0, %s24
    %s44 = sphi 0, %s44
    %s46 = sphi 0, %s44
    %s47 = sphi 0, %s46
    %s61 = sphi 0, %s47
    %s65 = sphi 0, %s65
    %s67 = sphi 0, %s65
    %s68 = sphi 0, %s67
    %s82 = sphi 0, %s68
    %s86 = sphi 0, %s86
    %s88 = sphi 0, %s86
    %s89 = sphi 0, %s88
    %s103 = sphi 0, %s89
    %s109 = sphi 0, %s111
    %s112 = sphi 0, %s109
    %s113 = sphi 0, %s112
    %s129 = sphi 0, %s113
  $region4: #{convnext2d_forward.3} parent=0 // loop_header_branch
    %13 = sbr.rel (%p11) target = $region8
  $region5: #{convnext2d_forward.3} parent=0 // loop_body
    %s15 = ssub.s32 %s10, 1
    %s16 = ssub.s32 %s10, 2
    %s17 = sadd.s32 %s10, 1
    %s18 = ssub.s32 %s10, %s17
    %p19 = scmp.eq.s32.totalorder %s18, 0
    %s21 = sadd.s32 %s20, 1
    %s22 = scalar_select %p19, %s20, %s21
    %p25 = pneg %p19
    %p26 = scmp.eq.s32.totalorder %s10, 1
    %p27 = por %p25, %p26
    %p28 = scmp.ne.s32.totalorder %s20, %s23
    %p29 = scmp.eq.s32.totalorder %s10, 0
    %p30 = por %p28, %p29
    %p31 = scmp.ne.s32.totalorder %s20, %s23
    %p32 = scmp.eq.s32.totalorder %s15, 1
    %p33 = por %p31, %p32
    %p34 = scmp.ne.s32.totalorder %s23, %s24
    %p35 = scmp.eq.s32.totalorder %s15, 0
    %p36 = por %p34, %p35
    %p37 = scmp.ne.s32.totalorder %s23, %s24
    %p38 = scmp.eq.s32.totalorder %s16, 1
    %p39 = por %p37, %p38
    %p41 = scmp.ne.s32.totalorder %s24, %s40
    %p42 = scmp.eq.s32.totalorder %s16, 0
    %p43 = por %p41, %p42
    %s45 = sadd.s32 %s44, 1
    %p48 = scmp.eq.s32.totalorder %s10, 1
    %p49 = scmp.ne.s32.totalorder %s44, %s46
    %p50 = scmp.eq.s32.totalorder %s10, 0
    %p51 = por %p49, %p50
    %p52 = scmp.ne.s32.totalorder %s44, %s46
    %p53 = scmp.eq.s32.totalorder %s15, 1
    %p54 = por %p52, %p53
    %p55 = scmp.ne.s32.totalorder %s46, %s47
    %p56 = scmp.eq.s32.totalorder %s15, 0
    %p57 = por %p55, %p56
    %p58 = scmp.ne.s32.totalorder %s46, %s47
    %p59 = scmp.eq.s32.totalorder %s16, 1
    %p60 = por %p58, %p59
    %p62 = scmp.ne.s32.totalorder %s47, %s61
    %p63 = scmp.eq.s32.totalorder %s16, 0
    %p64 = por %p62, %p63
    %s66 = sadd.s32 %s65, 1
    %p69 = scmp.eq.s32.totalorder %s10, 1
    %p70 = scmp.ne.s32.totalorder %s65, %s67
    %p71 = scmp.eq.s32.totalorder %s10, 0
    %p72 = por %p70, %p71
    %p73 = scmp.ne.s32.totalorder %s65, %s67
    %p74 = scmp.eq.s32.totalorder %s15, 1
    %p75 = por %p73, %p74
    %p76 = scmp.ne.s32.totalorder %s67, %s68
    %p77 = scmp.eq.s32.totalorder %s15, 0
    %p78 = por %p76, %p77
    %p79 = scmp.ne.s32.totalorder %s67, %s68
    %p80 = scmp.eq.s32.totalorder %s16, 1
    %p81 = por %p79, %p80
    %p83 = scmp.ne.s32.totalorder %s68, %s82
    %p84 = scmp.eq.s32.totalorder %s16, 0
    %p85 = por %p83, %p84
    %s87 = sadd.s32 %s86, 1
    %p90 = scmp.eq.s32.totalorder %s10, 1
    %p91 = scmp.ne.s32.totalorder %s86, %s88
    %p92 = scmp.eq.s32.totalorder %s10, 0
    %p93 = por %p91, %p92
    %p94 = scmp.ne.s32.totalorder %s86, %s88
    %p95 = scmp.eq.s32.totalorder %s15, 1
    %p96 = por %p94, %p95
    %p97 = scmp.ne.s32.totalorder %s88, %s89
    %p98 = scmp.eq.s32.totalorder %s15, 0
    %p99 = por %p97, %p98
    %p100 = scmp.ne.s32.totalorder %s88, %s89
    %p101 = scmp.eq.s32.totalorder %s16, 1
    %p102 = por %p100, %p101
    %p104 = scmp.ne.s32.totalorder %s89, %s103
    %p105 = scmp.eq.s32.totalorder %s16, 0
    %p106 = por %p104, %p105
    %s107 = ssub.s32 %s10, %s17
    %p108 = scmp.eq.s32.totalorder %s107, 0
    %s110 = sadd.s32 %s109, 1
    %s111 = scalar_select %p108, %s109, %s110
    %p114 = pneg %p108
    %p115 = scmp.eq.s32.totalorder %s10, 1
    %p116 = por %p114, %p115
    %p117 = scmp.ne.s32.totalorder %s109, %s112
    %p118 = scmp.eq.s32.totalorder %s10, 0
    %p119 = por %p117, %p118
    %p120 = scmp.ne.s32.totalorder %s109, %s112
    %p121 = scmp.eq.s32.totalorder %s15, 1
    %p122 = por %p120, %p121
    %p123 = scmp.ne.s32.totalorder %s112, %s113
    %p124 = scmp.eq.s32.totalorder %s15, 0
    %p125 = por %p123, %p124
    %p126 = scmp.ne.s32.totalorder %s112, %s113
    %p127 = scmp.eq.s32.totalorder %s16, 1
    %p128 = por %p126, %p127
    %p130 = scmp.ne.s32.totalorder %s113, %s129
    %p131 = scmp.eq.s32.totalorder %s16, 0
    %p132 = por %p130, %p131
    %p133 = scmp.le.s32.totalorder 1, %s10
    %p134 = scmp.lt.s32.totalorder %s10, 3
    %p135 = pnand %p133, %p134
    %p136 = pneg %p135
    // Predicated region
    $region9: #{convnext2d_forward.3} parent=5 // pred_check
      _
    $region10: #{convnext2d_forward.3} parent=5 // pred_check_branch
      %138 = sbr.rel (%p135) target = $region12
    $region11: #{convnext2d_forward.3} parent=5 // pred_region
      %s139 = ssub.s32 %s10, 1
      // Predicated region
      $region13: #{convnext2d_forward.3} parent=11 // pred_check
        %p140 = pneg %p57
      $region14: #{convnext2d_forward.3} parent=11 // pred_check_branch
        %142 = sbr.rel (%p140) target = $region16
      $region15: #{convnext2d_forward.3} parent=11 // pred_region
        _
      $region16: #{convnext2d_forward.3} parent=11 // pred_fallthru
        _
      // Predicated region
      $region17: #{convnext2d_forward.3} parent=11 // pred_check
        %p143 = pneg %p78
      $region18: #{convnext2d_forward.3} parent=11 // pred_check_branch
        %145 = sbr.rel (%p143) target = $region20
      $region19: #{convnext2d_forward.3} parent=11 // pred_region
        _
      $region20: #{convnext2d_forward.3} parent=11 // pred_fallthru
        _
      // Predicated region
      $region21: #{convnext2d_forward.3} parent=11 // pred_check
        %p146 = pneg %p99
      $region22: #{convnext2d_forward.3} parent=11 // pred_check_branch
        %148 = sbr.rel (%p146) target = $region24
      $region23: #{convnext2d_forward.3} parent=11 // pred_region
        _
      $region24: #{convnext2d_forward.3} parent=11 // pred_fallthru
        _
    $region12: #{convnext2d_forward.3} parent=5 // pred_fallthru
      _
    %p149 = scmp.lt.s32.totalorder %s10, 2
    // Predicated region
    $region25: #{convnext2d_forward.3} parent=5 // pred_check
      %p150 = pneg %p149
    $region26: #{convnext2d_forward.3} parent=5 // pred_check_branch
      %152 = sbr.rel (%p150) target = $region28
    $region27: #{convnext2d_forward.3} parent=5 // pred_region
      // Predicated region
      $region29: #{convnext2d_forward.3} parent=27 // pred_check
        %p153 = pneg %p30
      $region30: #{convnext2d_forward.3} parent=27 // pred_check_branch
        %155 = sbr.rel (%p153) target = $region32
      $region31: #{convnext2d_forward.3} parent=27 // pred_region
        %s156 = smul.u32 4, %s10
        %p157 = scmp.lt.s32.totalorder %s156, 7
        %s158 = scalar_select %p157, %s156, 7
        %s159 = smul.addr %s158, 8
        %s160 = scalar_lea.vmem %s0, %s159
        %s161 = smul.u32 4, %s10
      $region32: #{convnext2d_forward.3} parent=27 // pred_fallthru
        _
    $region28: #{convnext2d_forward.3} parent=5 // pred_fallthru
      _
    %p162 = scmp.le.s32.totalorder 1, %s10
    %p163 = scmp.lt.s32.totalorder %s10, 3
    %p164 = pnand %p162, %p163
    %p165 = pneg %p164
    // Predicated region
    $region33: #{convnext2d_forward.3} parent=5 // pred_check
      _
    $region34: #{convnext2d_forward.3} parent=5 // pred_check_branch
      %167 = sbr.rel (%p164) target = $region36
    $region35: #{convnext2d_forward.3} parent=5 // pred_region
      %s168 = ssub.s32 %s10, 1
      %s169 = smul.u32 4, %s15
      %p170 = scmp.lt.s32.totalorder %s169, 7
      %s171 = scalar_select %p170, %s169, 7
      %s172 = smul.addr %s171, 8
      %s173 = scalar_lea.vmem %s0, %s172
      %p174 = pneg %p36
      %p175 = pneg %p33
      %p176 = pneg %p57
      %p177 = pneg %p54
      %p178 = pneg %p78
      %p179 = pneg %p75
      %p180 = pneg %p99
      %p181 = pneg %p96
      %p182 = pneg %p125
      %p183 = pneg %p122
      %s184 = smul.u32 4, %s15
      %p185 = scmp.lt.s32.totalorder %s184, 7
      %s186 = scalar_select %p185, %s184, 7
      %s187 = smul.addr %s186, 4
      %s188 = scalar_lea.vmem %s4, %s187
      %s189 = smul.u32 4, %s15
      %p190 = scmp.lt.s32.totalorder %s189, 7
      %s191 = scalar_select %p190, %s189, 7
      %s192 = smul.addr %s191, 8
      %s193 = scalar_lea.vmem %s0, %s192
      %s194 = smul.u32 4, %s15
      %s195 = smul.u32 4, %s15
      %p196 = scmp.lt.s32.totalorder %s195, 7
      %s197 = scalar_select %p196, %s195, 7
      %s198 = smul.addr %s197, 4
      %s199 = scalar_lea.vmem %s4, %s198
      %s200 = smul.u32 4, %s15
      %v202 = vld [vmem:[%s193] sm:$0xff]
      %v203 = vld [vmem:[%s193 + $0x8] sm:$0xff]
      %v204 = vld [vmem:[%s193 + $0x10] sm:$0xff]
      %v205 = vld [vmem:[%s193 + $0x18] sm:$0xff]
      %v206 = vpack.c.bf16 %v203, %v202
      %v207 = vpack.c.bf16 %v205, %v204
      %v208 = vld [vmem:[%s1] sm:$0xf]
      %v209 = vld [vmem:[%s1 + $0x4] sm:$0xf]
      %v210 = vld [vmem:[%s1 + $0x8] sm:$0xf]
      %v211 = vld [vmem:[%s1 + $0xc] sm:$0xf]
      %v212 = vld [vmem:[%s1 + $0x10] sm:$0xf]
      %v213 = vld [vmem:[%s1 + $0x14] sm:$0xf]
      %v214 = vld [vmem:[%s1 + $0x18] sm:$0xf]
      %v215 = vld [vmem:[%s1 + $0x1c] sm:$0xf]
      %v216 = vld [vmem:[%s1 + $0x20] sm:$0xf]
      %v217 = vld [vmem:[%s1 + $0x24] sm:$0xf]
      %v218 = vld [vmem:[%s1 + $0x28] sm:$0xf]
      %v219 = vld [vmem:[%s1 + $0x2c] sm:$0xf]
      %v220 = vld [vmem:[%s1 + $0x30] sm:$0xf]
      %v221 = vld [vmem:[%s1 + $0x34] sm:$0xf]
      %v222 = vld [vmem:[%s1 + $0x38] sm:$0xf]
      %v223 = vld [vmem:[%s1 + $0x3c] sm:$0xf]
      %v224 = vld [vmem:[%s2] sm:$0x1]
      %v226 = vlaneseq
      %v227 = vshrl.u32 %v226, 7
      %v228 = vsub.s32 0, %v227
      %v229 = vrot.slane %v224, %v228
      %v247 = vunpack.c.l.b16 %v208
      %v248 = vunpack.c.l.b16 %v209
      %v249 = vunpack.c.l.b16 %v210
      %v250 = vunpack.c.l.b16 %v211
      %v251 = vunpack.c.l.b16 %v212
      %v252 = vunpack.c.l.b16 %v213
      %v253 = vunpack.c.l.b16 %v214
      %v254 = vunpack.c.l.b16 %v215
      %v255 = vunpack.c.l.b16 %v216
      %v256 = vunpack.c.l.b16 %v217
      %v257 = vunpack.c.l.b16 %v218
      %v258 = vunpack.c.l.b16 %v219
      %v259 = vunpack.c.l.b16 %v220
      %v260 = vunpack.c.l.b16 %v221
      %v261 = vunpack.c.l.b16 %v222
      %v262 = vunpack.c.l.b16 %v223
      %v263 = vpack.c.b16 %v248, %v247
      %v264 = vpack.c.b16 %v250, %v249
      %v265 = vpack.c.b16 %v252, %v251
      %v266 = vpack.c.b16 %v254, %v253
      %v267 = vpack.c.b16 %v256, %v255
      %v268 = vpack.c.b16 %v258, %v257
      %v269 = vpack.c.b16 %v260, %v259
      %v270 = vpack.c.b16 %v262, %v261
      %279 = vmatprep.subr.bf16.mxu0 0
      %280 = vmatpush1.bf16.msra.mxu0 %v270
      %281 = vmatprep.subr.bf16.mxu0 0
      %282 = vmatpush1.bf16.msra.mxu0 %v269
      %283 = vmatprep.subr.bf16.mxu0 0
      %284 = vmatpush1.bf16.msra.mxu0 %v268
      %285 = vmatprep.subr.bf16.mxu0 0
      %286 = vmatpush1.bf16.msra.mxu0 %v267
      %287 = vmatprep.subr.bf16.mxu0 0
      %288 = vmatpush1.bf16.msra.mxu0 %v266
      %289 = vmatprep.subr.bf16.mxu0 0
      %290 = vmatpush1.bf16.msra.mxu0 %v265
      %291 = vmatprep.subr.bf16.mxu0 0
      %292 = vmatpush1.bf16.msra.mxu0 %v264
      %293 = vmatprep.subr.bf16.mxu0 0
      %294 = vmatpush1.bf16.msra.mxu0 %v263
      %295 = vmatprep.subr.bf16.mxu0 0
      %296 = vmatpush2.bf16.msra.mxu0 0
      %297 = vmatprep.subr.bf16.mxu0 0
      %298 = vmatpush2.bf16.msra.mxu0 0
      %299 = vmatprep.subr.bf16.mxu0 0
      %300 = vmatpush2.bf16.msra.mxu0 0
      %301 = vmatprep.subr.bf16.mxu0 0
      %302 = vmatpush2.bf16.msra.mxu0 0
      %303 = vmatprep.subr.bf16.mxu0 0
      %304 = vmatpush2.bf16.msra.mxu0 0
      %305 = vmatprep.subr.bf16.mxu0 0
      %306 = vmatpush2.bf16.msra.mxu0 0
      %307 = vmatprep.subr.bf16.mxu0 0
      %308 = vmatpush2.bf16.msra.mxu0 0
      %309 = vmatprep.subr.bf16.mxu0 0
      %310 = vmatpush2.bf16.msra.mxu0 0
      %311 = vmatprep.mubr.bf16.mxu0 0
      %312 = vmatmul.mubr.bf16.gmra.mxu0 %v206
      %v313 = vpop.f32.mrf.mxu0
      %v314 = vadd.f32 %v229, %v313
      %v315 = vpop.f32.mrf.mxu0
      %v316 = vpop.f32.mrf.mxu0
      %v317 = vadd.f32 %v229, %v316
      %v318 = vpop.f32.mrf.mxu0
      %319 = vmatprep.mubr.bf16.mxu0 0
      %320 = vmatmul.mubr.bf16.gmra.mxu0 %v207
      %v321 = vpop.f32.mrf.mxu0
      %v322 = vadd.f32 %v229, %v321
      %v323 = vpop.f32.mrf.mxu0
      %v324 = vpop.f32.mrf.mxu0
      %v325 = vadd.f32 %v229, %v324
      %v326 = vpop.f32.mrf.mxu0
      %327 = vdwg.mxu0
      %v328 = vmul.f32 %v314, %v314
      %v329 = vmul.f32 %v317, %v317
      %v330 = vmul.f32 %v322, %v322
      %v331 = vmul.f32 %v325, %v325
      %332 = vadd.xlane.f32.xlu0 %v328
      %v333 = vpop.xlane.xlu0 %332
      %334 = vadd.xlane.f32.xlu0 %v329
      %v335 = vpop.xlane.xlu0 %334
      %336 = vadd.xlane.f32.xlu0 %v330
      %v337 = vpop.xlane.xlu0 %336
      %338 = vadd.xlane.f32.xlu0 %v331
      %v339 = vpop.xlane.xlu0 %338
      %v340 = vmul.f32 %v333, 0.03125
      %v341 = vmul.f32 %v335, 0.03125
      %v342 = vmul.f32 %v337, 0.03125
      %v343 = vmul.f32 %v339, 0.03125
      %v344 = vadd.f32 %v340, 1e-05
      %v345 = vadd.f32 %v341, 1e-05
      %v346 = vadd.f32 %v342, 1e-05
      %v347 = vadd.f32 %v343, 1e-05
      %v348 = vrsqrt.pop %v344
      %v349 = vrsqrt.pop %v345
      %v350 = vrsqrt.pop %v346
      %v351 = vrsqrt.pop %v347
      %v352 = vmul.f32 %v314, %v348
      %v353 = vmul.f32 %v317, %v349
      %v354 = vmul.f32 %v322, %v350
      %v355 = vmul.f32 %v325, %v351
      %v356 = vld [vmem:[%s3] sm:$0x1]
      %v358 = vlaneseq
      %v359 = vshrl.u32 %v358, 7
      %v360 = vsub.s32 0, %v359
      %v361 = vrot.slane %v356, %v360
      %v363 = vmul.f32 %v352, %v361
      %v364 = vmul.f32 %v353, %v361
      %v365 = vmul.f32 %v354, %v361
      %v366 = vmul.f32 %v355, %v361
      %v367 = vpack.c.bf16 %v364, %v363
      %v368 = vpack.c.bf16 %v366, %v365
      %v371 = vunpack.c.l.b16 %v367
      %v372 = vunpack.c.h.b16 %v367
      %v373 = vunpack.c.l.b16 %v368
      %v374 = vunpack.c.h.b16 %v368
      %v375 = vpack.c.b16 %v371, %v371
      %v376 = vpack.c.b16 %v372, %v372
      %v377 = vpack.c.b16 %v373, %v373
      %v378 = vpack.c.b16 %v374, %v374
      %383 = vst [vmem:[%s199] sm:$0xf] %v375
      %384 = vst [vmem:[%s199 + $0x4] sm:$0xf] %v376
      %385 = vst [vmem:[%s199 + $0x8] sm:$0xf] %v377
      %386 = vst [vmem:[%s199 + $0xc] sm:$0xf] %v378
      %s387 = smul.u32 4, %s15
      %p388 = scmp.lt.s32.totalorder %s387, 7
      %s389 = scalar_select %p388, %s387, 7
      %s390 = smul.addr %s389, 4
      %s391 = scalar_lea.vmem %s4, %s390
      // Predicated region
      $region37: #{convnext2d_forward.3} parent=35 // pred_check
        %p392 = pneg %p122
      $region38: #{convnext2d_forward.3} parent=35 // pred_check_branch
        %394 = sbr.rel (%p392) target = $region40
      $region39: #{convnext2d_forward.3} parent=35 // pred_region
        %s395 = smul.u32 4, %s15
      $region40: #{convnext2d_forward.3} parent=35 // pred_fallthru
        _
    $region36: #{convnext2d_forward.3} parent=5 // pred_fallthru
      _
    %p396 = scmp.le.s32.totalorder 2, %s10
    // Predicated region
    $region41: #{convnext2d_forward.3} parent=5 // pred_check
      %p397 = pneg %p396
    $region42: #{convnext2d_forward.3} parent=5 // pred_check_branch
      %399 = sbr.rel (%p397) target = $region44
    $region43: #{convnext2d_forward.3} parent=5 // pred_region
      %s400 = ssub.s32 %s10, 2
      // Predicated region
      $region45: #{convnext2d_forward.3} parent=43 // pred_check
        %p401 = pneg %p128
      $region46: #{convnext2d_forward.3} parent=43 // pred_check_branch
        %403 = sbr.rel (%p401) target = $region48
      $region47: #{convnext2d_forward.3} parent=43 // pred_region
        %s404 = smul.u32 4, %s16
        %p405 = scmp.lt.s32.totalorder %s404, 7
        %s406 = scalar_select %p405, %s404, 7
        %s407 = smul.addr %s406, 4
        %s408 = scalar_lea.vmem %s4, %s407
      $region48: #{convnext2d_forward.3} parent=43 // pred_fallthru
        _
    $region44: #{convnext2d_forward.3} parent=5 // pred_fallthru
      _
  $region6: #{convnext2d_forward.3} parent=0 // loop_footer
    %s14 = sadd.s32 1, %s10
  $region7: #{convnext2d_forward.3} parent=0 // loop_footer_branch
    %9 = sbr.rel target = $region3
  $region8: #{convnext2d_forward.3} parent=0 // loop_exit
    _

// kernel: convnext2d_forward.5
$region0: #{convnext2d_forward.5}
  #allocation0 [shape = 'u32[]', space=smem, size = 0x4, offset = 0x4, fixed_abs, tag = 'smem constant byte address 0x4 - core index']
  #allocation1 [shape = 'u32[144,128]{1,0:T(1,128)}', space=vmem, size = 0x12000, scoped, tag = 'internal scratch']
  #allocation2 [shape = 'f32[1,48,128]{2,1,0:T(8,128)}', space=vmem, size = 0x6000, scoped, tag = 'scratch operand']
  %s0 = inlined_call_operand.vmem [shape: bf16[32,128], index: 0, kind: input, shape index: {}]
  %s1 = inlined_call_operand.vmem [shape: f32[2,9,128], index: 1, kind: input, shape index: {}]
  %s2 = inlined_call_operand.vmem [shape: f32[2,1,128], index: 2, kind: input, shape index: {}]
  %s3 = inlined_call_operand.vmem [shape: f32[2,1,128], index: 3, kind: input, shape index: {}]
  %s4 = inlined_call_operand.vmem [shape: bf16[2,128,128], index: 4, kind: input, shape index: {}]
  %s5 = inlined_call_operand.vmem [shape: f32[2,1,128], index: 5, kind: input, shape index: {}]
  %s6 = inlined_call_operand.vmem [shape: bf16[2,128,128], index: 6, kind: input, shape index: {}]
  %s7 = inlined_call_operand.vmem [shape: f32[2,1,128], index: 7, kind: input, shape index: {}]
  %s8 = inlined_call_operand.vmem [shape: f32[1,128], index: 8, kind: input, shape index: {}]
  %s9 = inlined_call_operand.vmem [shape: f32[32,128], index: 9, kind: output, shape index: {}]
  %s10 = sld [smem:[#allocation0]]
  $region69: #{convnext2d_forward.5} parent=0
    _
  %s12 = ssub.s32 1, %s10
  %s13 = scalar_select 0, %s12, %s10
  loop: start=0, step=1, limit=4
  $region2: #{convnext2d_forward.5} parent=0 // loop_pre_header
    _
  $region3: #{convnext2d_forward.5} parent=0 // loop_header
    %s15 = sphi 0, %s19
    %p16 = scmp.ge.s32.totalorder %s15, 4
    %s25 = sphi 0, %s27
    %s28 = sphi 0, %s25
    %s29 = sphi 0, %s28
    %s45 = sphi 0, %s29
    %s49 = sphi 0, %s49
    %s51 = sphi 0, %s49
    %s52 = sphi 0, %s51
    %s66 = sphi 0, %s52
    %s70 = sphi 0, %s70
    %s72 = sphi 0, %s70
    %s73 = sphi 0, %s72
    %s87 = sphi 0, %s73
    %s91 = sphi 0, %s91
    %s93 = sphi 0, %s91
    %s94 = sphi 0, %s93
    %s108 = sphi 0, %s94
    %s112 = sphi 0, %s112
    %s114 = sphi 0, %s112
    %s115 = sphi 0, %s114
    %s129 = sphi 0, %s115
    %s133 = sphi 0, %s133
    %s135 = sphi 0, %s133
    %s136 = sphi 0, %s135
    %s150 = sphi 0, %s136
    %s154 = sphi 0, %s154
    %s156 = sphi 0, %s154
    %s157 = sphi 0, %s156
    %s171 = sphi 0, %s157
    %s175 = sphi 0, %s175
    %s177 = sphi 0, %s175
    %s178 = sphi 0, %s177
    %s192 = sphi 0, %s178
    %s196 = sphi 0, %s196
    %s198 = sphi 0, %s196
    %s199 = sphi 0, %s198
    %s213 = sphi 0, %s199
    %s219 = sphi 0, %s221
    %s222 = sphi 0, %s219
    %s223 = sphi 0, %s222
    %s239 = sphi 0, %s223
  $region4: #{convnext2d_forward.5} parent=0 // loop_header_branch
    %18 = sbr.rel (%p16) target = $region8
  $region5: #{convnext2d_forward.5} parent=0 // loop_body
    %s20 = ssub.s32 %s15, 1
    %s21 = ssub.s32 %s15, 2
    %s22 = sadd.s32 %s15, 1
    %s23 = ssub.s32 %s15, %s22
    %p24 = scmp.eq.s32.totalorder %s23, 0
    %s26 = sadd.s32 %s25, 1
    %s27 = scalar_select %p24, %s25, %s26
    %p30 = pneg %p24
    %p31 = scmp.eq.s32.totalorder %s15, 1
    %p32 = por %p30, %p31
    %p33 = scmp.ne.s32.totalorder %s25, %s28
    %p34 = scmp.eq.s32.totalorder %s15, 0
    %p35 = por %p33, %p34
    %p36 = scmp.ne.s32.totalorder %s25, %s28
    %p37 = scmp.eq.s32.totalorder %s20, 1
    %p38 = por %p36, %p37
    %p39 = scmp.ne.s32.totalorder %s28, %s29
    %p40 = scmp.eq.s32.totalorder %s20, 0
    %p41 = por %p39, %p40
    %p42 = scmp.ne.s32.totalorder %s28, %s29
    %p43 = scmp.eq.s32.totalorder %s21, 1
    %p44 = por %p42, %p43
    %p46 = scmp.ne.s32.totalorder %s29, %s45
    %p47 = scmp.eq.s32.totalorder %s21, 0
    %p48 = por %p46, %p47
    %s50 = sadd.s32 %s49, 1
    %p53 = scmp.eq.s32.totalorder %s15, 1
    %p54 = scmp.ne.s32.totalorder %s49, %s51
    %p55 = scmp.eq.s32.totalorder %s15, 0
    %p56 = por %p54, %p55
    %p57 = scmp.ne.s32.totalorder %s49, %s51
    %p58 = scmp.eq.s32.totalorder %s20, 1
    %p59 = por %p57, %p58
    %p60 = scmp.ne.s32.totalorder %s51, %s52
    %p61 = scmp.eq.s32.totalorder %s20, 0
    %p62 = por %p60, %p61
    %p63 = scmp.ne.s32.totalorder %s51, %s52
    %p64 = scmp.eq.s32.totalorder %s21, 1
    %p65 = por %p63, %p64
    %p67 = scmp.ne.s32.totalorder %s52, %s66
    %p68 = scmp.eq.s32.totalorder %s21, 0
    %p69 = por %p67, %p68
    %s71 = sadd.s32 %s70, 1
    %p74 = scmp.eq.s32.totalorder %s15, 1
    %p75 = scmp.ne.s32.totalorder %s70, %s72
    %p76 = scmp.eq.s32.totalorder %s15, 0
    %p77 = por %p75, %p76
    %p78 = scmp.ne.s32.totalorder %s70, %s72
    %p79 = scmp.eq.s32.totalorder %s20, 1
    %p80 = por %p78, %p79
    %p81 = scmp.ne.s32.totalorder %s72, %s73
    %p82 = scmp.eq.s32.totalorder %s20, 0
    %p83 = por %p81, %p82
    %p84 = scmp.ne.s32.totalorder %s72, %s73
    %p85 = scmp.eq.s32.totalorder %s21, 1
    %p86 = por %p84, %p85
    %p88 = scmp.ne.s32.totalorder %s73, %s87
    %p89 = scmp.eq.s32.totalorder %s21, 0
    %p90 = por %p88, %p89
    %s92 = sadd.s32 %s91, 1
    %p95 = scmp.eq.s32.totalorder %s15, 1
    %p96 = scmp.ne.s32.totalorder %s91, %s93
    %p97 = scmp.eq.s32.totalorder %s15, 0
    %p98 = por %p96, %p97
    %p99 = scmp.ne.s32.totalorder %s91, %s93
    %p100 = scmp.eq.s32.totalorder %s20, 1
    %p101 = por %p99, %p100
    %p102 = scmp.ne.s32.totalorder %s93, %s94
    %p103 = scmp.eq.s32.totalorder %s20, 0
    %p104 = por %p102, %p103
    %p105 = scmp.ne.s32.totalorder %s93, %s94
    %p106 = scmp.eq.s32.totalorder %s21, 1
    %p107 = por %p105, %p106
    %p109 = scmp.ne.s32.totalorder %s94, %s108
    %p110 = scmp.eq.s32.totalorder %s21, 0
    %p111 = por %p109, %p110
    %s113 = sadd.s32 %s112, 1
    %p116 = scmp.eq.s32.totalorder %s15, 1
    %p117 = scmp.ne.s32.totalorder %s112, %s114
    %p118 = scmp.eq.s32.totalorder %s15, 0
    %p119 = por %p117, %p118
    %p120 = scmp.ne.s32.totalorder %s112, %s114
    %p121 = scmp.eq.s32.totalorder %s20, 1
    %p122 = por %p120, %p121
    %p123 = scmp.ne.s32.totalorder %s114, %s115
    %p124 = scmp.eq.s32.totalorder %s20, 0
    %p125 = por %p123, %p124
    %p126 = scmp.ne.s32.totalorder %s114, %s115
    %p127 = scmp.eq.s32.totalorder %s21, 1
    %p128 = por %p126, %p127
    %p130 = scmp.ne.s32.totalorder %s115, %s129
    %p131 = scmp.eq.s32.totalorder %s21, 0
    %p132 = por %p130, %p131
    %s134 = sadd.s32 %s133, 1
    %p137 = scmp.eq.s32.totalorder %s15, 1
    %p138 = scmp.ne.s32.totalorder %s133, %s135
    %p139 = scmp.eq.s32.totalorder %s15, 0
    %p140 = por %p138, %p139
    %p141 = scmp.ne.s32.totalorder %s133, %s135
    %p142 = scmp.eq.s32.totalorder %s20, 1
    %p143 = por %p141, %p142
    %p144 = scmp.ne.s32.totalorder %s135, %s136
    %p145 = scmp.eq.s32.totalorder %s20, 0
    %p146 = por %p144, %p145
    %p147 = scmp.ne.s32.totalorder %s135, %s136
    %p148 = scmp.eq.s32.totalorder %s21, 1
    %p149 = por %p147, %p148
    %p151 = scmp.ne.s32.totalorder %s136, %s150
    %p152 = scmp.eq.s32.totalorder %s21, 0
    %p153 = por %p151, %p152
    %s155 = sadd.s32 %s154, 1
    %p158 = scmp.eq.s32.totalorder %s15, 1
    %p159 = scmp.ne.s32.totalorder %s154, %s156
    %p160 = scmp.eq.s32.totalorder %s15, 0
    %p161 = por %p159, %p160
    %p162 = scmp.ne.s32.totalorder %s154, %s156
    %p163 = scmp.eq.s32.totalorder %s20, 1
    %p164 = por %p162, %p163
    %p165 = scmp.ne.s32.totalorder %s156, %s157
    %p166 = scmp.eq.s32.totalorder %s20, 0
    %p167 = por %p165, %p166
    %p168 = scmp.ne.s32.totalorder %s156, %s157
    %p169 = scmp.eq.s32.totalorder %s21, 1
    %p170 = por %p168, %p169
    %p172 = scmp.ne.s32.totalorder %s157, %s171
    %p173 = scmp.eq.s32.totalorder %s21, 0
    %p174 = por %p172, %p173
    %s176 = sadd.s32 %s175, 1
    %p179 = scmp.eq.s32.totalorder %s15, 1
    %p180 = scmp.ne.s32.totalorder %s175, %s177
    %p181 = scmp.eq.s32.totalorder %s15, 0
    %p182 = por %p180, %p181
    %p183 = scmp.ne.s32.totalorder %s175, %s177
    %p184 = scmp.eq.s32.totalorder %s20, 1
    %p185 = por %p183, %p184
    %p186 = scmp.ne.s32.totalorder %s177, %s178
    %p187 = scmp.eq.s32.totalorder %s20, 0
    %p188 = por %p186, %p187
    %p189 = scmp.ne.s32.totalorder %s177, %s178
    %p190 = scmp.eq.s32.totalorder %s21, 1
    %p191 = por %p189, %p190
    %p193 = scmp.ne.s32.totalorder %s178, %s192
    %p194 = scmp.eq.s32.totalorder %s21, 0
    %p195 = por %p193, %p194
    %s197 = sadd.s32 %s196, 1
    %p200 = scmp.eq.s32.totalorder %s15, 1
    %p201 = scmp.ne.s32.totalorder %s196, %s198
    %p202 = scmp.eq.s32.totalorder %s15, 0
    %p203 = por %p201, %p202
    %p204 = scmp.ne.s32.totalorder %s196, %s198
    %p205 = scmp.eq.s32.totalorder %s20, 1
    %p206 = por %p204, %p205
    %p207 = scmp.ne.s32.totalorder %s198, %s199
    %p208 = scmp.eq.s32.totalorder %s20, 0
    %p209 = por %p207, %p208
    %p210 = scmp.ne.s32.totalorder %s198, %s199
    %p211 = scmp.eq.s32.totalorder %s21, 1
    %p212 = por %p210, %p211
    %p214 = scmp.ne.s32.totalorder %s199, %s213
    %p215 = scmp.eq.s32.totalorder %s21, 0
    %p216 = por %p214, %p215
    %s217 = ssub.s32 %s15, %s22
    %p218 = scmp.eq.s32.totalorder %s217, 0
    %s220 = sadd.s32 %s219, 1
    %s221 = scalar_select %p218, %s219, %s220
    %p224 = pneg %p218
    %p225 = scmp.eq.s32.totalorder %s15, 1
    %p226 = por %p224, %p225
    %p227 = scmp.ne.s32.totalorder %s219, %s222
    %p228 = scmp.eq.s32.totalorder %s15, 0
    %p229 = por %p227, %p228
    %p230 = scmp.ne.s32.totalorder %s219, %s222
    %p231 = scmp.eq.s32.totalorder %s20, 1
    %p232 = por %p230, %p231
    %p233 = scmp.ne.s32.totalorder %s222, %s223
    %p234 = scmp.eq.s32.totalorder %s20, 0
    %p235 = por %p233, %p234
    %p236 = scmp.ne.s32.totalorder %s222, %s223
    %p237 = scmp.eq.s32.totalorder %s21, 1
    %p238 = por %p236, %p237
    %p240 = scmp.ne.s32.totalorder %s223, %s239
    %p241 = scmp.eq.s32.totalorder %s21, 0
    %p242 = por %p240, %p241
    %p243 = scmp.le.s32.totalorder 1, %s15
    %p244 = scmp.lt.s32.totalorder %s15, 3
    %p245 = pnand %p243, %p244
    %p246 = pneg %p245
    // Predicated region
    $region9: #{convnext2d_forward.5} parent=5 // pred_check
      _
    $region10: #{convnext2d_forward.5} parent=5 // pred_check_branch
      %248 = sbr.rel (%p245) target = $region12
    $region11: #{convnext2d_forward.5} parent=5 // pred_region
      %s249 = ssub.s32 %s15, 1
      // Predicated region
      $region13: #{convnext2d_forward.5} parent=11 // pred_check
        %p250 = pneg %p62
      $region14: #{convnext2d_forward.5} parent=11 // pred_check_branch
        %252 = sbr.rel (%p250) target = $region16
      $region15: #{convnext2d_forward.5} parent=11 // pred_region
        _
      $region16: #{convnext2d_forward.5} parent=11 // pred_fallthru
        _
      // Predicated region
      $region17: #{convnext2d_forward.5} parent=11 // pred_check
        %p253 = pneg %p83
      $region18: #{convnext2d_forward.5} parent=11 // pred_check_branch
        %255 = sbr.rel (%p253) target = $region20
      $region19: #{convnext2d_forward.5} parent=11 // pred_region
        _
      $region20: #{convnext2d_forward.5} parent=11 // pred_fallthru
        _
      // Predicated region
      $region21: #{convnext2d_forward.5} parent=11 // pred_check
        %p256 = pneg %p104
      $region22: #{convnext2d_forward.5} parent=11 // pred_check_branch
        %258 = sbr.rel (%p256) target = $region24
      $region23: #{convnext2d_forward.5} parent=11 // pred_region
        _
      $region24: #{convnext2d_forward.5} parent=11 // pred_fallthru
        _
      // Predicated region
      $region25: #{convnext2d_forward.5} parent=11 // pred_check
        %p259 = pneg %p125
      $region26: #{convnext2d_forward.5} parent=11 // pred_check_branch
        %261 = sbr.rel (%p259) target = $region28
      $region27: #{convnext2d_forward.5} parent=11 // pred_region
        _
      $region28: #{convnext2d_forward.5} parent=11 // pred_fallthru
        _
      // Predicated region
      $region29: #{convnext2d_forward.5} parent=11 // pred_check
        %p262 = pneg %p146
      $region30: #{convnext2d_forward.5} parent=11 // pred_check_branch
        %264 = sbr.rel (%p262) target = $region32
      $region31: #{convnext2d_forward.5} parent=11 // pred_region
        _
      $region32: #{convnext2d_forward.5} parent=11 // pred_fallthru
        _
      // Predicated region
      $region33: #{convnext2d_forward.5} parent=11 // pred_check
        %p265 = pneg %p167
      $region34: #{convnext2d_forward.5} parent=11 // pred_check_branch
        %267 = sbr.rel (%p265) target = $region36
      $region35: #{convnext2d_forward.5} parent=11 // pred_region
        _
      $region36: #{convnext2d_forward.5} parent=11 // pred_fallthru
        _
      // Predicated region
      $region37: #{convnext2d_forward.5} parent=11 // pred_check
        %p268 = pneg %p188
      $region38: #{convnext2d_forward.5} parent=11 // pred_check_branch
        %270 = sbr.rel (%p268) target = $region40
      $region39: #{convnext2d_forward.5} parent=11 // pred_region
        _
      $region40: #{convnext2d_forward.5} parent=11 // pred_fallthru
        _
      // Predicated region
      $region41: #{convnext2d_forward.5} parent=11 // pred_check
        %p271 = pneg %p209
      $region42: #{convnext2d_forward.5} parent=11 // pred_check_branch
        %273 = sbr.rel (%p271) target = $region44
      $region43: #{convnext2d_forward.5} parent=11 // pred_region
        _
      $region44: #{convnext2d_forward.5} parent=11 // pred_fallthru
        _
    $region12: #{convnext2d_forward.5} parent=5 // pred_fallthru
      _
    %p274 = scmp.lt.s32.totalorder %s15, 2
    // Predicated region
    $region45: #{convnext2d_forward.5} parent=5 // pred_check
      %p275 = pneg %p274
    $region46: #{convnext2d_forward.5} parent=5 // pred_check_branch
      %277 = sbr.rel (%p275) target = $region48
    $region47: #{convnext2d_forward.5} parent=5 // pred_region
      // Predicated region
      $region49: #{convnext2d_forward.5} parent=47 // pred_check
        %p278 = pneg %p35
      $region50: #{convnext2d_forward.5} parent=47 // pred_check_branch
        %280 = sbr.rel (%p278) target = $region52
      $region51: #{convnext2d_forward.5} parent=47 // pred_region
        %s281 = smul.u32 2, %s15
        %p282 = scmp.lt.s32.totalorder %s281, 3
        %s283 = scalar_select %p282, %s281, 3
        %s284 = smul.addr %s283, 4
        %s285 = scalar_lea.vmem %s0, %s284
        %s286 = smul.u32 2, %s15
      $region52: #{convnext2d_forward.5} parent=47 // pred_fallthru
        _
    $region48: #{convnext2d_forward.5} parent=5 // pred_fallthru
      _
    %p287 = scmp.le.s32.totalorder 1, %s15
    %p288 = scmp.lt.s32.totalorder %s15, 3
    %p289 = pnand %p287, %p288
    %p290 = pneg %p289
    // Predicated region
    $region53: #{convnext2d_forward.5} parent=5 // pred_check
      _
    $region54: #{convnext2d_forward.5} parent=5 // pred_check_branch
      %292 = sbr.rel (%p289) target = $region56
    $region55: #{convnext2d_forward.5} parent=5 // pred_region
      %s293 = ssub.s32 %s15, 1
      %s294 = smul.u32 2, %s20
      %p295 = scmp.lt.s32.totalorder %s294, 3
      %s296 = scalar_select %p295, %s294, 3
      %s297 = smul.addr %s296, 4
      %s298 = scalar_lea.vmem %s0, %s297
      %p299 = pneg %p41
      %p300 = pneg %p38
      %p301 = pneg %p62
      %p302 = pneg %p59
      %p303 = pneg %p83
      %p304 = pneg %p80
      %p305 = pneg %p104
      %p306 = pneg %p101
      %p307 = pneg %p125
      %p308 = pneg %p122
      %p309 = pneg %p146
      %p310 = pneg %p143
      %p311 = pneg %p167
      %p312 = pneg %p164
      %p313 = pneg %p188
      %p314 = pneg %p185
      %p315 = pneg %p209
      %p316 = pneg %p206
      %p317 = pneg %p235
      %p318 = pneg %p232
      %s319 = smul.u32 2, %s20
      %p320 = scmp.lt.s32.totalorder %s319, 3
      %s321 = scalar_select %p320, %s319, 3
      %s322 = smul.addr %s321, 8
      %s323 = scalar_lea.vmem %s9, %s322
      %s324 = smul.u32 2, %s20
      %p325 = scmp.lt.s32.totalorder %s324, 3
      %s326 = scalar_select %p325, %s324, 3
      %s327 = smul.addr %s326, 4
      %s328 = scalar_lea.vmem %s0, %s327
      %s329 = smul.u32 2, %s20
      %s330 = smul.u32 2, %s20
      %p331 = scmp.lt.s32.totalorder %s330, 3
      %s332 = scalar_select %p331, %s330, 3
      %s333 = smul.addr %s332, 8
      %s334 = scalar_lea.vmem %s9, %s333
      %s335 = smul.u32 2, %s20
      %v337 = vld [vmem:[%s328] sm:$0xf]
      %v338 = vld [vmem:[%s328 + $0x4] sm:$0xf]
      %v339 = vunpack.c.l.bf16 %v337
      %v340 = vunpack.c.l.bf16 %v338
      %341 = vst [vmem:[#allocation2] sm:$0xff] 0.0
      %342 = vst [vmem:[#allocation2 + $0x8] sm:$0xff] 0.0
      %343 = vst [vmem:[#allocation2 + $0x20] sm:$0xff] 0.0
      %344 = vst [vmem:[#allocation2 + $0x28] sm:$0xff] 0.0
      %v345 = vlaneseq
      %v346 = vshrl.u32 %v345, 7
      %v347 = vadd.s32 %v346, 8
      %vm348 = vcmp.lt.s32.totalorder %v346, 0
      %v349 = vsub.s32 0, %v346
      %v350 = vsel %vm348, %v349, %v346
      %v351 = vshrl.u32 %v350, 3
      %v352 = vand.u32 %v350, 7
      %v353 = vsub.s32 0, %v352
      %v354 = vsel %vm348, %v353, %v352
      %vm355 = vcmp.lt.s32.totalorder %v347, 0
      %v356 = vsub.s32 0, %v347
      %v357 = vsel %vm355, %v356, %v347
      %v358 = vshrl.u32 %v357, 3
      %v359 = vand.u32 %v357, 7
      %v360 = vsub.s32 0, %v359
      %v361 = vsel %vm355, %v360, %v359
      %vm362 = vcmp.ne.s32.totalorder %v354, 0
      %vm363 = vcmp.ne.s32.totalorder %v361, 0
      %vm364 = vcmp.lt.s32.totalorder %v354, 0
      %vm365 = vcmp.lt.s32.totalorder %v361, 0
      %vm366 = vmand %vm364, %vm362
      %vm367 = vmand %vm365, %vm363
      %v368 = vadd.s32 %v354, 8
      %v369 = vadd.s32 %v361, 8
      %v370 = vsel %vm366, %v368, %v354
      %v371 = vsel %vm367, %v369, %v361
      %vm372 = vcmp.lt.s32.totalorder %v370, 2
      %vm373 = vcmp.lt.s32.totalorder %v371, 2
      %v374 = vsel %vm372, 1, 0
      %v375 = vsel %vm373, 1, 0
      %vm376 = vcmp.eq.s32.totalorder %v374, 1
      %vm377 = vcmp.eq.s32.totalorder %v375, 1
      %v378 = vsel %vm376, %v339, 0.0
      %v379 = vsel %vm377, %v340, 0.0
      %380 = vst [vmem:[#allocation2 + $0x10] sm:$0xff] %v378
      %381 = vst [vmem:[#allocation2 + $0x18] sm:$0xff] %v379
      %v382 = vld [vmem:[#allocation2 + $0x7] sm:$0xff]
      %v383 = vld [vmem:[#allocation2 + $0xf] sm:$0xff]
      %v384 = vld [vmem:[%s1] sm:$0x1]
      %v385 = vlaneseq
      %v386 = vshrl.u32 %v385, 7
      %v387 = vsub.s32 0, %v386
      %v388 = vrot.slane %v384, %v387
      %v389 = vmul.f32 %v382, %v388
      %v390 = vmul.f32 %v383, %v388
      %v391 = vadd.f32 %v389, 0.0
      %v392 = vadd.f32 %v390, 0.0
      %v393 = vld [vmem:[#allocation2 + $0x8] sm:$0xff]
      %v394 = vld [vmem:[#allocation2 + $0x10] sm:$0xff]
      %v395 = vld [vmem:[%s1 + $0x1] sm:$0x1]
      %v396 = vlaneseq
      %v397 = vshrl.u32 %v396, 7
      %v398 = vsub.s32 0, %v397
      %v399 = vrot.slane %v395, %v398
      %v400 = vmul.f32 %v393, %v399
      %v401 = vmul.f32 %v394, %v399
      %v402 = vadd.f32 %v391, %v400
      %v403 = vadd.f32 %v392, %v401
      %v404 = vld [vmem:[#allocation2 + $0x9] sm:$0xff]
      %v405 = vld [vmem:[#allocation2 + $0x11] sm:$0xff]
      %v406 = vld [vmem:[%s1 + $0x2] sm:$0x1]
      %v407 = vlaneseq
      %v408 = vshrl.u32 %v407, 7
      %v409 = vsub.s32 0, %v408
      %v410 = vrot.slane %v406, %v409
      %v411 = vmul.f32 %v404, %v410
      %v412 = vmul.f32 %v405, %v410
      %v413 = vadd.f32 %v402, %v411
      %v414 = vadd.f32 %v403, %v412
      %v415 = vld [vmem:[#allocation2 + $0x17] sm:$0xff]
      %v416 = vld [vmem:[%s1 + $0x3] sm:$0x1]
      %v417 = vlaneseq
      %v418 = vshrl.u32 %v417, 7
      %v419 = vsub.s32 0, %v418
      %v420 = vrot.slane %v416, %v419
      %v421 = vmul.f32 %v383, %v420
      %v422 = vmul.f32 %v415, %v420
      %v423 = vadd.f32 %v413, %v421
      %v424 = vadd.f32 %v414, %v422
      %v425 = vld [vmem:[#allocation2 + $0x18] sm:$0xff]
      %v426 = vld [vmem:[%s1 + $0x4] sm:$0x1]
      %v427 = vlaneseq
      %v428 = vshrl.u32 %v427, 7
      %v429 = vsub.s32 0, %v428
      %v430 = vrot.slane %v426, %v429
      %v431 = vmul.f32 %v394, %v430
      %v432 = vmul.f32 %v425, %v430
      %v433 = vadd.f32 %v423, %v431
      %v434 = vadd.f32 %v424, %v432
      %v435 = vld [vmem:[#allocation2 + $0x19] sm:$0xff]
      %v436 = vld [vmem:[%s1 + $0x5] sm:$0x1]
      %v437 = vlaneseq
      %v438 = vshrl.u32 %v437, 7
      %v439 = vsub.s32 0, %v438
      %v440 = vrot.slane %v436, %v439
      %v441 = vmul.f32 %v405, %v440
      %v442 = vmul.f32 %v435, %v440
      %v443 = vadd.f32 %v433, %v441
      %v444 = vadd.f32 %v434, %v442
      %v445 = vld [vmem:[#allocation2 + $0x1f] sm:$0xff]
      %v446 = vld [vmem:[%s1 + $0x6] sm:$0x1]
      %v447 = vlaneseq
      %v448 = vshrl.u32 %v447, 7
      %v449 = vsub.s32 0, %v448
      %v450 = vrot.slane %v446, %v449
      %v451 = vmul.f32 %v415, %v450
      %v452 = vmul.f32 %v445, %v450
      %v453 = vadd.f32 %v443, %v451
      %v454 = vadd.f32 %v444, %v452
      %v455 = vld [vmem:[#allocation2 + $0x20] sm:$0xff]
      %v456 = vld [vmem:[%s1 + $0x7] sm:$0x1]
      %v457 = vlaneseq
      %v458 = vshrl.u32 %v457, 7
      %v459 = vsub.s32 0, %v458
      %v460 = vrot.slane %v456, %v459
      %v461 = vmul.f32 %v425, %v460
      %v462 = vmul.f32 %v455, %v460
      %v463 = vadd.f32 %v453, %v461
      %v464 = vadd.f32 %v454, %v462
      %v465 = vld [vmem:[#allocation2 + $0x21] sm:$0xff]
      %v466 = vld [vmem:[%s1 + $0x8] sm:$0x1]
      %v467 = vlaneseq
      %v468 = vshrl.u32 %v467, 7
      %v469 = vsub.s32 0, %v468
      %v470 = vrot.slane %v466, %v469
      %v471 = vmul.f32 %v435, %v470
      %v472 = vmul.f32 %v465, %v470
      %v473 = vadd.f32 %v463, %v471
      %v474 = vadd.f32 %v464, %v472
      %v475 = vld [vmem:[%s2] sm:$0x1]
      %v477 = vlaneseq
      %v478 = vshrl.u32 %v477, 7
      %v479 = vsub.s32 0, %v478
      %v480 = vrot.slane %v475, %v479
      %v482 = vadd.f32 %v473, %v480
      %v483 = vadd.f32 %v474, %v480
      %v484 = vmul.f32 %v482, %v482
      %v485 = vmul.f32 %v483, %v483
      %486 = vadd.xlane.f32.xlu0 %v484
      %v487 = vpop.xlane.xlu0 %486
      %488 = vadd.xlane.f32.xlu0 %v485
      %v489 = vpop.xlane.xlu0 %488
      %v490 = vmul.f32 %v487, 0.015625
      %v491 = vmul.f32 %v489, 0.015625
      %v492 = vadd.f32 %v490, 1e-05
      %v493 = vadd.f32 %v491, 1e-05
      %v494 = vrsqrt.pop %v492
      %v495 = vrsqrt.pop %v493
      %v496 = vmul.f32 %v482, %v494
      %v497 = vmul.f32 %v483, %v495
      %v498 = vld [vmem:[%s3] sm:$0x1]
      %v500 = vlaneseq
      %v501 = vshrl.u32 %v500, 7
      %v502 = vsub.s32 0, %v501
      %v503 = vrot.slane %v498, %v502
      %v505 = vmul.f32 %v496, %v503
      %v506 = vmul.f32 %v497, %v503
      %v507 = vpack.c.bf16 %v506, %v505
      %v508 = vld [vmem:[%s4] sm:$0xf]
      %v509 = vld [vmem:[%s4 + $0x4] sm:$0xf]
      %v510 = vld [vmem:[%s4 + $0x8] sm:$0xf]
      %v511 = vld [vmem:[%s4 + $0xc] sm:$0xf]
      %v512 = vld [vmem:[%s4 + $0x10] sm:$0xf]
      %v513 = vld [vmem:[%s4 + $0x14] sm:$0xf]
      %v514 = vld [vmem:[%s4 + $0x18] sm:$0xf]
      %v515 = vld [vmem:[%s4 + $0x1c] sm:$0xf]
      %v516 = vld [vmem:[%s4 + $0x20] sm:$0xf]
      %v517 = vld [vmem:[%s4 + $0x24] sm:$0xf]
      %v518 = vld [vmem:[%s4 + $0x28] sm:$0xf]
      %v519 = vld [vmem:[%s4 + $0x2c] sm:$0xf]
      %v520 = vld [vmem:[%s4 + $0x30] sm:$0xf]
      %v521 = vld [vmem:[%s4 + $0x34] sm:$0xf]
      %v522 = vld [vmem:[%s4 + $0x38] sm:$0xf]
      %v523 = vld [vmem:[%s4 + $0x3c] sm:$0xf]
      %v524 = vld [vmem:[%s5] sm:$0x1]
      %v526 = vlaneseq
      %v527 = vshrl.u32 %v526, 7
      %v528 = vsub.s32 0, %v527
      %v529 = vrot.slane %v524, %v528
      %v547 = vunpack.c.l.b16 %v508
      %v548 = vunpack.c.l.b16 %v509
      %v549 = vunpack.c.l.b16 %v510
      %v550 = vunpack.c.l.b16 %v511
      %v551 = vunpack.c.l.b16 %v512
      %v552 = vunpack.c.l.b16 %v513
      %v553 = vunpack.c.l.b16 %v514
      %v554 = vunpack.c.l.b16 %v515
      %v555 = vunpack.c.l.b16 %v516
      %v556 = vunpack.c.l.b16 %v517
      %v557 = vunpack.c.l.b16 %v518
      %v558 = vunpack.c.l.b16 %v519
      %v559 = vunpack.c.l.b16 %v520
      %v560 = vunpack.c.l.b16 %v521
      %v561 = vunpack.c.l.b16 %v522
      %v562 = vunpack.c.l.b16 %v523
      %v563 = vpack.c.b16 %v548, %v547
      %v564 = vpack.c.b16 %v550, %v549
      %v565 = vpack.c.b16 %v552, %v551
      %v566 = vpack.c.b16 %v554, %v553
      %v567 = vpack.c.b16 %v556, %v555
      %v568 = vpack.c.b16 %v558, %v557
      %v569 = vpack.c.b16 %v560, %v559
      %v570 = vpack.c.b16 %v562, %v561
      %579 = vmatprep.subr.bf16.mxu0 0
      %580 = vmatpush1.bf16.msra.mxu0 %v570
      %581 = vmatprep.subr.bf16.mxu0 0
      %582 = vmatpush1.bf16.msra.mxu0 %v569
      %583 = vmatprep.subr.bf16.mxu0 0
      %584 = vmatpush1.bf16.msra.mxu0 %v568
      %585 = vmatprep.subr.bf16.mxu0 0
      %586 = vmatpush1.bf16.msra.mxu0 %v567
      %587 = vmatprep.subr.bf16.mxu0 0
      %588 = vmatpush1.bf16.msra.mxu0 %v566
      %589 = vmatprep.subr.bf16.mxu0 0
      %590 = vmatpush1.bf16.msra.mxu0 %v565
      %591 = vmatprep.subr.bf16.mxu0 0
      %592 = vmatpush1.bf16.msra.mxu0 %v564
      %593 = vmatprep.subr.bf16.mxu0 0
      %594 = vmatpush1.bf16.msra.mxu0 %v563
      %595 = vmatprep.subr.bf16.mxu0 0
      %596 = vmatpush2.bf16.msra.mxu0 0
      %597 = vmatprep.subr.bf16.mxu0 0
      %598 = vmatpush2.bf16.msra.mxu0 0
      %599 = vmatprep.subr.bf16.mxu0 0
      %600 = vmatpush2.bf16.msra.mxu0 0
      %601 = vmatprep.subr.bf16.mxu0 0
      %602 = vmatpush2.bf16.msra.mxu0 0
      %603 = vmatprep.subr.bf16.mxu0 0
      %604 = vmatpush2.bf16.msra.mxu0 0
      %605 = vmatprep.subr.bf16.mxu0 0
      %606 = vmatpush2.bf16.msra.mxu0 0
      %607 = vmatprep.subr.bf16.mxu0 0
      %608 = vmatpush2.bf16.msra.mxu0 0
      %609 = vmatprep.subr.bf16.mxu0 0
      %610 = vmatpush2.bf16.msra.mxu0 0
      %611 = vmatprep.mubr.bf16.mxu0 0
      %612 = vmatmul.mubr.bf16.gmra.mxu0 %v507
      %v613 = vpop.f32.mrf.mxu0
      %v614 = vadd.f32 %v529, %v613
      %v615 = vpop.f32.mrf.mxu0
      %v616 = vpop.f32.mrf.mxu0
      %v617 = vadd.f32 %v529, %v616
      %v618 = vpop.f32.mrf.mxu0
      %619 = vdwg.mxu0
      %v620 = vmax.f32 %v614, 0.0
      %v621 = vmax.f32 %v617, 0.0
      %v622 = vmul.f32 %v620, %v620
      %v623 = vmul.f32 %v621, %v621
      %v624 = vpack.c.bf16 %v623, %v622
      %v625 = vld [vmem:[%s6] sm:$0xf]
      %v626 = vld [vmem:[%s6 + $0x4] sm:$0xf]
      %v627 = vld [vmem:[%s6 + $0x8] sm:$0xf]
      %v628 = vld [vmem:[%s6 + $0xc] sm:$0xf]
      %v629 = vld [vmem:[%s6 + $0x10] sm:$0xf]
      %v630 = vld [vmem:[%s6 + $0x14] sm:$0xf]
      %v631 = vld [vmem:[%s6 + $0x18] sm:$0xf]
      %v632 = vld [vmem:[%s6 + $0x1c] sm:$0xf]
      %v633 = vld [vmem:[%s6 + $0x20] sm:$0xf]
      %v634 = vld [vmem:[%s6 + $0x24] sm:$0xf]
      %v635 = vld [vmem:[%s6 + $0x28] sm:$0xf]
      %v636 = vld [vmem:[%s6 + $0x2c] sm:$0xf]
      %v637 = vld [vmem:[%s6 + $0x30] sm:$0xf]
      %v638 = vld [vmem:[%s6 + $0x34] sm:$0xf]
      %v639 = vld [vmem:[%s6 + $0x38] sm:$0xf]
      %v640 = vld [vmem:[%s6 + $0x3c] sm:$0xf]
      %v641 = vld [vmem:[%s7] sm:$0x1]
      %v643 = vlaneseq
      %v644 = vshrl.u32 %v643, 7
      %v645 = vsub.s32 0, %v644
      %v646 = vrot.slane %v641, %v645
      %v664 = vunpack.c.l.b16 %v625
      %v665 = vunpack.c.l.b16 %v626
      %v666 = vunpack.c.l.b16 %v627
      %v667 = vunpack.c.l.b16 %v628
      %v668 = vunpack.c.l.b16 %v629
      %v669 = vunpack.c.l.b16 %v630
      %v670 = vunpack.c.l.b16 %v631
      %v671 = vunpack.c.l.b16 %v632
      %v672 = vunpack.c.l.b16 %v633
      %v673 = vunpack.c.l.b16 %v634
      %v674 = vunpack.c.l.b16 %v635
      %v675 = vunpack.c.l.b16 %v636
      %v676 = vunpack.c.l.b16 %v637
      %v677 = vunpack.c.l.b16 %v638
      %v678 = vunpack.c.l.b16 %v639
      %v679 = vunpack.c.l.b16 %v640
      %v680 = vpack.c.b16 %v665, %v664
      %v681 = vpack.c.b16 %v667, %v666
      %v682 = vpack.c.b16 %v669, %v668
      %v683 = vpack.c.b16 %v671, %v670
      %v684 = vpack.c.b16 %v673, %v672
      %v685 = vpack.c.b16 %v675, %v674
      %v686 = vpack.c.b16 %v677, %v676
      %v687 = vpack.c.b16 %v679, %v678
      %696 = vmatprep.subr.bf16.mxu0 0
      %697 = vmatpush1.bf16.msra.mxu0 %v687
      %698 = vmatprep.subr.bf16.mxu0 0
      %699 = vmatpush1.bf16.msra.mxu0 %v686
      %700 = vmatprep.subr.bf16.mxu0 0
      %701 = vmatpush1.bf16.msra.mxu0 %v685
      %702 = vmatprep.subr.bf16.mxu0 0
      %703 = vmatpush1.bf16.msra.mxu0 %v684
      %704 = vmatprep.subr.bf16.mxu0 0
      %705 = vmatpush1.bf16.msra.mxu0 %v683
      %706 = vmatprep.subr.bf16.mxu0 0
      %707 = vmatpush1.bf16.msra.mxu0 %v682
      %708 = vmatprep.subr.bf16.mxu0 0
      %709 = vmatpush1.bf16.msra.mxu0 %v681
      %710 = vmatprep.subr.bf16.mxu0 0
      %711 = vmatpush1.bf16.msra.mxu0 %v680
      %712 = vmatprep.subr.bf16.mxu0 0
      %713 = vmatpush2.bf16.msra.mxu0 0
      %714 = vmatprep.subr.bf16.mxu0 0
      %715 = vmatpush2.bf16.msra.mxu0 0
      %716 = vmatprep.subr.bf16.mxu0 0
      %717 = vmatpush2.bf16.msra.mxu0 0
      %718 = vmatprep.subr.bf16.mxu0 0
      %719 = vmatpush2.bf16.msra.mxu0 0
      %720 = vmatprep.subr.bf16.mxu0 0
      %721 = vmatpush2.bf16.msra.mxu0 0
      %722 = vmatprep.subr.bf16.mxu0 0
      %723 = vmatpush2.bf16.msra.mxu0 0
      %724 = vmatprep.subr.bf16.mxu0 0
      %725 = vmatpush2.bf16.msra.mxu0 0
      %726 = vmatprep.subr.bf16.mxu0 0
      %727 = vmatpush2.bf16.msra.mxu0 0
      %728 = vmatprep.mubr.bf16.mxu0 0
      %729 = vmatmul.mubr.bf16.gmra.mxu0 %v624
      %v730 = vpop.f32.mrf.mxu0
      %v731 = vadd.f32 %v646, %v730
      %v732 = vpop.f32.mrf.mxu0
      %v733 = vpop.f32.mrf.mxu0
      %v734 = vadd.f32 %v646, %v733
      %v735 = vpop.f32.mrf.mxu0
      %736 = vdwg.mxu0
      %v737 = vadd.f32 %v339, %v731
      %v738 = vadd.f32 %v340, %v734
      %v739 = vsel %vm376, %v737, 0.0
      %v740 = vsel %vm377, %v738, 0.0
      %741 = vst [vmem:[#allocation2 + $0x10] sm:$0xff] %v739
      %742 = vst [vmem:[#allocation2 + $0x18] sm:$0xff] %v740
      %v743 = vld [vmem:[#allocation2 + $0x7] sm:$0xff]
      %v744 = vld [vmem:[#allocation2 + $0xf] sm:$0xff]
      %s745 = scalar_lea.vmem %s1, 16
      %v746 = vld [vmem:[%s745] sm:$0x1]
      %v747 = vlaneseq
      %v748 = vshrl.u32 %v747, 7
      %v749 = vsub.s32 0, %v748
      %v750 = vrot.slane %v746, %v749
      %v751 = vmul.f32 %v743, %v750
      %v752 = vmul.f32 %v744, %v750
      %v753 = vadd.f32 %v751, 0.0
      %v754 = vadd.f32 %v752, 0.0
      %v755 = vld [vmem:[#allocation2 + $0x8] sm:$0xff]
      %v756 = vld [vmem:[#allocation2 + $0x10] sm:$0xff]
      %v757 = vld [vmem:[%s745 + $0x1] sm:$0x1]
      %v758 = vlaneseq
      %v759 = vshrl.u32 %v758, 7
      %v760 = vsub.s32 0, %v759
      %v761 = vrot.slane %v757, %v760
      %v762 = vmul.f32 %v755, %v761
      %v763 = vmul.f32 %v756, %v761
      %v764 = vadd.f32 %v753, %v762
      %v765 = vadd.f32 %v754, %v763
      %v766 = vld [vmem:[#allocation2 + $0x9] sm:$0xff]
      %v767 = vld [vmem:[#allocation2 + $0x11] sm:$0xff]
      %v768 = vld [vmem:[%s745 + $0x2] sm:$0x1]
      %v769 = vlaneseq
      %v770 = vshrl.u32 %v769, 7
      %v771 = vsub.s32 0, %v770
      %v772 = vrot.slane %v768, %v771
      %v773 = vmul.f32 %v766, %v772
      %v774 = vmul.f32 %v767, %v772
      %v775 = vadd.f32 %v764, %v773
      %v776 = vadd.f32 %v765, %v774
      %v777 = vld [vmem:[#allocation2 + $0x17] sm:$0xff]
      %v778 = vld [vmem:[%s745 + $0x3] sm:$0x1]
      %v779 = vlaneseq
      %v780 = vshrl.u32 %v779, 7
      %v781 = vsub.s32 0, %v780
      %v782 = vrot.slane %v778, %v781
      %v783 = vmul.f32 %v744, %v782
      %v784 = vmul.f32 %v777, %v782
      %v785 = vadd.f32 %v775, %v783
      %v786 = vadd.f32 %v776, %v784
      %v787 = vld [vmem:[#allocation2 + $0x18] sm:$0xff]
      %v788 = vld [vmem:[%s745 + $0x4] sm:$0x1]
      %v789 = vlaneseq
      %v790 = vshrl.u32 %v789, 7
      %v791 = vsub.s32 0, %v790
      %v792 = vrot.slane %v788, %v791
      %v793 = vmul.f32 %v756, %v792
      %v794 = vmul.f32 %v787, %v792
      %v795 = vadd.f32 %v785, %v793
      %v796 = vadd.f32 %v786, %v794
      %v797 = vld [vmem:[#allocation2 + $0x19] sm:$0xff]
      %v798 = vld [vmem:[%s745 + $0x5] sm:$0x1]
      %v799 = vlaneseq
      %v800 = vshrl.u32 %v799, 7
      %v801 = vsub.s32 0, %v800
      %v802 = vrot.slane %v798, %v801
      %v803 = vmul.f32 %v767, %v802
      %v804 = vmul.f32 %v797, %v802
      %v805 = vadd.f32 %v795, %v803
      %v806 = vadd.f32 %v796, %v804
      %v807 = vld [vmem:[#allocation2 + $0x1f] sm:$0xff]
      %v808 = vld [vmem:[%s745 + $0x6] sm:$0x1]
      %v809 = vlaneseq
      %v810 = vshrl.u32 %v809, 7
      %v811 = vsub.s32 0, %v810
      %v812 = vrot.slane %v808, %v811
      %v813 = vmul.f32 %v777, %v812
      %v814 = vmul.f32 %v807, %v812
      %v815 = vadd.f32 %v805, %v813
      %v816 = vadd.f32 %v806, %v814
      %v817 = vld [vmem:[#allocation2 + $0x20] sm:$0xff]
      %v818 = vld [vmem:[%s745 + $0x7] sm:$0x1]
      %v819 = vlaneseq
      %v820 = vshrl.u32 %v819, 7
      %v821 = vsub.s32 0, %v820
      %v822 = vrot.slane %v818, %v821
      %v823 = vmul.f32 %v787, %v822
      %v824 = vmul.f32 %v817, %v822
      %v825 = vadd.f32 %v815, %v823
      %v826 = vadd.f32 %v816, %v824
      %v827 = vld [vmem:[#allocation2 + $0x21] sm:$0xff]
      %v828 = vld [vmem:[%s745 + $0x8] sm:$0x1]
      %v829 = vlaneseq
      %v830 = vshrl.u32 %v829, 7
      %v831 = vsub.s32 0, %v830
      %v832 = vrot.slane %v828, %v831
      %v833 = vmul.f32 %v797, %v832
      %v834 = vmul.f32 %v827, %v832
      %v835 = vadd.f32 %v825, %v833
      %v836 = vadd.f32 %v826, %v834
      %s837 = scalar_lea.vmem %s2, 1
      %v838 = vld [vmem:[%s837] sm:$0x1]
      %v840 = vlaneseq
      %v841 = vshrl.u32 %v840, 7
      %v842 = vsub.s32 0, %v841
      %v843 = vrot.slane %v838, %v842
      %v845 = vadd.f32 %v835, %v843
      %v846 = vadd.f32 %v836, %v843
      %v847 = vmul.f32 %v845, %v845
      %v848 = vmul.f32 %v846, %v846
      %849 = vadd.xlane.f32.xlu0 %v847
      %v850 = vpop.xlane.xlu0 %849
      %851 = vadd.xlane.f32.xlu0 %v848
      %v852 = vpop.xlane.xlu0 %851
      %v853 = vmul.f32 %v850, 0.015625
      %v854 = vmul.f32 %v852, 0.015625
      %v855 = vadd.f32 %v853, 1e-05
      %v856 = vadd.f32 %v854, 1e-05
      %v857 = vrsqrt.pop %v855
      %v858 = vrsqrt.pop %v856
      %v859 = vmul.f32 %v845, %v857
      %v860 = vmul.f32 %v846, %v858
      %s861 = scalar_lea.vmem %s3, 1
      %v862 = vld [vmem:[%s861] sm:$0x1]
      %v864 = vlaneseq
      %v865 = vshrl.u32 %v864, 7
      %v866 = vsub.s32 0, %v865
      %v867 = vrot.slane %v862, %v866
      %v869 = vmul.f32 %v859, %v867
      %v870 = vmul.f32 %v860, %v867
      %v871 = vpack.c.bf16 %v870, %v869
      %s872 = scalar_lea.vmem %s4, 64
      %v873 = vld [vmem:[%s872] sm:$0xf]
      %v874 = vld [vmem:[%s872 + $0x4] sm:$0xf]
      %v875 = vld [vmem:[%s872 + $0x8] sm:$0xf]
      %v876 = vld [vmem:[%s872 + $0xc] sm:$0xf]
      %v877 = vld [vmem:[%s872 + $0x10] sm:$0xf]
      %v878 = vld [vmem:[%s872 + $0x14] sm:$0xf]
      %v879 = vld [vmem:[%s872 + $0x18] sm:$0xf]
      %v880 = vld [vmem:[%s872 + $0x1c] sm:$0xf]
      %v881 = vld [vmem:[%s872 + $0x20] sm:$0xf]
      %v882 = vld [vmem:[%s872 + $0x24] sm:$0xf]
      %v883 = vld [vmem:[%s872 + $0x28] sm:$0xf]
      %v884 = vld [vmem:[%s872 + $0x2c] sm:$0xf]
      %v885 = vld [vmem:[%s872 + $0x30] sm:$0xf]
      %v886 = vld [vmem:[%s872 + $0x34] sm:$0xf]
      %v887 = vld [vmem:[%s872 + $0x38] sm:$0xf]
      %v888 = vld [vmem:[%s872 + $0x3c] sm:$0xf]
      %s889 = scalar_lea.vmem %s5, 1
      %v890 = vld [vmem:[%s889] sm:$0x1]
      %v892 = vlaneseq
      %v893 = vshrl.u32 %v892, 7
      %v894 = vsub.s32 0, %v893
      %v895 = vrot.slane %v890, %v894
      %v913 = vunpack.c.l.b16 %v873
      %v914 = vunpack.c.l.b16 %v874
      %v915 = vunpack.c.l.b16 %v875
      %v916 = vunpack.c.l.b16 %v876
      %v917 = vunpack.c.l.b16 %v877
      %v918 = vunpack.c.l.b16 %v878
      %v919 = vunpack.c.l.b16 %v879
      %v920 = vunpack.c.l.b16 %v880
      %v921 = vunpack.c.l.b16 %v881
      %v922 = vunpack.c.l.b16 %v882
      %v923 = vunpack.c.l.b16 %v883
      %v924 = vunpack.c.l.b16 %v884
      %v925 = vunpack.c.l.b16 %v885
      %v926 = vunpack.c.l.b16 %v886
      %v927 = vunpack.c.l.b16 %v887
      %v928 = vunpack.c.l.b16 %v888
      %v929 = vpack.c.b16 %v914, %v913
      %v930 = vpack.c.b16 %v916, %v915
      %v931 = vpack.c.b16 %v918, %v917
      %v932 = vpack.c.b16 %v920, %v919
      %v933 = vpack.c.b16 %v922, %v921
      %v934 = vpack.c.b16 %v924, %v923
      %v935 = vpack.c.b16 %v926, %v925
      %v936 = vpack.c.b16 %v928, %v927
      %945 = vmatprep.subr.bf16.mxu0 0
      %946 = vmatpush1.bf16.msra.mxu0 %v936
      %947 = vmatprep.subr.bf16.mxu0 0
      %948 = vmatpush1.bf16.msra.mxu0 %v935
      %949 = vmatprep.subr.bf16.mxu0 0
      %950 = vmatpush1.bf16.msra.mxu0 %v934
      %951 = vmatprep.subr.bf16.mxu0 0
      %952 = vmatpush1.bf16.msra.mxu0 %v933
      %953 = vmatprep.subr.bf16.mxu0 0
      %954 = vmatpush1.bf16.msra.mxu0 %v932
      %955 = vmatprep.subr.bf16.mxu0 0
      %956 = vmatpush1.bf16.msra.mxu0 %v931
      %957 = vmatprep.subr.bf16.mxu0 0
      %958 = vmatpush1.bf16.msra.mxu0 %v930
      %959 = vmatprep.subr.bf16.mxu0 0
      %960 = vmatpush1.bf16.msra.mxu0 %v929
      %961 = vmatprep.subr.bf16.mxu0 0
      %962 = vmatpush2.bf16.msra.mxu0 0
      %963 = vmatprep.subr.bf16.mxu0 0
      %964 = vmatpush2.bf16.msra.mxu0 0
      %965 = vmatprep.subr.bf16.mxu0 0
      %966 = vmatpush2.bf16.msra.mxu0 0
      %967 = vmatprep.subr.bf16.mxu0 0
      %968 = vmatpush2.bf16.msra.mxu0 0
      %969 = vmatprep.subr.bf16.mxu0 0
      %970 = vmatpush2.bf16.msra.mxu0 0
      %971 = vmatprep.subr.bf16.mxu0 0
      %972 = vmatpush2.bf16.msra.mxu0 0
      %973 = vmatprep.subr.bf16.mxu0 0
      %974 = vmatpush2.bf16.msra.mxu0 0
      %975 = vmatprep.subr.bf16.mxu0 0
      %976 = vmatpush2.bf16.msra.mxu0 0
      %977 = vmatprep.mubr.bf16.mxu0 0
      %978 = vmatmul.mubr.bf16.gmra.mxu0 %v871
      %v979 = vpop.f32.mrf.mxu0
      %v980 = vadd.f32 %v895, %v979
      %v981 = vpop.f32.mrf.mxu0
      %v982 = vpop.f32.mrf.mxu0
      %v983 = vadd.f32 %v895, %v982
      %v984 = vpop.f32.mrf.mxu0
      %985 = vdwg.mxu0
      %v986 = vmax.f32 %v980, 0.0
      %v987 = vmax.f32 %v983, 0.0
      %v988 = vmul.f32 %v986, %v986
      %v989 = vmul.f32 %v987, %v987
      %v990 = vpack.c.bf16 %v989, %v988
      %s991 = scalar_lea.vmem %s6, 64
      %v992 = vld [vmem:[%s991] sm:$0xf]
      %v993 = vld [vmem:[%s991 + $0x4] sm:$0xf]
      %v994 = vld [vmem:[%s991 + $0x8] sm:$0xf]
      %v995 = vld [vmem:[%s991 + $0xc] sm:$0xf]
      %v996 = vld [vmem:[%s991 + $0x10] sm:$0xf]
      %v997 = vld [vmem:[%s991 + $0x14] sm:$0xf]
      %v998 = vld [vmem:[%s991 + $0x18] sm:$0xf]
      %v999 = vld [vmem:[%s991 + $0x1c] sm:$0xf]
      %v1000 = vld [vmem:[%s991 + $0x20] sm:$0xf]
      %v1001 = vld [vmem:[%s991 + $0x24] sm:$0xf]
      %v1002 = vld [vmem:[%s991 + $0x28] sm:$0xf]
      %v1003 = vld [vmem:[%s991 + $0x2c] sm:$0xf]
      %v1004 = vld [vmem:[%s991 + $0x30] sm:$0xf]
      %v1005 = vld [vmem:[%s991 + $0x34] sm:$0xf]
      %v1006 = vld [vmem:[%s991 + $0x38] sm:$0xf]
      %v1007 = vld [vmem:[%s991 + $0x3c] sm:$0xf]
      %s1008 = scalar_lea.vmem %s7, 1
      %v1009 = vld [vmem:[%s1008] sm:$0x1]
      %v1011 = vlaneseq
      %v1012 = vshrl.u32 %v1011, 7
      %v1013 = vsub.s32 0, %v1012
      %v1014 = vrot.slane %v1009, %v1013
      %v1032 = vunpack.c.l.b16 %v992
      %v1033 = vunpack.c.l.b16 %v993
      %v1034 = vunpack.c.l.b16 %v994
      %v1035 = vunpack.c.l.b16 %v995
      %v1036 = vunpack.c.l.b16 %v996
      %v1037 = vunpack.c.l.b16 %v997
      %v1038 = vunpack.c.l.b16 %v998
      %v1039 = vunpack.c.l.b16 %v999
      %v1040 = vunpack.c.l.b16 %v1000
      %v1041 = vunpack.c.l.b16 %v1001
      %v1042 = vunpack.c.l.b16 %v1002
      %v1043 = vunpack.c.l.b16 %v1003
      %v1044 = vunpack.c.l.b16 %v1004
      %v1045 = vunpack.c.l.b16 %v1005
      %v1046 = vunpack.c.l.b16 %v1006
      %v1047 = vunpack.c.l.b16 %v1007
      %v1048 = vpack.c.b16 %v1033, %v1032
      %v1049 = vpack.c.b16 %v1035, %v1034
      %v1050 = vpack.c.b16 %v1037, %v1036
      %v1051 = vpack.c.b16 %v1039, %v1038
      %v1052 = vpack.c.b16 %v1041, %v1040
      %v1053 = vpack.c.b16 %v1043, %v1042
      %v1054 = vpack.c.b16 %v1045, %v1044
      %v1055 = vpack.c.b16 %v1047, %v1046
      %1064 = vmatprep.subr.bf16.mxu0 0
      %1065 = vmatpush1.bf16.msra.mxu0 %v1055
      %1066 = vmatprep.subr.bf16.mxu0 0
      %1067 = vmatpush1.bf16.msra.mxu0 %v1054
      %1068 = vmatprep.subr.bf16.mxu0 0
      %1069 = vmatpush1.bf16.msra.mxu0 %v1053
      %1070 = vmatprep.subr.bf16.mxu0 0
      %1071 = vmatpush1.bf16.msra.mxu0 %v1052
      %1072 = vmatprep.subr.bf16.mxu0 0
      %1073 = vmatpush1.bf16.msra.mxu0 %v1051
      %1074 = vmatprep.subr.bf16.mxu0 0
      %1075 = vmatpush1.bf16.msra.mxu0 %v1050
      %1076 = vmatprep.subr.bf16.mxu0 0
      %1077 = vmatpush1.bf16.msra.mxu0 %v1049
      %1078 = vmatprep.subr.bf16.mxu0 0
      %1079 = vmatpush1.bf16.msra.mxu0 %v1048
      %1080 = vmatprep.subr.bf16.mxu0 0
      %1081 = vmatpush2.bf16.msra.mxu0 0
      %1082 = vmatprep.subr.bf16.mxu0 0
      %1083 = vmatpush2.bf16.msra.mxu0 0
      %1084 = vmatprep.subr.bf16.mxu0 0
      %1085 = vmatpush2.bf16.msra.mxu0 0
      %1086 = vmatprep.subr.bf16.mxu0 0
      %1087 = vmatpush2.bf16.msra.mxu0 0
      %1088 = vmatprep.subr.bf16.mxu0 0
      %1089 = vmatpush2.bf16.msra.mxu0 0
      %1090 = vmatprep.subr.bf16.mxu0 0
      %1091 = vmatpush2.bf16.msra.mxu0 0
      %1092 = vmatprep.subr.bf16.mxu0 0
      %1093 = vmatpush2.bf16.msra.mxu0 0
      %1094 = vmatprep.subr.bf16.mxu0 0
      %1095 = vmatpush2.bf16.msra.mxu0 0
      %1096 = vmatprep.mubr.bf16.mxu0 0
      %1097 = vmatmul.mubr.bf16.gmra.mxu0 %v990
      %v1098 = vpop.f32.mrf.mxu0
      %v1099 = vadd.f32 %v1014, %v1098
      %v1100 = vpop.f32.mrf.mxu0
      %v1101 = vpop.f32.mrf.mxu0
      %v1102 = vadd.f32 %v1014, %v1101
      %v1103 = vpop.f32.mrf.mxu0
      %1104 = vdwg.mxu0
      %v1105 = vadd.f32 %v737, %v1099
      %v1106 = vadd.f32 %v738, %v1102
      %v1107 = vmul.f32 %v1105, %v1105
      %v1108 = vmul.f32 %v1106, %v1106
      %1109 = vadd.xlane.f32.xlu0 %v1107
      %v1110 = vpop.xlane.xlu0 %1109
      %1111 = vadd.xlane.f32.xlu0 %v1108
      %v1112 = vpop.xlane.xlu0 %1111
      %v1113 = vmul.f32 %v1110, 0.015625
      %v1114 = vmul.f32 %v1112, 0.015625
      %v1115 = vadd.f32 %v1113, 1e-05
      %v1116 = vadd.f32 %v1114, 1e-05
      %v1117 = vrsqrt.pop %v1115
      %v1118 = vrsqrt.pop %v1116
      %v1119 = vmul.f32 %v1105, %v1117
      %v1120 = vmul.f32 %v1106, %v1118
      %v1121 = vld [vmem:[%s8] sm:$0x1]
      %v1123 = vlaneseq
      %v1124 = vshrl.u32 %v1123, 7
      %v1125 = vsub.s32 0, %v1124
      %v1126 = vrot.slane %v1121, %v1125
      %v1128 = vmul.f32 %v1119, %v1126
      %v1129 = vmul.f32 %v1120, %v1126
      %1130 = vst [vmem:[%s334] sm:$0xff] %v1128
      %1131 = vst [vmem:[%s334 + $0x8] sm:$0xff] %v1129
      %s1132 = smul.u32 2, %s20
      %p1133 = scmp.lt.s32.totalorder %s1132, 3
      %s1134 = scalar_select %p1133, %s1132, 3
      %s1135 = smul.addr %s1134, 8
      %s1136 = scalar_lea.vmem %s9, %s1135
      // Predicated region
      $region57: #{convnext2d_forward.5} parent=55 // pred_check
        %p1137 = pneg %p232
      $region58: #{convnext2d_forward.5} parent=55 // pred_check_branch
        %1139 = sbr.rel (%p1137) target = $region60
      $region59: #{convnext2d_forward.5} parent=55 // pred_region
        %s1140 = smul.u32 2, %s20
      $region60: #{convnext2d_forward.5} parent=55 // pred_fallthru
        _
    $region56: #{convnext2d_forward.5} parent=5 // pred_fallthru
      _
    %p1141 = scmp.le.s32.totalorder 2, %s15
    // Predicated region
    $region61: #{convnext2d_forward.5} parent=5 // pred_check
      %p1142 = pneg %p1141
    $region62: #{convnext2d_forward.5} parent=5 // pred_check_branch
      %1144 = sbr.rel (%p1142) target = $region64
    $region63: #{convnext2d_forward.5} parent=5 // pred_region
      %s1145 = ssub.s32 %s15, 2
      // Predicated region
      $region65: #{convnext2d_forward.5} parent=63 // pred_check
        %p1146 = pneg %p238
      $region66: #{convnext2d_forward.5} parent=63 // pred_check_branch
        %1148 = sbr.rel (%p1146) target = $region68
      $region67: #{convnext2d_forward.5} parent=63 // pred_region
        %s1149 = smul.u32 2, %s21
        %p1150 = scmp.lt.s32.totalorder %s1149, 3
        %s1151 = scalar_select %p1150, %s1149, 3
        %s1152 = smul.addr %s1151, 8
        %s1153 = scalar_lea.vmem %s9, %s1152
      $region68: #{convnext2d_forward.5} parent=63 // pred_fallthru
        _
    $region64: #{convnext2d_forward.5} parent=5 // pred_fallthru
      _
  $region6: #{convnext2d_forward.5} parent=0 // loop_footer
    %s19 = sadd.s32 1, %s15
  $region7: #{convnext2d_forward.5} parent=0 // loop_footer_branch
    %14 = sbr.rel target = $region3
  $region8: #{convnext2d_forward.5} parent=0 // loop_exit
    _

// kernel: convnext2d_forward.4
$region0: #{convnext2d_forward.4}
  #allocation0 [shape = 'u32[]', space=smem, size = 0x4, offset = 0x4, fixed_abs, tag = 'smem constant byte address 0x4 - core index']
  #allocation1 [shape = 'u32[144,128]{1,0:T(1,128)}', space=vmem, size = 0x12000, scoped, tag = 'internal scratch']
  #allocation2 [shape = 'f32[1,64,128]{2,1,0:T(8,128)}', space=vmem, size = 0x8000, scoped, tag = 'scratch operand']
  %s0 = inlined_call_operand.vmem [shape: bf16[64,128], index: 0, kind: input, shape index: {}]
  %s1 = inlined_call_operand.vmem [shape: f32[2,9,128], index: 1, kind: input, shape index: {}]
  %s2 = inlined_call_operand.vmem [shape: f32[2,1,128], index: 2, kind: input, shape index: {}]
  %s3 = inlined_call_operand.vmem [shape: f32[2,1,128], index: 3, kind: input, shape index: {}]
  %s4 = inlined_call_operand.vmem [shape: bf16[2,128,128], index: 4, kind: input, shape index: {}]
  %s5 = inlined_call_operand.vmem [shape: f32[2,1,128], index: 5, kind: input, shape index: {}]
  %s6 = inlined_call_operand.vmem [shape: bf16[2,128,128], index: 6, kind: input, shape index: {}]
  %s7 = inlined_call_operand.vmem [shape: f32[2,1,128], index: 7, kind: input, shape index: {}]
  %s8 = inlined_call_operand.vmem [shape: bf16[4,16,32], index: 8, kind: input, shape index: {}]
  %s9 = inlined_call_operand.vmem [shape: bf16[4,128,128], index: 9, kind: input, shape index: {}]
  %s10 = inlined_call_operand.vmem [shape: f32[1,128], index: 10, kind: input, shape index: {}]
  %s11 = inlined_call_operand.vmem [shape: bf16[32,128], index: 11, kind: output, shape index: {}]
  %s12 = sld [smem:[#allocation0]]
  $region77: #{convnext2d_forward.4} parent=0
    _
  %s14 = ssub.s32 1, %s12
  %s15 = scalar_select 0, %s14, %s12
  loop: start=0, step=1, limit=4
  $region2: #{convnext2d_forward.4} parent=0 // loop_pre_header
    _
  $region3: #{convnext2d_forward.4} parent=0 // loop_header
    %s17 = sphi 0, %s21
    %p18 = scmp.ge.s32.totalorder %s17, 4
    %s27 = sphi 0, %s29
    %s30 = sphi 0, %s27
    %s31 = sphi 0, %s30
    %s47 = sphi 0, %s31
    %s51 = sphi 0, %s51
    %s53 = sphi 0, %s51
    %s54 = sphi 0, %s53
    %s68 = sphi 0, %s54
    %s72 = sphi 0, %s72
    %s74 = sphi 0, %s72
    %s75 = sphi 0, %s74
    %s89 = sphi 0, %s75
    %s93 = sphi 0, %s93
    %s95 = sphi 0, %s93
    %s96 = sphi 0, %s95
    %s110 = sphi 0, %s96
    %s114 = sphi 0, %s114
    %s116 = sphi 0, %s114
    %s117 = sphi 0, %s116
    %s131 = sphi 0, %s117
    %s135 = sphi 0, %s135
    %s137 = sphi 0, %s135
    %s138 = sphi 0, %s137
    %s152 = sphi 0, %s138
    %s156 = sphi 0, %s156
    %s158 = sphi 0, %s156
    %s159 = sphi 0, %s158
    %s173 = sphi 0, %s159
    %s177 = sphi 0, %s177
    %s179 = sphi 0, %s177
    %s180 = sphi 0, %s179
    %s194 = sphi 0, %s180
    %s198 = sphi 0, %s198
    %s200 = sphi 0, %s198
    %s201 = sphi 0, %s200
    %s215 = sphi 0, %s201
    %s219 = sphi 0, %s219
    %s221 = sphi 0, %s219
    %s222 = sphi 0, %s221
    %s236 = sphi 0, %s222
    %s240 = sphi 0, %s240
    %s242 = sphi 0, %s240
    %s243 = sphi 0, %s242
    %s257 = sphi 0, %s243
    %s263 = sphi 0, %s265
    %s266 = sphi 0, %s263
    %s267 = sphi 0, %s266
    %s283 = sphi 0, %s267
  $region4: #{convnext2d_forward.4} parent=0 // loop_header_branch
    %20 = sbr.rel (%p18) target = $region8
  $region5: #{convnext2d_forward.4} parent=0 // loop_body
    %s22 = ssub.s32 %s17, 1
    %s23 = ssub.s32 %s17, 2
    %s24 = sadd.s32 %s17, 1
    %s25 = ssub.s32 %s17, %s24
    %p26 = scmp.eq.s32.totalorder %s25, 0
    %s28 = sadd.s32 %s27, 1
    %s29 = scalar_select %p26, %s27, %s28
    %p32 = pneg %p26
    %p33 = scmp.eq.s32.totalorder %s17, 1
    %p34 = por %p32, %p33
    %p35 = scmp.ne.s32.totalorder %s27, %s30
    %p36 = scmp.eq.s32.totalorder %s17, 0
    %p37 = por %p35, %p36
    %p38 = scmp.ne.s32.totalorder %s27, %s30
    %p39 = scmp.eq.s32.totalorder %s22, 1
    %p40 = por %p38, %p39
    %p41 = scmp.ne.s32.totalorder %s30, %s31
    %p42 = scmp.eq.s32.totalorder %s22, 0
    %p43 = por %p41, %p42
    %p44 = scmp.ne.s32.totalorder %s30, %s31
    %p45 = scmp.eq.s32.totalorder %s23, 1
    %p46 = por %p44, %p45
    %p48 = scmp.ne.s32.totalorder %s31, %s47
    %p49 = scmp.eq.s32.totalorder %s23, 0
    %p50 = por %p48, %p49
    %s52 = sadd.s32 %s51, 1
    %p55 = scmp.eq.s32.totalorder %s17, 1
    %p56 = scmp.ne.s32.totalorder %s51, %s53
    %p57 = scmp.eq.s32.totalorder %s17, 0
    %p58 = por %p56, %p57
    %p59 = scmp.ne.s32.totalorder %s51, %s53
    %p60 = scmp.eq.s32.totalorder %s22, 1
    %p61 = por %p59, %p60
    %p62 = scmp.ne.s32.totalorder %s53, %s54
    %p63 = scmp.eq.s32.totalorder %s22, 0
    %p64 = por %p62, %p63
    %p65 = scmp.ne.s32.totalorder %s53, %s54
    %p66 = scmp.eq.s32.totalorder %s23, 1
    %p67 = por %p65, %p66
    %p69 = scmp.ne.s32.totalorder %s54, %s68
    %p70 = scmp.eq.s32.totalorder %s23, 0
    %p71 = por %p69, %p70
    %s73 = sadd.s32 %s72, 1
    %p76 = scmp.eq.s32.totalorder %s17, 1
    %p77 = scmp.ne.s32.totalorder %s72, %s74
    %p78 = scmp.eq.s32.totalorder %s17, 0
    %p79 = por %p77, %p78
    %p80 = scmp.ne.s32.totalorder %s72, %s74
    %p81 = scmp.eq.s32.totalorder %s22, 1
    %p82 = por %p80, %p81
    %p83 = scmp.ne.s32.totalorder %s74, %s75
    %p84 = scmp.eq.s32.totalorder %s22, 0
    %p85 = por %p83, %p84
    %p86 = scmp.ne.s32.totalorder %s74, %s75
    %p87 = scmp.eq.s32.totalorder %s23, 1
    %p88 = por %p86, %p87
    %p90 = scmp.ne.s32.totalorder %s75, %s89
    %p91 = scmp.eq.s32.totalorder %s23, 0
    %p92 = por %p90, %p91
    %s94 = sadd.s32 %s93, 1
    %p97 = scmp.eq.s32.totalorder %s17, 1
    %p98 = scmp.ne.s32.totalorder %s93, %s95
    %p99 = scmp.eq.s32.totalorder %s17, 0
    %p100 = por %p98, %p99
    %p101 = scmp.ne.s32.totalorder %s93, %s95
    %p102 = scmp.eq.s32.totalorder %s22, 1
    %p103 = por %p101, %p102
    %p104 = scmp.ne.s32.totalorder %s95, %s96
    %p105 = scmp.eq.s32.totalorder %s22, 0
    %p106 = por %p104, %p105
    %p107 = scmp.ne.s32.totalorder %s95, %s96
    %p108 = scmp.eq.s32.totalorder %s23, 1
    %p109 = por %p107, %p108
    %p111 = scmp.ne.s32.totalorder %s96, %s110
    %p112 = scmp.eq.s32.totalorder %s23, 0
    %p113 = por %p111, %p112
    %s115 = sadd.s32 %s114, 1
    %p118 = scmp.eq.s32.totalorder %s17, 1
    %p119 = scmp.ne.s32.totalorder %s114, %s116
    %p120 = scmp.eq.s32.totalorder %s17, 0
    %p121 = por %p119, %p120
    %p122 = scmp.ne.s32.totalorder %s114, %s116
    %p123 = scmp.eq.s32.totalorder %s22, 1
    %p124 = por %p122, %p123
    %p125 = scmp.ne.s32.totalorder %s116, %s117
    %p126 = scmp.eq.s32.totalorder %s22, 0
    %p127 = por %p125, %p126
    %p128 = scmp.ne.s32.totalorder %s116, %s117
    %p129 = scmp.eq.s32.totalorder %s23, 1
    %p130 = por %p128, %p129
    %p132 = scmp.ne.s32.totalorder %s117, %s131
    %p133 = scmp.eq.s32.totalorder %s23, 0
    %p134 = por %p132, %p133
    %s136 = sadd.s32 %s135, 1
    %p139 = scmp.eq.s32.totalorder %s17, 1
    %p140 = scmp.ne.s32.totalorder %s135, %s137
    %p141 = scmp.eq.s32.totalorder %s17, 0
    %p142 = por %p140, %p141
    %p143 = scmp.ne.s32.totalorder %s135, %s137
    %p144 = scmp.eq.s32.totalorder %s22, 1
    %p145 = por %p143, %p144
    %p146 = scmp.ne.s32.totalorder %s137, %s138
    %p147 = scmp.eq.s32.totalorder %s22, 0
    %p148 = por %p146, %p147
    %p149 = scmp.ne.s32.totalorder %s137, %s138
    %p150 = scmp.eq.s32.totalorder %s23, 1
    %p151 = por %p149, %p150
    %p153 = scmp.ne.s32.totalorder %s138, %s152
    %p154 = scmp.eq.s32.totalorder %s23, 0
    %p155 = por %p153, %p154
    %s157 = sadd.s32 %s156, 1
    %p160 = scmp.eq.s32.totalorder %s17, 1
    %p161 = scmp.ne.s32.totalorder %s156, %s158
    %p162 = scmp.eq.s32.totalorder %s17, 0
    %p163 = por %p161, %p162
    %p164 = scmp.ne.s32.totalorder %s156, %s158
    %p165 = scmp.eq.s32.totalorder %s22, 1
    %p166 = por %p164, %p165
    %p167 = scmp.ne.s32.totalorder %s158, %s159
    %p168 = scmp.eq.s32.totalorder %s22, 0
    %p169 = por %p167, %p168
    %p170 = scmp.ne.s32.totalorder %s158, %s159
    %p171 = scmp.eq.s32.totalorder %s23, 1
    %p172 = por %p170, %p171
    %p174 = scmp.ne.s32.totalorder %s159, %s173
    %p175 = scmp.eq.s32.totalorder %s23, 0
    %p176 = por %p174, %p175
    %s178 = sadd.s32 %s177, 1
    %p181 = scmp.eq.s32.totalorder %s17, 1
    %p182 = scmp.ne.s32.totalorder %s177, %s179
    %p183 = scmp.eq.s32.totalorder %s17, 0
    %p184 = por %p182, %p183
    %p185 = scmp.ne.s32.totalorder %s177, %s179
    %p186 = scmp.eq.s32.totalorder %s22, 1
    %p187 = por %p185, %p186
    %p188 = scmp.ne.s32.totalorder %s179, %s180
    %p189 = scmp.eq.s32.totalorder %s22, 0
    %p190 = por %p188, %p189
    %p191 = scmp.ne.s32.totalorder %s179, %s180
    %p192 = scmp.eq.s32.totalorder %s23, 1
    %p193 = por %p191, %p192
    %p195 = scmp.ne.s32.totalorder %s180, %s194
    %p196 = scmp.eq.s32.totalorder %s23, 0
    %p197 = por %p195, %p196
    %s199 = sadd.s32 %s198, 1
    %p202 = scmp.eq.s32.totalorder %s17, 1
    %p203 = scmp.ne.s32.totalorder %s198, %s200
    %p204 = scmp.eq.s32.totalorder %s17, 0
    %p205 = por %p203, %p204
    %p206 = scmp.ne.s32.totalorder %s198, %s200
    %p207 = scmp.eq.s32.totalorder %s22, 1
    %p208 = por %p206, %p207
    %p209 = scmp.ne.s32.totalorder %s200, %s201
    %p210 = scmp.eq.s32.totalorder %s22, 0
    %p211 = por %p209, %p210
    %p212 = scmp.ne.s32.totalorder %s200, %s201
    %p213 = scmp.eq.s32.totalorder %s23, 1
    %p214 = por %p212, %p213
    %p216 = scmp.ne.s32.totalorder %s201, %s215
    %p217 = scmp.eq.s32.totalorder %s23, 0
    %p218 = por %p216, %p217
    %s220 = sadd.s32 %s219, 1
    %p223 = scmp.eq.s32.totalorder %s17, 1
    %p224 = scmp.ne.s32.totalorder %s219, %s221
    %p225 = scmp.eq.s32.totalorder %s17, 0
    %p226 = por %p224, %p225
    %p227 = scmp.ne.s32.totalorder %s219, %s221
    %p228 = scmp.eq.s32.totalorder %s22, 1
    %p229 = por %p227, %p228
    %p230 = scmp.ne.s32.totalorder %s221, %s222
    %p231 = scmp.eq.s32.totalorder %s22, 0
    %p232 = por %p230, %p231
    %p233 = scmp.ne.s32.totalorder %s221, %s222
    %p234 = scmp.eq.s32.totalorder %s23, 1
    %p235 = por %p233, %p234
    %p237 = scmp.ne.s32.totalorder %s222, %s236
    %p238 = scmp.eq.s32.totalorder %s23, 0
    %p239 = por %p237, %p238
    %s241 = sadd.s32 %s240, 1
    %p244 = scmp.eq.s32.totalorder %s17, 1
    %p245 = scmp.ne.s32.totalorder %s240, %s242
    %p246 = scmp.eq.s32.totalorder %s17, 0
    %p247 = por %p245, %p246
    %p248 = scmp.ne.s32.totalorder %s240, %s242
    %p249 = scmp.eq.s32.totalorder %s22, 1
    %p250 = por %p248, %p249
    %p251 = scmp.ne.s32.totalorder %s242, %s243
    %p252 = scmp.eq.s32.totalorder %s22, 0
    %p253 = por %p251, %p252
    %p254 = scmp.ne.s32.totalorder %s242, %s243
    %p255 = scmp.eq.s32.totalorder %s23, 1
    %p256 = por %p254, %p255
    %p258 = scmp.ne.s32.totalorder %s243, %s257
    %p259 = scmp.eq.s32.totalorder %s23, 0
    %p260 = por %p258, %p259
    %s261 = ssub.s32 %s17, %s24
    %p262 = scmp.eq.s32.totalorder %s261, 0
    %s264 = sadd.s32 %s263, 1
    %s265 = scalar_select %p262, %s263, %s264
    %p268 = pneg %p262
    %p269 = scmp.eq.s32.totalorder %s17, 1
    %p270 = por %p268, %p269
    %p271 = scmp.ne.s32.totalorder %s263, %s266
    %p272 = scmp.eq.s32.totalorder %s17, 0
    %p273 = por %p271, %p272
    %p274 = scmp.ne.s32.totalorder %s263, %s266
    %p275 = scmp.eq.s32.totalorder %s22, 1
    %p276 = por %p274, %p275
    %p277 = scmp.ne.s32.totalorder %s266, %s267
    %p278 = scmp.eq.s32.totalorder %s22, 0
    %p279 = por %p277, %p278
    %p280 = scmp.ne.s32.totalorder %s266, %s267
    %p281 = scmp.eq.s32.totalorder %s23, 1
    %p282 = por %p280, %p281
    %p284 = scmp.ne.s32.totalorder %s267, %s283
    %p285 = scmp.eq.s32.totalorder %s23, 0
    %p286 = por %p284, %p285
    %p287 = scmp.le.s32.totalorder 1, %s17
    %p288 = scmp.lt.s32.totalorder %s17, 3
    %p289 = pnand %p287, %p288
    %p290 = pneg %p289
    // Predicated region
    $region9: #{convnext2d_forward.4} parent=5 // pred_check
      _
    $region10: #{convnext2d_forward.4} parent=5 // pred_check_branch
      %292 = sbr.rel (%p289) target = $region12
    $region11: #{convnext2d_forward.4} parent=5 // pred_region
      %s293 = ssub.s32 %s17, 1
      // Predicated region
      $region13: #{convnext2d_forward.4} parent=11 // pred_check
        %p294 = pneg %p64
      $region14: #{convnext2d_forward.4} parent=11 // pred_check_branch
        %296 = sbr.rel (%p294) target = $region16
      $region15: #{convnext2d_forward.4} parent=11 // pred_region
        _
      $region16: #{convnext2d_forward.4} parent=11 // pred_fallthru
        _
      // Predicated region
      $region17: #{convnext2d_forward.4} parent=11 // pred_check
        %p297 = pneg %p85
      $region18: #{convnext2d_forward.4} parent=11 // pred_check_branch
        %299 = sbr.rel (%p297) target = $region20
      $region19: #{convnext2d_forward.4} parent=11 // pred_region
        _
      $region20: #{convnext2d_forward.4} parent=11 // pred_fallthru
        _
      // Predicated region
      $region21: #{convnext2d_forward.4} parent=11 // pred_check
        %p300 = pneg %p106
      $region22: #{convnext2d_forward.4} parent=11 // pred_check_branch
        %302 = sbr.rel (%p300) target = $region24
      $region23: #{convnext2d_forward.4} parent=11 // pred_region
        _
      $region24: #{convnext2d_forward.4} parent=11 // pred_fallthru
        _
      // Predicated region
      $region25: #{convnext2d_forward.4} parent=11 // pred_check
        %p303 = pneg %p127
      $region26: #{convnext2d_forward.4} parent=11 // pred_check_branch
        %305 = sbr.rel (%p303) target = $region28
      $region27: #{convnext2d_forward.4} parent=11 // pred_region
        _
      $region28: #{convnext2d_forward.4} parent=11 // pred_fallthru
        _
      // Predicated region
      $region29: #{convnext2d_forward.4} parent=11 // pred_check
        %p306 = pneg %p148
      $region30: #{convnext2d_forward.4} parent=11 // pred_check_branch
        %308 = sbr.rel (%p306) target = $region32
      $region31: #{convnext2d_forward.4} parent=11 // pred_region
        _
      $region32: #{convnext2d_forward.4} parent=11 // pred_fallthru
        _
      // Predicated region
      $region33: #{convnext2d_forward.4} parent=11 // pred_check
        %p309 = pneg %p169
      $region34: #{convnext2d_forward.4} parent=11 // pred_check_branch
        %311 = sbr.rel (%p309) target = $region36
      $region35: #{convnext2d_forward.4} parent=11 // pred_region
        _
      $region36: #{convnext2d_forward.4} parent=11 // pred_fallthru
        _
      // Predicated region
      $region37: #{convnext2d_forward.4} parent=11 // pred_check
        %p312 = pneg %p190
      $region38: #{convnext2d_forward.4} parent=11 // pred_check_branch
        %314 = sbr.rel (%p312) target = $region40
      $region39: #{convnext2d_forward.4} parent=11 // pred_region
        _
      $region40: #{convnext2d_forward.4} parent=11 // pred_fallthru
        _
      // Predicated region
      $region41: #{convnext2d_forward.4} parent=11 // pred_check
        %p315 = pneg %p211
      $region42: #{convnext2d_forward.4} parent=11 // pred_check_branch
        %317 = sbr.rel (%p315) target = $region44
      $region43: #{convnext2d_forward.4} parent=11 // pred_region
        _
      $region44: #{convnext2d_forward.4} parent=11 // pred_fallthru
        _
      // Predicated region
      $region45: #{convnext2d_forward.4} parent=11 // pred_check
        %p318 = pneg %p232
      $region46: #{convnext2d_forward.4} parent=11 // pred_check_branch
        %320 = sbr.rel (%p318) target = $region48
      $region47: #{convnext2d_forward.4} parent=11 // pred_region
        _
      $region48: #{convnext2d_forward.4} parent=11 // pred_fallthru
        _
      // Predicated region
      $region49: #{convnext2d_forward.4} parent=11 // pred_check
        %p321 = pneg %p253
      $region50: #{convnext2d_forward.4} parent=11 // pred_check_branch
        %323 = sbr.rel (%p321) target = $region52
      $region51: #{convnext2d_forward.4} parent=11 // pred_region
        _
      $region52: #{convnext2d_forward.4} parent=11 // pred_fallthru
        _
    $region12: #{convnext2d_forward.4} parent=5 // pred_fallthru
      _
    %p324 = scmp.lt.s32.totalorder %s17, 2
    // Predicated region
    $region53: #{convnext2d_forward.4} parent=5 // pred_check
      %p325 = pneg %p324
    $region54: #{convnext2d_forward.4} parent=5 // pred_check_branch
      %327 = sbr.rel (%p325) target = $region56
    $region55: #{convnext2d_forward.4} parent=5 // pred_region
      // Predicated region
      $region57: #{convnext2d_forward.4} parent=55 // pred_check
        %p328 = pneg %p37
      $region58: #{convnext2d_forward.4} parent=55 // pred_check_branch
        %330 = sbr.rel (%p328) target = $region60
      $region59: #{convnext2d_forward.4} parent=55 // pred_region
        %s331 = smul.u32 4, %s17
        %p332 = scmp.lt.s32.totalorder %s331, 7
        %s333 = scalar_select %p332, %s331, 7
        %s334 = smul.addr %s333, 4
        %s335 = scalar_lea.vmem %s0, %s334
        %s336 = smul.u32 4, %s17
      $region60: #{convnext2d_forward.4} parent=55 // pred_fallthru
        _
    $region56: #{convnext2d_forward.4} parent=5 // pred_fallthru
      _
    %p337 = scmp.le.s32.totalorder 1, %s17
    %p338 = scmp.lt.s32.totalorder %s17, 3
    %p339 = pnand %p337, %p338
    %p340 = pneg %p339
    // Predicated region
    $region61: #{convnext2d_forward.4} parent=5 // pred_check
      _
    $region62: #{convnext2d_forward.4} parent=5 // pred_check_branch
      %342 = sbr.rel (%p339) target = $region64
    $region63: #{convnext2d_forward.4} parent=5 // pred_region
      %s343 = ssub.s32 %s17, 1
      %s344 = smul.u32 4, %s22
      %p345 = scmp.lt.s32.totalorder %s344, 7
      %s346 = scalar_select %p345, %s344, 7
      %s347 = smul.addr %s346, 4
      %s348 = scalar_lea.vmem %s0, %s347
      %p349 = pneg %p43
      %p350 = pneg %p40
      %p351 = pneg %p64
      %p352 = pneg %p61
      %p353 = pneg %p85
      %p354 = pneg %p82
      %p355 = pneg %p106
      %p356 = pneg %p103
      %p357 = pneg %p127
      %p358 = pneg %p124
      %p359 = pneg %p148
      %p360 = pneg %p145
      %p361 = pneg %p169
      %p362 = pneg %p166
      %p363 = pneg %p190
      %p364 = pneg %p187
      %p365 = pneg %p211
      %p366 = pneg %p208
      %p367 = pneg %p232
      %p368 = pneg %p229
      %p369 = pneg %p253
      %p370 = pneg %p250
      %p371 = pneg %p279
      %p372 = pneg %p276
      %s373 = smul.u32 2, %s22
      %p374 = scmp.lt.s32.totalorder %s373, 3
      %s375 = scalar_select %p374, %s373, 3
      %s376 = smul.addr %s375, 4
      %s377 = scalar_lea.vmem %s11, %s376
      %s378 = smul.u32 4, %s22
      %p379 = scmp.lt.s32.totalorder %s378, 7
      %s380 = scalar_select %p379, %s378, 7
      %s381 = smul.addr %s380, 4
      %s382 = scalar_lea.vmem %s0, %s381
      %s383 = smul.u32 4, %s22
      %s384 = smul.u32 2, %s22
      %p385 = scmp.lt.s32.totalorder %s384, 3
      %s386 = scalar_select %p385, %s384, 3
      %s387 = smul.addr %s386, 4
      %s388 = scalar_lea.vmem %s11, %s387
      %s389 = smul.u32 2, %s22
      %v391 = vld [vmem:[%s382] sm:$0xf]
      %v392 = vld [vmem:[%s382 + $0x4] sm:$0xf]
      %v393 = vld [vmem:[%s382 + $0x8] sm:$0xf]
      %v394 = vld [vmem:[%s382 + $0xc] sm:$0xf]
      %v395 = vunpack.c.l.bf16 %v391
      %v396 = vunpack.c.l.bf16 %v392
      %v397 = vunpack.c.l.bf16 %v393
      %v398 = vunpack.c.l.bf16 %v394
      %399 = vst [vmem:[#allocation2] sm:$0xff] 0.0
      %400 = vst [vmem:[#allocation2 + $0x8] sm:$0xff] 0.0
      %401 = vst [vmem:[#allocation2 + $0x30] sm:$0xff] 0.0
      %402 = vst [vmem:[#allocation2 + $0x38] sm:$0xff] 0.0
      %v403 = vlaneseq
      %v404 = vshrl.u32 %v403, 7
      %v405 = vadd.s32 %v404, 8
      %v406 = vadd.s32 %v404, 16
      %v407 = vadd.s32 %v404, 24
      %vm408 = vcmp.lt.s32.totalorder %v404, 0
      %v409 = vsub.s32 0, %v404
      %v410 = vsel %vm408, %v409, %v404
      %v411 = vshrl.u32 %v410, 3
      %v412 = vand.u32 %v410, 7
      %v413 = vsub.s32 0, %v412
      %v414 = vsel %vm408, %v413, %v412
      %vm415 = vcmp.lt.s32.totalorder %v405, 0
      %v416 = vsub.s32 0, %v405
      %v417 = vsel %vm415, %v416, %v405
      %v418 = vshrl.u32 %v417, 3
      %v419 = vand.u32 %v417, 7
      %v420 = vsub.s32 0, %v419
      %v421 = vsel %vm415, %v420, %v419
      %vm422 = vcmp.lt.s32.totalorder %v406, 0
      %v423 = vsub.s32 0, %v406
      %v424 = vsel %vm422, %v423, %v406
      %v425 = vshrl.u32 %v424, 3
      %v426 = vand.u32 %v424, 7
      %v427 = vsub.s32 0, %v426
      %v428 = vsel %vm422, %v427, %v426
      %vm429 = vcmp.lt.s32.totalorder %v407, 0
      %v430 = vsub.s32 0, %v407
      %v431 = vsel %vm429, %v430, %v407
      %v432 = vshrl.u32 %v431, 3
      %v433 = vand.u32 %v431, 7
      %v434 = vsub.s32 0, %v433
      %v435 = vsel %vm429, %v434, %v433
      %vm436 = vcmp.ne.s32.totalorder %v414, 0
      %vm437 = vcmp.ne.s32.totalorder %v421, 0
      %vm438 = vcmp.ne.s32.totalorder %v428, 0
      %vm439 = vcmp.ne.s32.totalorder %v435, 0
      %vm440 = vcmp.lt.s32.totalorder %v414, 0
      %vm441 = vcmp.lt.s32.totalorder %v421, 0
      %vm442 = vcmp.lt.s32.totalorder %v428, 0
      %vm443 = vcmp.lt.s32.totalorder %v435, 0
      %vm444 = vmand %vm440, %vm436
      %vm445 = vmand %vm441, %vm437
      %vm446 = vmand %vm442, %vm438
      %vm447 = vmand %vm443, %vm439
      %v448 = vadd.s32 %v414, 8
      %v449 = vadd.s32 %v421, 8
      %v450 = vadd.s32 %v428, 8
      %v451 = vadd.s32 %v435, 8
      %v452 = vsel %vm444, %v448, %v414
      %v453 = vsel %vm445, %v449, %v421
      %v454 = vsel %vm446, %v450, %v428
      %v455 = vsel %vm447, %v451, %v435
      %vm456 = vcmp.lt.s32.totalorder %v452, 4
      %vm457 = vcmp.lt.s32.totalorder %v453, 4
      %vm458 = vcmp.lt.s32.totalorder %v454, 4
      %vm459 = vcmp.lt.s32.totalorder %v455, 4
      %v460 = vsel %vm456, 1, 0
      %v461 = vsel %vm457, 1, 0
      %v462 = vsel %vm458, 1, 0
      %v463 = vsel %vm459, 1, 0
      %vm464 = vcmp.eq.s32.totalorder %v460, 1
      %vm465 = vcmp.eq.s32.totalorder %v461, 1
      %vm466 = vcmp.eq.s32.totalorder %v462, 1
      %vm467 = vcmp.eq.s32.totalorder %v463, 1
      %v468 = vsel %vm464, %v395, 0.0
      %v469 = vsel %vm465, %v396, 0.0
      %v470 = vsel %vm466, %v397, 0.0
      %v471 = vsel %vm467, %v398, 0.0
      %472 = vst [vmem:[#allocation2 + $0x10] sm:$0xff] %v468
      %473 = vst [vmem:[#allocation2 + $0x18] sm:$0xff] %v469
      %474 = vst [vmem:[#allocation2 + $0x20] sm:$0xff] %v470
      %475 = vst [vmem:[#allocation2 + $0x28] sm:$0xff] %v471
      %v476 = vld [vmem:[#allocation2 + $0x7] sm:$0xff]
      %v477 = vld [vmem:[#allocation2 + $0xf] sm:$0xff]
      %v478 = vld [vmem:[#allocation2 + $0x17] sm:$0xff]
      %v479 = vld [vmem:[#allocation2 + $0x1f] sm:$0xff]
      %v480 = vld [vmem:[%s1] sm:$0x1]
      %v481 = vlaneseq
      %v482 = vshrl.u32 %v481, 7
      %v483 = vsub.s32 0, %v482
      %v484 = vrot.slane %v480, %v483
      %v485 = vmul.f32 %v476, %v484
      %v486 = vmul.f32 %v477, %v484
      %v487 = vmul.f32 %v478, %v484
      %v488 = vmul.f32 %v479, %v484
      %v489 = vadd.f32 %v485, 0.0
      %v490 = vadd.f32 %v486, 0.0
      %v491 = vadd.f32 %v487, 0.0
      %v492 = vadd.f32 %v488, 0.0
      %v493 = vld [vmem:[#allocation2 + $0x8] sm:$0xff]
      %v494 = vld [vmem:[#allocation2 + $0x10] sm:$0xff]
      %v495 = vld [vmem:[#allocation2 + $0x18] sm:$0xff]
      %v496 = vld [vmem:[#allocation2 + $0x20] sm:$0xff]
      %v497 = vld [vmem:[%s1 + $0x1] sm:$0x1]
      %v498 = vlaneseq
      %v499 = vshrl.u32 %v498, 7
      %v500 = vsub.s32 0, %v499
      %v501 = vrot.slane %v497, %v500
      %v502 = vmul.f32 %v493, %v501
      %v503 = vmul.f32 %v494, %v501
      %v504 = vmul.f32 %v495, %v501
      %v505 = vmul.f32 %v496, %v501
      %v506 = vadd.f32 %v489, %v502
      %v507 = vadd.f32 %v490, %v503
      %v508 = vadd.f32 %v491, %v504
      %v509 = vadd.f32 %v492, %v505
      %v510 = vld [vmem:[#allocation2 + $0x9] sm:$0xff]
      %v511 = vld [vmem:[#allocation2 + $0x11] sm:$0xff]
      %v512 = vld [vmem:[#allocation2 + $0x19] sm:$0xff]
      %v513 = vld [vmem:[#allocation2 + $0x21] sm:$0xff]
      %v514 = vld [vmem:[%s1 + $0x2] sm:$0x1]
      %v515 = vlaneseq
      %v516 = vshrl.u32 %v515, 7
      %v517 = vsub.s32 0, %v516
      %v518 = vrot.slane %v514, %v517
      %v519 = vmul.f32 %v510, %v518
      %v520 = vmul.f32 %v511, %v518
      %v521 = vmul.f32 %v512, %v518
      %v522 = vmul.f32 %v513, %v518
      %v523 = vadd.f32 %v506, %v519
      %v524 = vadd.f32 %v507, %v520
      %v525 = vadd.f32 %v508, %v521
      %v526 = vadd.f32 %v509, %v522
      %v527 = vld [vmem:[#allocation2 + $0x27] sm:$0xff]
      %v528 = vld [vmem:[%s1 + $0x3] sm:$0x1]
      %v529 = vlaneseq
      %v530 = vshrl.u32 %v529, 7
      %v531 = vsub.s32 0, %v530
      %v532 = vrot.slane %v528, %v531
      %v533 = vmul.f32 %v477, %v532
      %v534 = vmul.f32 %v478, %v532
      %v535 = vmul.f32 %v479, %v532
      %v536 = vmul.f32 %v527, %v532
      %v537 = vadd.f32 %v523, %v533
      %v538 = vadd.f32 %v524, %v534
      %v539 = vadd.f32 %v525, %v535
      %v540 = vadd.f32 %v526, %v536
      %v541 = vld [vmem:[#allocation2 + $0x28] sm:$0xff]
      %v542 = vld [vmem:[%s1 + $0x4] sm:$0x1]
      %v543 = vlaneseq
      %v544 = vshrl.u32 %v543, 7
      %v545 = vsub.s32 0, %v544
      %v546 = vrot.slane %v542, %v545
      %v547 = vmul.f32 %v494, %v546
      %v548 = vmul.f32 %v495, %v546
      %v549 = vmul.f32 %v496, %v546
      %v550 = vmul.f32 %v541, %v546
      %v551 = vadd.f32 %v537, %v547
      %v552 = vadd.f32 %v538, %v548
      %v553 = vadd.f32 %v539, %v549
      %v554 = vadd.f32 %v540, %v550
      %v555 = vld [vmem:[#allocation2 + $0x29] sm:$0xff]
      %v556 = vld [vmem:[%s1 + $0x5] sm:$0x1]
      %v557 = vlaneseq
      %v558 = vshrl.u32 %v557, 7
      %v559 = vsub.s32 0, %v558
      %v560 = vrot.slane %v556, %v559
      %v561 = vmul.f32 %v511, %v560
      %v562 = vmul.f32 %v512, %v560
      %v563 = vmul.f32 %v513, %v560
      %v564 = vmul.f32 %v555, %v560
      %v565 = vadd.f32 %v551, %v561
      %v566 = vadd.f32 %v552, %v562
      %v567 = vadd.f32 %v553, %v563
      %v568 = vadd.f32 %v554, %v564
      %v569 = vld [vmem:[#allocation2 + $0x2f] sm:$0xff]
      %v570 = vld [vmem:[%s1 + $0x6] sm:$0x1]
      %v571 = vlaneseq
      %v572 = vshrl.u32 %v571, 7
      %v573 = vsub.s32 0, %v572
      %v574 = vrot.slane %v570, %v573
      %v575 = vmul.f32 %v478, %v574
      %v576 = vmul.f32 %v479, %v574
      %v577 = vmul.f32 %v527, %v574
      %v578 = vmul.f32 %v569, %v574
      %v579 = vadd.f32 %v565, %v575
      %v580 = vadd.f32 %v566, %v576
      %v581 = vadd.f32 %v567, %v577
      %v582 = vadd.f32 %v568, %v578
      %v583 = vld [vmem:[#allocation2 + $0x30] sm:$0xff]
      %v584 = vld [vmem:[%s1 + $0x7] sm:$0x1]
      %v585 = vlaneseq
      %v586 = vshrl.u32 %v585, 7
      %v587 = vsub.s32 0, %v586
      %v588 = vrot.slane %v584, %v587
      %v589 = vmul.f32 %v495, %v588
      %v590 = vmul.f32 %v496, %v588
      %v591 = vmul.f32 %v541, %v588
      %v592 = vmul.f32 %v583, %v588
      %v593 = vadd.f32 %v579, %v589
      %v594 = vadd.f32 %v580, %v590
      %v595 = vadd.f32 %v581, %v591
      %v596 = vadd.f32 %v582, %v592
      %v597 = vld [vmem:[#allocation2 + $0x31] sm:$0xff]
      %v598 = vld [vmem:[%s1 + $0x8] sm:$0x1]
      %v599 = vlaneseq
      %v600 = vshrl.u32 %v599, 7
      %v601 = vsub.s32 0, %v600
      %v602 = vrot.slane %v598, %v601
      %v603 = vmul.f32 %v512, %v602
      %v604 = vmul.f32 %v513, %v602
      %v605 = vmul.f32 %v555, %v602
      %v606 = vmul.f32 %v597, %v602
      %v607 = vadd.f32 %v593, %v603
      %v608 = vadd.f32 %v594, %v604
      %v609 = vadd.f32 %v595, %v605
      %v610 = vadd.f32 %v596, %v606
      %v611 = vld [vmem:[%s2] sm:$0x1]
      %v613 = vlaneseq
      %v614 = vshrl.u32 %v613, 7
      %v615 = vsub.s32 0, %v614
      %v616 = vrot.slane %v611, %v615
      %v618 = vadd.f32 %v607, %v616
      %v619 = vadd.f32 %v608, %v616
      %v620 = vadd.f32 %v609, %v616
      %v621 = vadd.f32 %v610, %v616
      %v622 = vmul.f32 %v618, %v618
      %v623 = vmul.f32 %v619, %v619
      %v624 = vmul.f32 %v620, %v620
      %v625 = vmul.f32 %v621, %v621
      %626 = vadd.xlane.f32.xlu0 %v622
      %v627 = vpop.xlane.xlu0 %626
      %628 = vadd.xlane.f32.xlu0 %v623
      %v629 = vpop.xlane.xlu0 %628
      %630 = vadd.xlane.f32.xlu0 %v624
      %v631 = vpop.xlane.xlu0 %630
      %632 = vadd.xlane.f32.xlu0 %v625
      %v633 = vpop.xlane.xlu0 %632
      %v634 = vmul.f32 %v627, 0.03125
      %v635 = vmul.f32 %v629, 0.03125
      %v636 = vmul.f32 %v631, 0.03125
      %v637 = vmul.f32 %v633, 0.03125
      %v638 = vadd.f32 %v634, 1e-05
      %v639 = vadd.f32 %v635, 1e-05
      %v640 = vadd.f32 %v636, 1e-05
      %v641 = vadd.f32 %v637, 1e-05
      %v642 = vrsqrt.pop %v638
      %v643 = vrsqrt.pop %v639
      %v644 = vrsqrt.pop %v640
      %v645 = vrsqrt.pop %v641
      %v646 = vmul.f32 %v618, %v642
      %v647 = vmul.f32 %v619, %v643
      %v648 = vmul.f32 %v620, %v644
      %v649 = vmul.f32 %v621, %v645
      %v650 = vld [vmem:[%s3] sm:$0x1]
      %v652 = vlaneseq
      %v653 = vshrl.u32 %v652, 7
      %v654 = vsub.s32 0, %v653
      %v655 = vrot.slane %v650, %v654
      %v657 = vmul.f32 %v646, %v655
      %v658 = vmul.f32 %v647, %v655
      %v659 = vmul.f32 %v648, %v655
      %v660 = vmul.f32 %v649, %v655
      %v661 = vpack.c.bf16 %v658, %v657
      %v662 = vpack.c.bf16 %v660, %v659
      %v663 = vld [vmem:[%s4] sm:$0xf]
      %v664 = vld [vmem:[%s4 + $0x4] sm:$0xf]
      %v665 = vld [vmem:[%s4 + $0x8] sm:$0xf]
      %v666 = vld [vmem:[%s4 + $0xc] sm:$0xf]
      %v667 = vld [vmem:[%s4 + $0x10] sm:$0xf]
      %v668 = vld [vmem:[%s4 + $0x14] sm:$0xf]
      %v669 = vld [vmem:[%s4 + $0x18] sm:$0xf]
      %v670 = vld [vmem:[%s4 + $0x1c] sm:$0xf]
      %v671 = vld [vmem:[%s4 + $0x20] sm:$0xf]
      %v672 = vld [vmem:[%s4 + $0x24] sm:$0xf]
      %v673 = vld [vmem:[%s4 + $0x28] sm:$0xf]
      %v674 = vld [vmem:[%s4 + $0x2c] sm:$0xf]
      %v675 = vld [vmem:[%s4 + $0x30] sm:$0xf]
      %v676 = vld [vmem:[%s4 + $0x34] sm:$0xf]
      %v677 = vld [vmem:[%s4 + $0x38] sm:$0xf]
      %v678 = vld [vmem:[%s4 + $0x3c] sm:$0xf]
      %v679 = vld [vmem:[%s5] sm:$0x1]
      %v681 = vlaneseq
      %v682 = vshrl.u32 %v681, 7
      %v683 = vsub.s32 0, %v682
      %v684 = vrot.slane %v679, %v683
      %v702 = vunpack.c.l.b16 %v663
      %v703 = vunpack.c.l.b16 %v664
      %v704 = vunpack.c.l.b16 %v665
      %v705 = vunpack.c.l.b16 %v666
      %v706 = vunpack.c.l.b16 %v667
      %v707 = vunpack.c.l.b16 %v668
      %v708 = vunpack.c.l.b16 %v669
      %v709 = vunpack.c.l.b16 %v670
      %v710 = vunpack.c.l.b16 %v671
      %v711 = vunpack.c.l.b16 %v672
      %v712 = vunpack.c.l.b16 %v673
      %v713 = vunpack.c.l.b16 %v674
      %v714 = vunpack.c.l.b16 %v675
      %v715 = vunpack.c.l.b16 %v676
      %v716 = vunpack.c.l.b16 %v677
      %v717 = vunpack.c.l.b16 %v678
      %v718 = vpack.c.b16 %v703, %v702
      %v719 = vpack.c.b16 %v705, %v704
      %v720 = vpack.c.b16 %v707, %v706
      %v721 = vpack.c.b16 %v709, %v708
      %v722 = vpack.c.b16 %v711, %v710
      %v723 = vpack.c.b16 %v713, %v712
      %v724 = vpack.c.b16 %v715, %v714
      %v725 = vpack.c.b16 %v717, %v716
      %734 = vmatprep.subr.bf16.mxu0 0
      %735 = vmatpush1.bf16.msra.mxu0 %v725
      %736 = vmatprep.subr.bf16.mxu0 0
      %737 = vmatpush1.bf16.msra.mxu0 %v724
      %738 = vmatprep.subr.bf16.mxu0 0
      %739 = vmatpush1.bf16.msra.mxu0 %v723
      %740 = vmatprep.subr.bf16.mxu0 0
      %741 = vmatpush1.bf16.msra.mxu0 %v722
      %742 = vmatprep.subr.bf16.mxu0 0
      %743 = vmatpush1.bf16.msra.mxu0 %v721
      %744 = vmatprep.subr.bf16.mxu0 0
      %745 = vmatpush1.bf16.msra.mxu0 %v720
      %746 = vmatprep.subr.bf16.mxu0 0
      %747 = vmatpush1.bf16.msra.mxu0 %v719
      %748 = vmatprep.subr.bf16.mxu0 0
      %749 = vmatpush1.bf16.msra.mxu0 %v718
      %750 = vmatprep.subr.bf16.mxu0 0
      %751 = vmatpush2.bf16.msra.mxu0 0
      %752 = vmatprep.subr.bf16.mxu0 0
      %753 = vmatpush2.bf16.msra.mxu0 0
      %754 = vmatprep.subr.bf16.mxu0 0
      %755 = vmatpush2.bf16.msra.mxu0 0
      %756 = vmatprep.subr.bf16.mxu0 0
      %757 = vmatpush2.bf16.msra.mxu0 0
      %758 = vmatprep.subr.bf16.mxu0 0
      %759 = vmatpush2.bf16.msra.mxu0 0
      %760 = vmatprep.subr.bf16.mxu0 0
      %761 = vmatpush2.bf16.msra.mxu0 0
      %762 = vmatprep.subr.bf16.mxu0 0
      %763 = vmatpush2.bf16.msra.mxu0 0
      %764 = vmatprep.subr.bf16.mxu0 0
      %765 = vmatpush2.bf16.msra.mxu0 0
      %766 = vmatprep.mubr.bf16.mxu0 0
      %767 = vmatmul.mubr.bf16.gmra.mxu0 %v661
      %v768 = vpop.f32.mrf.mxu0
      %v769 = vadd.f32 %v684, %v768
      %v770 = vpop.f32.mrf.mxu0
      %v771 = vpop.f32.mrf.mxu0
      %v772 = vadd.f32 %v684, %v771
      %v773 = vpop.f32.mrf.mxu0
      %774 = vmatprep.mubr.bf16.mxu0 0
      %775 = vmatmul.mubr.bf16.gmra.mxu0 %v662
      %v776 = vpop.f32.mrf.mxu0
      %v777 = vadd.f32 %v684, %v776
      %v778 = vpop.f32.mrf.mxu0
      %v779 = vpop.f32.mrf.mxu0
      %v780 = vadd.f32 %v684, %v779
      %v781 = vpop.f32.mrf.mxu0
      %782 = vdwg.mxu0
      %v783 = vmax.f32 %v769, 0.0
      %v784 = vmax.f32 %v772, 0.0
      %v785 = vmax.f32 %v777, 0.0
      %v786 = vmax.f32 %v780, 0.0
      %v787 = vmul.f32 %v783, %v783
      %v788 = vmul.f32 %v784, %v784
      %v789 = vmul.f32 %v785, %v785
      %v790 = vmul.f32 %v786, %v786
      %v791 = vpack.c.bf16 %v788, %v787
      %v792 = vpack.c.bf16 %v790, %v789
      %v793 = vld [vmem:[%s6] sm:$0xf]
      %v794 = vld [vmem:[%s6 + $0x4] sm:$0xf]
      %v795 = vld [vmem:[%s6 + $0x8] sm:$0xf]
      %v796 = vld [vmem:[%s6 + $0xc] sm:$0xf]
      %v797 = vld [vmem:[%s6 + $0x10] sm:$0xf]
      %v798 = vld [vmem:[%s6 + $0x14] sm:$0xf]
      %v799 = vld [vmem:[%s6 + $0x18] sm:$0xf]
      %v800 = vld [vmem:[%s6 + $0x1c] sm:$0xf]
      %v801 = vld [vmem:[%s6 + $0x20] sm:$0xf]
      %v802 = vld [vmem:[%s6 + $0x24] sm:$0xf]
      %v803 = vld [vmem:[%s6 + $0x28] sm:$0xf]
      %v804 = vld [vmem:[%s6 + $0x2c] sm:$0xf]
      %v805 = vld [vmem:[%s6 + $0x30] sm:$0xf]
      %v806 = vld [vmem:[%s6 + $0x34] sm:$0xf]
      %v807 = vld [vmem:[%s6 + $0x38] sm:$0xf]
      %v808 = vld [vmem:[%s6 + $0x3c] sm:$0xf]
      %v809 = vld [vmem:[%s7] sm:$0x1]
      %v811 = vlaneseq
      %v812 = vshrl.u32 %v811, 7
      %v813 = vsub.s32 0, %v812
      %v814 = vrot.slane %v809, %v813
      %v832 = vunpack.c.l.b16 %v793
      %v833 = vunpack.c.l.b16 %v794
      %v834 = vunpack.c.l.b16 %v795
      %v835 = vunpack.c.l.b16 %v796
      %v836 = vunpack.c.l.b16 %v797
      %v837 = vunpack.c.l.b16 %v798
      %v838 = vunpack.c.l.b16 %v799
      %v839 = vunpack.c.l.b16 %v800
      %v840 = vunpack.c.l.b16 %v801
      %v841 = vunpack.c.l.b16 %v802
      %v842 = vunpack.c.l.b16 %v803
      %v843 = vunpack.c.l.b16 %v804
      %v844 = vunpack.c.l.b16 %v805
      %v845 = vunpack.c.l.b16 %v806
      %v846 = vunpack.c.l.b16 %v807
      %v847 = vunpack.c.l.b16 %v808
      %v848 = vpack.c.b16 %v833, %v832
      %v849 = vpack.c.b16 %v835, %v834
      %v850 = vpack.c.b16 %v837, %v836
      %v851 = vpack.c.b16 %v839, %v838
      %v852 = vpack.c.b16 %v841, %v840
      %v853 = vpack.c.b16 %v843, %v842
      %v854 = vpack.c.b16 %v845, %v844
      %v855 = vpack.c.b16 %v847, %v846
      %864 = vmatprep.subr.bf16.mxu0 0
      %865 = vmatpush1.bf16.msra.mxu0 %v855
      %866 = vmatprep.subr.bf16.mxu0 0
      %867 = vmatpush1.bf16.msra.mxu0 %v854
      %868 = vmatprep.subr.bf16.mxu0 0
      %869 = vmatpush1.bf16.msra.mxu0 %v853
      %870 = vmatprep.subr.bf16.mxu0 0
      %871 = vmatpush1.bf16.msra.mxu0 %v852
      %872 = vmatprep.subr.bf16.mxu0 0
      %873 = vmatpush1.bf16.msra.mxu0 %v851
      %874 = vmatprep.subr.bf16.mxu0 0
      %875 = vmatpush1.bf16.msra.mxu0 %v850
      %876 = vmatprep.subr.bf16.mxu0 0
      %877 = vmatpush1.bf16.msra.mxu0 %v849
      %878 = vmatprep.subr.bf16.mxu0 0
      %879 = vmatpush1.bf16.msra.mxu0 %v848
      %880 = vmatprep.subr.bf16.mxu0 0
      %881 = vmatpush2.bf16.msra.mxu0 0
      %882 = vmatprep.subr.bf16.mxu0 0
      %883 = vmatpush2.bf16.msra.mxu0 0
      %884 = vmatprep.subr.bf16.mxu0 0
      %885 = vmatpush2.bf16.msra.mxu0 0
      %886 = vmatprep.subr.bf16.mxu0 0
      %887 = vmatpush2.bf16.msra.mxu0 0
      %888 = vmatprep.subr.bf16.mxu0 0
      %889 = vmatpush2.bf16.msra.mxu0 0
      %890 = vmatprep.subr.bf16.mxu0 0
      %891 = vmatpush2.bf16.msra.mxu0 0
      %892 = vmatprep.subr.bf16.mxu0 0
      %893 = vmatpush2.bf16.msra.mxu0 0
      %894 = vmatprep.subr.bf16.mxu0 0
      %895 = vmatpush2.bf16.msra.mxu0 0
      %896 = vmatprep.mubr.bf16.mxu0 0
      %897 = vmatmul.mubr.bf16.gmra.mxu0 %v791
      %v898 = vpop.f32.mrf.mxu0
      %v899 = vadd.f32 %v814, %v898
      %v900 = vpop.f32.mrf.mxu0
      %v901 = vpop.f32.mrf.mxu0
      %v902 = vadd.f32 %v814, %v901
      %v903 = vpop.f32.mrf.mxu0
      %904 = vmatprep.mubr.bf16.mxu0 0
      %905 = vmatmul.mubr.bf16.gmra.mxu0 %v792
      %v906 = vpop.f32.mrf.mxu0
      %v907 = vadd.f32 %v814, %v906
      %v908 = vpop.f32.mrf.mxu0
      %v909 = vpop.f32.mrf.mxu0
      %v910 = vadd.f32 %v814, %v909
      %v911 = vpop.f32.mrf.mxu0
      %912 = vdwg.mxu0
      %v913 = vadd.f32 %v395, %v899
      %v914 = vadd.f32 %v396, %v902
      %v915 = vadd.f32 %v397, %v907
      %v916 = vadd.f32 %v398, %v910
      %v917 = vsel %vm464, %v913, 0.0
      %v918 = vsel %vm465, %v914, 0.0
      %v919 = vsel %vm466, %v915, 0.0
      %v920 = vsel %vm467, %v916, 0.0
      %921 = vst [vmem:[#allocation2 + $0x10] sm:$0xff] %v917
      %922 = vst [vmem:[#allocation2 + $0x18] sm:$0xff] %v918
      %923 = vst [vmem:[#allocation2 + $0x20] sm:$0xff] %v919
      %924 = vst [vmem:[#allocation2 + $0x28] sm:$0xff] %v920
      %v925 = vld [vmem:[#allocation2 + $0x7] sm:$0xff]
      %v926 = vld [vmem:[#allocation2 + $0xf] sm:$0xff]
      %v927 = vld [vmem:[#allocation2 + $0x17] sm:$0xff]
      %v928 = vld [vmem:[#allocation2 + $0x1f] sm:$0xff]
      %s929 = scalar_lea.vmem %s1, 16
      %v930 = vld [vmem:[%s929] sm:$0x1]
      %v931 = vlaneseq
      %v932 = vshrl.u32 %v931, 7
      %v933 = vsub.s32 0, %v932
      %v934 = vrot.slane %v930, %v933
      %v935 = vmul.f32 %v925, %v934
      %v936 = vmul.f32 %v926, %v934
      %v937 = vmul.f32 %v927, %v934
      %v938 = vmul.f32 %v928, %v934
      %v939 = vadd.f32 %v935, 0.0
      %v940 = vadd.f32 %v936, 0.0
      %v941 = vadd.f32 %v937, 0.0
      %v942 = vadd.f32 %v938, 0.0
      %v943 = vld [vmem:[#allocation2 + $0x8] sm:$0xff]
      %v944 = vld [vmem:[#allocation2 + $0x10] sm:$0xff]
      %v945 = vld [vmem:[#allocation2 + $0x18] sm:$0xff]
      %v946 = vld [vmem:[#allocation2 + $0x20] sm:$0xff]
      %v947 = vld [vmem:[%s929 + $0x1] sm:$0x1]
      %v948 = vlaneseq
      %v949 = vshrl.u32 %v948, 7
      %v950 = vsub.s32 0, %v949
      %v951 = vrot.slane %v947, %v950
      %v952 = vmul.f32 %v943, %v951
      %v953 = vmul.f32 %v944, %v951
      %v954 = vmul.f32 %v945, %v951
      %v955 = vmul.f32 %v946, %v951
      %v956 = vadd.f32 %v939, %v952
      %v957 = vadd.f32 %v940, %v953
      %v958 = vadd.f32 %v941, %v954
      %v959 = vadd.f32 %v942, %v955
      %v960 = vld [vmem:[#allocation2 + $0x9] sm:$0xff]
      %v961 = vld [vmem:[#allocation2 + $0x11] sm:$0xff]
      %v962 = vld [vmem:[#allocation2 + $0x19] sm:$0xff]
      %v963 = vld [vmem:[#allocation2 + $0x21] sm:$0xff]
      %v964 = vld [vmem:[%s929 + $0x2] sm:$0x1]
      %v965 = vlaneseq
      %v966 = vshrl.u32 %v965, 7
      %v967 = vsub.s32 0, %v966
      %v968 = vrot.slane %v964, %v967
      %v969 = vmul.f32 %v960, %v968
      %v970 = vmul.f32 %v961, %v968
      %v971 = vmul.f32 %v962, %v968
      %v972 = vmul.f32 %v963, %v968
      %v973 = vadd.f32 %v956, %v969
      %v974 = vadd.f32 %v957, %v970
      %v975 = vadd.f32 %v958, %v971
      %v976 = vadd.f32 %v959, %v972
      %v977 = vld [vmem:[#allocation2 + $0x27] sm:$0xff]
      %v978 = vld [vmem:[%s929 + $0x3] sm:$0x1]
      %v979 = vlaneseq
      %v980 = vshrl.u32 %v979, 7
      %v981 = vsub.s32 0, %v980
      %v982 = vrot.slane %v978, %v981
      %v983 = vmul.f32 %v926, %v982
      %v984 = vmul.f32 %v927, %v982
      %v985 = vmul.f32 %v928, %v982
      %v986 = vmul.f32 %v977, %v982
      %v987 = vadd.f32 %v973, %v983
      %v988 = vadd.f32 %v974, %v984
      %v989 = vadd.f32 %v975, %v985
      %v990 = vadd.f32 %v976, %v986
      %v991 = vld [vmem:[#allocation2 + $0x28] sm:$0xff]
      %v992 = vld [vmem:[%s929 + $0x4] sm:$0x1]
      %v993 = vlaneseq
      %v994 = vshrl.u32 %v993, 7
      %v995 = vsub.s32 0, %v994
      %v996 = vrot.slane %v992, %v995
      %v997 = vmul.f32 %v944, %v996
      %v998 = vmul.f32 %v945, %v996
      %v999 = vmul.f32 %v946, %v996
      %v1000 = vmul.f32 %v991, %v996
      %v1001 = vadd.f32 %v987, %v997
      %v1002 = vadd.f32 %v988, %v998
      %v1003 = vadd.f32 %v989, %v999
      %v1004 = vadd.f32 %v990, %v1000
      %v1005 = vld [vmem:[#allocation2 + $0x29] sm:$0xff]
      %v1006 = vld [vmem:[%s929 + $0x5] sm:$0x1]
      %v1007 = vlaneseq
      %v1008 = vshrl.u32 %v1007, 7
      %v1009 = vsub.s32 0, %v1008
      %v1010 = vrot.slane %v1006, %v1009
      %v1011 = vmul.f32 %v961, %v1010
      %v1012 = vmul.f32 %v962, %v1010
      %v1013 = vmul.f32 %v963, %v1010
      %v1014 = vmul.f32 %v1005, %v1010
      %v1015 = vadd.f32 %v1001, %v1011
      %v1016 = vadd.f32 %v1002, %v1012
      %v1017 = vadd.f32 %v1003, %v1013
      %v1018 = vadd.f32 %v1004, %v1014
      %v1019 = vld [vmem:[#allocation2 + $0x2f] sm:$0xff]
      %v1020 = vld [vmem:[%s929 + $0x6] sm:$0x1]
      %v1021 = vlaneseq
      %v1022 = vshrl.u32 %v1021, 7
      %v1023 = vsub.s32 0, %v1022
      %v1024 = vrot.slane %v1020, %v1023
      %v1025 = vmul.f32 %v927, %v1024
      %v1026 = vmul.f32 %v928, %v1024
      %v1027 = vmul.f32 %v977, %v1024
      %v1028 = vmul.f32 %v1019, %v1024
      %v1029 = vadd.f32 %v1015, %v1025
      %v1030 = vadd.f32 %v1016, %v1026
      %v1031 = vadd.f32 %v1017, %v1027
      %v1032 = vadd.f32 %v1018, %v1028
      %v1033 = vld [vmem:[#allocation2 + $0x30] sm:$0xff]
      %v1034 = vld [vmem:[%s929 + $0x7] sm:$0x1]
      %v1035 = vlaneseq
      %v1036 = vshrl.u32 %v1035, 7
      %v1037 = vsub.s32 0, %v1036
      %v1038 = vrot.slane %v1034, %v1037
      %v1039 = vmul.f32 %v945, %v1038
      %v1040 = vmul.f32 %v946, %v1038
      %v1041 = vmul.f32 %v991, %v1038
      %v1042 = vmul.f32 %v1033, %v1038
      %v1043 = vadd.f32 %v1029, %v1039
      %v1044 = vadd.f32 %v1030, %v1040
      %v1045 = vadd.f32 %v1031, %v1041
      %v1046 = vadd.f32 %v1032, %v1042
      %v1047 = vld [vmem:[#allocation2 + $0x31] sm:$0xff]
      %v1048 = vld [vmem:[%s929 + $0x8] sm:$0x1]
      %v1049 = vlaneseq
      %v1050 = vshrl.u32 %v1049, 7
      %v1051 = vsub.s32 0, %v1050
      %v1052 = vrot.slane %v1048, %v1051
      %v1053 = vmul.f32 %v962, %v1052
      %v1054 = vmul.f32 %v963, %v1052
      %v1055 = vmul.f32 %v1005, %v1052
      %v1056 = vmul.f32 %v1047, %v1052
      %v1057 = vadd.f32 %v1043, %v1053
      %v1058 = vadd.f32 %v1044, %v1054
      %v1059 = vadd.f32 %v1045, %v1055
      %v1060 = vadd.f32 %v1046, %v1056
      %s1061 = scalar_lea.vmem %s2, 1
      %v1062 = vld [vmem:[%s1061] sm:$0x1]
      %v1064 = vlaneseq
      %v1065 = vshrl.u32 %v1064, 7
      %v1066 = vsub.s32 0, %v1065
      %v1067 = vrot.slane %v1062, %v1066
      %v1069 = vadd.f32 %v1057, %v1067
      %v1070 = vadd.f32 %v1058, %v1067
      %v1071 = vadd.f32 %v1059, %v1067
      %v1072 = vadd.f32 %v1060, %v1067
      %v1073 = vmul.f32 %v1069, %v1069
      %v1074 = vmul.f32 %v1070, %v1070
      %v1075 = vmul.f32 %v1071, %v1071
      %v1076 = vmul.f32 %v1072, %v1072
      %1077 = vadd.xlane.f32.xlu0 %v1073
      %v1078 = vpop.xlane.xlu0 %1077
      %1079 = vadd.xlane.f32.xlu0 %v1074
      %v1080 = vpop.xlane.xlu0 %1079
      %1081 = vadd.xlane.f32.xlu0 %v1075
      %v1082 = vpop.xlane.xlu0 %1081
      %1083 = vadd.xlane.f32.xlu0 %v1076
      %v1084 = vpop.xlane.xlu0 %1083
      %v1085 = vmul.f32 %v1078, 0.03125
      %v1086 = vmul.f32 %v1080, 0.03125
      %v1087 = vmul.f32 %v1082, 0.03125
      %v1088 = vmul.f32 %v1084, 0.03125
      %v1089 = vadd.f32 %v1085, 1e-05
      %v1090 = vadd.f32 %v1086, 1e-05
      %v1091 = vadd.f32 %v1087, 1e-05
      %v1092 = vadd.f32 %v1088, 1e-05
      %v1093 = vrsqrt.pop %v1089
      %v1094 = vrsqrt.pop %v1090
      %v1095 = vrsqrt.pop %v1091
      %v1096 = vrsqrt.pop %v1092
      %v1097 = vmul.f32 %v1069, %v1093
      %v1098 = vmul.f32 %v1070, %v1094
      %v1099 = vmul.f32 %v1071, %v1095
      %v1100 = vmul.f32 %v1072, %v1096
      %s1101 = scalar_lea.vmem %s3, 1
      %v1102 = vld [vmem:[%s1101] sm:$0x1]
      %v1104 = vlaneseq
      %v1105 = vshrl.u32 %v1104, 7
      %v1106 = vsub.s32 0, %v1105
      %v1107 = vrot.slane %v1102, %v1106
      %v1109 = vmul.f32 %v1097, %v1107
      %v1110 = vmul.f32 %v1098, %v1107
      %v1111 = vmul.f32 %v1099, %v1107
      %v1112 = vmul.f32 %v1100, %v1107
      %v1113 = vpack.c.bf16 %v1110, %v1109
      %v1114 = vpack.c.bf16 %v1112, %v1111
      %s1115 = scalar_lea.vmem %s4, 64
      %v1116 = vld [vmem:[%s1115] sm:$0xf]
      %v1117 = vld [vmem:[%s1115 + $0x4] sm:$0xf]
      %v1118 = vld [vmem:[%s1115 + $0x8] sm:$0xf]
      %v1119 = vld [vmem:[%s1115 + $0xc] sm:$0xf]
      %v1120 = vld [vmem:[%s1115 + $0x10] sm:$0xf]
      %v1121 = vld [vmem:[%s1115 + $0x14] sm:$0xf]
      %v1122 = vld [vmem:[%s1115 + $0x18] sm:$0xf]
      %v1123 = vld [vmem:[%s1115 + $0x1c] sm:$0xf]
      %v1124 = vld [vmem:[%s1115 + $0x20] sm:$0xf]
      %v1125 = vld [vmem:[%s1115 + $0x24] sm:$0xf]
      %v1126 = vld [vmem:[%s1115 + $0x28] sm:$0xf]
      %v1127 = vld [vmem:[%s1115 + $0x2c] sm:$0xf]
      %v1128 = vld [vmem:[%s1115 + $0x30] sm:$0xf]
      %v1129 = vld [vmem:[%s1115 + $0x34] sm:$0xf]
      %v1130 = vld [vmem:[%s1115 + $0x38] sm:$0xf]
      %v1131 = vld [vmem:[%s1115 + $0x3c] sm:$0xf]
      %s1132 = scalar_lea.vmem %s5, 1
      %v1133 = vld [vmem:[%s1132] sm:$0x1]
      %v1135 = vlaneseq
      %v1136 = vshrl.u32 %v1135, 7
      %v1137 = vsub.s32 0, %v1136
      %v1138 = vrot.slane %v1133, %v1137
      %v1156 = vunpack.c.l.b16 %v1116
      %v1157 = vunpack.c.l.b16 %v1117
      %v1158 = vunpack.c.l.b16 %v1118
      %v1159 = vunpack.c.l.b16 %v1119
      %v1160 = vunpack.c.l.b16 %v1120
      %v1161 = vunpack.c.l.b16 %v1121
      %v1162 = vunpack.c.l.b16 %v1122
      %v1163 = vunpack.c.l.b16 %v1123
      %v1164 = vunpack.c.l.b16 %v1124
      %v1165 = vunpack.c.l.b16 %v1125
      %v1166 = vunpack.c.l.b16 %v1126
      %v1167 = vunpack.c.l.b16 %v1127
      %v1168 = vunpack.c.l.b16 %v1128
      %v1169 = vunpack.c.l.b16 %v1129
      %v1170 = vunpack.c.l.b16 %v1130
      %v1171 = vunpack.c.l.b16 %v1131
      %v1172 = vpack.c.b16 %v1157, %v1156
      %v1173 = vpack.c.b16 %v1159, %v1158
      %v1174 = vpack.c.b16 %v1161, %v1160
      %v1175 = vpack.c.b16 %v1163, %v1162
      %v1176 = vpack.c.b16 %v1165, %v1164
      %v1177 = vpack.c.b16 %v1167, %v1166
      %v1178 = vpack.c.b16 %v1169, %v1168
      %v1179 = vpack.c.b16 %v1171, %v1170
      %1188 = vmatprep.subr.bf16.mxu0 0
      %1189 = vmatpush1.bf16.msra.mxu0 %v1179
      %1190 = vmatprep.subr.bf16.mxu0 0
      %1191 = vmatpush1.bf16.msra.mxu0 %v1178
      %1192 = vmatprep.subr.bf16.mxu0 0
      %1193 = vmatpush1.bf16.msra.mxu0 %v1177
      %1194 = vmatprep.subr.bf16.mxu0 0
      %1195 = vmatpush1.bf16.msra.mxu0 %v1176
      %1196 = vmatprep.subr.bf16.mxu0 0
      %1197 = vmatpush1.bf16.msra.mxu0 %v1175
      %1198 = vmatprep.subr.bf16.mxu0 0
      %1199 = vmatpush1.bf16.msra.mxu0 %v1174
      %1200 = vmatprep.subr.bf16.mxu0 0
      %1201 = vmatpush1.bf16.msra.mxu0 %v1173
      %1202 = vmatprep.subr.bf16.mxu0 0
      %1203 = vmatpush1.bf16.msra.mxu0 %v1172
      %1204 = vmatprep.subr.bf16.mxu0 0
      %1205 = vmatpush2.bf16.msra.mxu0 0
      %1206 = vmatprep.subr.bf16.mxu0 0
      %1207 = vmatpush2.bf16.msra.mxu0 0
      %1208 = vmatprep.subr.bf16.mxu0 0
      %1209 = vmatpush2.bf16.msra.mxu0 0
      %1210 = vmatprep.subr.bf16.mxu0 0
      %1211 = vmatpush2.bf16.msra.mxu0 0
      %1212 = vmatprep.subr.bf16.mxu0 0
      %1213 = vmatpush2.bf16.msra.mxu0 0
      %1214 = vmatprep.subr.bf16.mxu0 0
      %1215 = vmatpush2.bf16.msra.mxu0 0
      %1216 = vmatprep.subr.bf16.mxu0 0
      %1217 = vmatpush2.bf16.msra.mxu0 0
      %1218 = vmatprep.subr.bf16.mxu0 0
      %1219 = vmatpush2.bf16.msra.mxu0 0
      %1220 = vmatprep.mubr.bf16.mxu0 0
      %1221 = vmatmul.mubr.bf16.gmra.mxu0 %v1113
      %v1222 = vpop.f32.mrf.mxu0
      %v1223 = vadd.f32 %v1138, %v1222
      %v1224 = vpop.f32.mrf.mxu0
      %v1225 = vpop.f32.mrf.mxu0
      %v1226 = vadd.f32 %v1138, %v1225
      %v1227 = vpop.f32.mrf.mxu0
      %1228 = vmatprep.mubr.bf16.mxu0 0
      %1229 = vmatmul.mubr.bf16.gmra.mxu0 %v1114
      %v1230 = vpop.f32.mrf.mxu0
      %v1231 = vadd.f32 %v1138, %v1230
      %v1232 = vpop.f32.mrf.mxu0
      %v1233 = vpop.f32.mrf.mxu0
      %v1234 = vadd.f32 %v1138, %v1233
      %v1235 = vpop.f32.mrf.mxu0
      %1236 = vdwg.mxu0
      %v1237 = vmax.f32 %v1223, 0.0
      %v1238 = vmax.f32 %v1226, 0.0
      %v1239 = vmax.f32 %v1231, 0.0
      %v1240 = vmax.f32 %v1234, 0.0
      %v1241 = vmul.f32 %v1237, %v1237
      %v1242 = vmul.f32 %v1238, %v1238
      %v1243 = vmul.f32 %v1239, %v1239
      %v1244 = vmul.f32 %v1240, %v1240
      %v1245 = vpack.c.bf16 %v1242, %v1241
      %v1246 = vpack.c.bf16 %v1244, %v1243
      %s1247 = scalar_lea.vmem %s6, 64
      %v1248 = vld [vmem:[%s1247] sm:$0xf]
      %v1249 = vld [vmem:[%s1247 + $0x4] sm:$0xf]
      %v1250 = vld [vmem:[%s1247 + $0x8] sm:$0xf]
      %v1251 = vld [vmem:[%s1247 + $0xc] sm:$0xf]
      %v1252 = vld [vmem:[%s1247 + $0x10] sm:$0xf]
      %v1253 = vld [vmem:[%s1247 + $0x14] sm:$0xf]
      %v1254 = vld [vmem:[%s1247 + $0x18] sm:$0xf]
      %v1255 = vld [vmem:[%s1247 + $0x1c] sm:$0xf]
      %v1256 = vld [vmem:[%s1247 + $0x20] sm:$0xf]
      %v1257 = vld [vmem:[%s1247 + $0x24] sm:$0xf]
      %v1258 = vld [vmem:[%s1247 + $0x28] sm:$0xf]
      %v1259 = vld [vmem:[%s1247 + $0x2c] sm:$0xf]
      %v1260 = vld [vmem:[%s1247 + $0x30] sm:$0xf]
      %v1261 = vld [vmem:[%s1247 + $0x34] sm:$0xf]
      %v1262 = vld [vmem:[%s1247 + $0x38] sm:$0xf]
      %v1263 = vld [vmem:[%s1247 + $0x3c] sm:$0xf]
      %s1264 = scalar_lea.vmem %s7, 1
      %v1265 = vld [vmem:[%s1264] sm:$0x1]
      %v1267 = vlaneseq
      %v1268 = vshrl.u32 %v1267, 7
      %v1269 = vsub.s32 0, %v1268
      %v1270 = vrot.slane %v1265, %v1269
      %v1288 = vunpack.c.l.b16 %v1248
      %v1289 = vunpack.c.l.b16 %v1249
      %v1290 = vunpack.c.l.b16 %v1250
      %v1291 = vunpack.c.l.b16 %v1251
      %v1292 = vunpack.c.l.b16 %v1252
      %v1293 = vunpack.c.l.b16 %v1253
      %v1294 = vunpack.c.l.b16 %v1254
      %v1295 = vunpack.c.l.b16 %v1255
      %v1296 = vunpack.c.l.b16 %v1256
      %v1297 = vunpack.c.l.b16 %v1257
      %v1298 = vunpack.c.l.b16 %v1258
      %v1299 = vunpack.c.l.b16 %v1259
      %v1300 = vunpack.c.l.b16 %v1260
      %v1301 = vunpack.c.l.b16 %v1261
      %v1302 = vunpack.c.l.b16 %v1262
      %v1303 = vunpack.c.l.b16 %v1263
      %v1304 = vpack.c.b16 %v1289, %v1288
      %v1305 = vpack.c.b16 %v1291, %v1290
      %v1306 = vpack.c.b16 %v1293, %v1292
      %v1307 = vpack.c.b16 %v1295, %v1294
      %v1308 = vpack.c.b16 %v1297, %v1296
      %v1309 = vpack.c.b16 %v1299, %v1298
      %v1310 = vpack.c.b16 %v1301, %v1300
      %v1311 = vpack.c.b16 %v1303, %v1302
      %1320 = vmatprep.subr.bf16.mxu0 0
      %1321 = vmatpush1.bf16.msra.mxu0 %v1311
      %1322 = vmatprep.subr.bf16.mxu0 0
      %1323 = vmatpush1.bf16.msra.mxu0 %v1310
      %1324 = vmatprep.subr.bf16.mxu0 0
      %1325 = vmatpush1.bf16.msra.mxu0 %v1309
      %1326 = vmatprep.subr.bf16.mxu0 0
      %1327 = vmatpush1.bf16.msra.mxu0 %v1308
      %1328 = vmatprep.subr.bf16.mxu0 0
      %1329 = vmatpush1.bf16.msra.mxu0 %v1307
      %1330 = vmatprep.subr.bf16.mxu0 0
      %1331 = vmatpush1.bf16.msra.mxu0 %v1306
      %1332 = vmatprep.subr.bf16.mxu0 0
      %1333 = vmatpush1.bf16.msra.mxu0 %v1305
      %1334 = vmatprep.subr.bf16.mxu0 0
      %1335 = vmatpush1.bf16.msra.mxu0 %v1304
      %1336 = vmatprep.subr.bf16.mxu0 0
      %1337 = vmatpush2.bf16.msra.mxu0 0
      %1338 = vmatprep.subr.bf16.mxu0 0
      %1339 = vmatpush2.bf16.msra.mxu0 0
      %1340 = vmatprep.subr.bf16.mxu0 0
      %1341 = vmatpush2.bf16.msra.mxu0 0
      %1342 = vmatprep.subr.bf16.mxu0 0
      %1343 = vmatpush2.bf16.msra.mxu0 0
      %1344 = vmatprep.subr.bf16.mxu0 0
      %1345 = vmatpush2.bf16.msra.mxu0 0
      %1346 = vmatprep.subr.bf16.mxu0 0
      %1347 = vmatpush2.bf16.msra.mxu0 0
      %1348 = vmatprep.subr.bf16.mxu0 0
      %1349 = vmatpush2.bf16.msra.mxu0 0
      %1350 = vmatprep.subr.bf16.mxu0 0
      %1351 = vmatpush2.bf16.msra.mxu0 0
      %1352 = vmatprep.mubr.bf16.mxu0 0
      %1353 = vmatmul.mubr.bf16.gmra.mxu0 %v1245
      %v1354 = vpop.f32.mrf.mxu0
      %v1355 = vadd.f32 %v1270, %v1354
      %v1356 = vpop.f32.mrf.mxu0
      %v1357 = vpop.f32.mrf.mxu0
      %v1358 = vadd.f32 %v1270, %v1357
      %v1359 = vpop.f32.mrf.mxu0
      %1360 = vmatprep.mubr.bf16.mxu0 0
      %1361 = vmatmul.mubr.bf16.gmra.mxu0 %v1246
      %v1362 = vpop.f32.mrf.mxu0
      %v1363 = vadd.f32 %v1270, %v1362
      %v1364 = vpop.f32.mrf.mxu0
      %v1365 = vpop.f32.mrf.mxu0
      %v1366 = vadd.f32 %v1270, %v1365
      %v1367 = vpop.f32.mrf.mxu0
      %1368 = vdwg.mxu0
      %v1369 = vadd.f32 %v913, %v1355
      %v1370 = vadd.f32 %v914, %v1358
      %v1371 = vadd.f32 %v915, %v1363
      %v1372 = vadd.f32 %v916, %v1366
      %v1373 = vpack.c.bf16 %v1370, %v1369
      %v1374 = vpack.c.bf16 %v1372, %v1371
      %v1375 = vld [vmem:[%s8] sm:$0xf]
      %v1376 = vld [vmem:[%s8 + $0x4] sm:$0xf]
      %v1379 = vunpack.c.l.b16 %v1375
      %v1380 = vunpack.c.l.b16 %v1376
      %v1381 = vpack.c.b16 %v1380, %v1379
      %vm1382 = vcmask 261120
      %v1384 = vsel %vm1382, %v1381, 0
      %1386 = vmatprep.subr.bf16.mxu0 0
      %1387 = vmatpush1.bf16.msra.mxu0 0
      %1388 = vmatprep.subr.bf16.mxu0 0
      %1389 = vmatpush1.bf16.msra.mxu0 0
      %1390 = vmatprep.subr.bf16.mxu0 0
      %1391 = vmatpush1.bf16.msra.mxu0 0
      %1392 = vmatprep.subr.bf16.mxu0 0
      %1393 = vmatpush1.bf16.msra.mxu0 0
      %1394 = vmatprep.subr.bf16.mxu0 0
      %1395 = vmatpush1.bf16.msra.mxu0 0
      %1396 = vmatprep.subr.bf16.mxu0 0
      %1397 = vmatpush1.bf16.msra.mxu0 0
      %1398 = vmatprep.subr.bf16.mxu0 0
      %1399 = vmatpush1.bf16.msra.mxu0 %v1374
      %1400 = vmatprep.subr.bf16.mxu0 0
      %1401 = vmatpush1.bf16.msra.mxu0 %v1373
      %1402 = vmatprep.subr.bf16.mxu0 0
      %1403 = vmatpush2.bf16.msra.mxu0 0
      %1404 = vmatprep.subr.bf16.mxu0 0
      %1405 = vmatpush2.bf16.msra.mxu0 0
      %1406 = vmatprep.subr.bf16.mxu0 0
      %1407 = vmatpush2.bf16.msra.mxu0 0
      %1408 = vmatprep.subr.bf16.mxu0 0
      %1409 = vmatpush2.bf16.msra.mxu0 0
      %1410 = vmatprep.subr.bf16.mxu0 0
      %1411 = vmatpush2.bf16.msra.mxu0 0
      %1412 = vmatprep.subr.bf16.mxu0 0
      %1413 = vmatpush2.bf16.msra.mxu0 0
      %1414 = vmatprep.subr.bf16.mxu0 0
      %1415 = vmatpush2.bf16.msra.mxu0 0
      %1416 = vmatprep.subr.bf16.mxu0 0
      %1417 = vmatpush2.bf16.msra.mxu0 0
      %1418 = vmatprep.mubr.bf16.mxu0 0
      %1419 = vmatmul.mubr.bf16.gmra.mxu0 %v1384
      %v1420 = vpop.f32.mrf.mxu0
      %v1421 = vadd.f32 0.0, %v1420
      %v1422 = vpop.f32.mrf.mxu0
      %v1423 = vpop.f32.mrf.mxu0
      %v1424 = vadd.f32 0.0, %v1423
      %v1425 = vpop.f32.mrf.mxu0
      %1426 = vdwg.mxu0
      %v1427 = vpack.c.bf16 %v1424, %v1421
      %v1428 = vld [vmem:[%s9] sm:$0xf]
      %v1429 = vld [vmem:[%s9 + $0x4] sm:$0xf]
      %v1430 = vld [vmem:[%s9 + $0x8] sm:$0xf]
      %v1431 = vld [vmem:[%s9 + $0xc] sm:$0xf]
      %v1432 = vld [vmem:[%s9 + $0x10] sm:$0xf]
      %v1433 = vld [vmem:[%s9 + $0x14] sm:$0xf]
      %v1434 = vld [vmem:[%s9 + $0x18] sm:$0xf]
      %v1435 = vld [vmem:[%s9 + $0x1c] sm:$0xf]
      %v1436 = vld [vmem:[%s9 + $0x20] sm:$0xf]
      %v1437 = vld [vmem:[%s9 + $0x24] sm:$0xf]
      %v1438 = vld [vmem:[%s9 + $0x28] sm:$0xf]
      %v1439 = vld [vmem:[%s9 + $0x2c] sm:$0xf]
      %v1440 = vld [vmem:[%s9 + $0x30] sm:$0xf]
      %v1441 = vld [vmem:[%s9 + $0x34] sm:$0xf]
      %v1442 = vld [vmem:[%s9 + $0x38] sm:$0xf]
      %v1443 = vld [vmem:[%s9 + $0x3c] sm:$0xf]
      %s1444 = scalar_lea.vmem %s8, 8
      %v1445 = vld [vmem:[%s1444] sm:$0xf]
      %v1446 = vld [vmem:[%s1444 + $0x4] sm:$0xf]
      %v1449 = vunpack.c.l.b16 %v1445
      %v1450 = vunpack.c.l.b16 %v1446
      %v1451 = vpack.c.b16 %v1450, %v1449
      %v1453 = vsel %vm1382, %v1451, 0
      %1455 = vmatprep.subr.bf16.mxu0 0
      %1456 = vmatpush1.bf16.msra.mxu0 0
      %1457 = vmatprep.subr.bf16.mxu0 0
      %1458 = vmatpush1.bf16.msra.mxu0 0
      %1459 = vmatprep.subr.bf16.mxu0 0
      %1460 = vmatpush1.bf16.msra.mxu0 0
      %1461 = vmatprep.subr.bf16.mxu0 0
      %1462 = vmatpush1.bf16.msra.mxu0 0
      %1463 = vmatprep.subr.bf16.mxu0 0
      %1464 = vmatpush1.bf16.msra.mxu0 0
      %1465 = vmatprep.subr.bf16.mxu0 0
      %1466 = vmatpush1.bf16.msra.mxu0 0
      %1467 = vmatprep.subr.bf16.mxu0 0
      %1468 = vmatpush1.bf16.msra.mxu0 %v1374
      %1469 = vmatprep.subr.bf16.mxu0 0
      %1470 = vmatpush1.bf16.msra.mxu0 %v1373
      %1471 = vmatprep.subr.bf16.mxu0 0
      %1472 = vmatpush2.bf16.msra.mxu0 0
      %1473 = vmatprep.subr.bf16.mxu0 0
      %1474 = vmatpush2.bf16.msra.mxu0 0
      %1475 = vmatprep.subr.bf16.mxu0 0
      %1476 = vmatpush2.bf16.msra.mxu0 0
      %1477 = vmatprep.subr.bf16.mxu0 0
      %1478 = vmatpush2.bf16.msra.mxu0 0
      %1479 = vmatprep.subr.bf16.mxu0 0
      %1480 = vmatpush2.bf16.msra.mxu0 0
      %1481 = vmatprep.subr.bf16.mxu0 0
      %1482 = vmatpush2.bf16.msra.mxu0 0
      %1483 = vmatprep.subr.bf16.mxu0 0
      %1484 = vmatpush2.bf16.msra.mxu0 0
      %1485 = vmatprep.subr.bf16.mxu0 0
      %1486 = vmatpush2.bf16.msra.mxu0 0
      %1487 = vmatprep.mubr.bf16.mxu0 0
      %1488 = vmatmul.mubr.bf16.gmra.mxu0 %v1453
      %v1489 = vpop.f32.mrf.mxu0
      %v1490 = vadd.f32 0.0, %v1489
      %v1491 = vpop.f32.mrf.mxu0
      %v1492 = vpop.f32.mrf.mxu0
      %v1493 = vadd.f32 0.0, %v1492
      %v1494 = vpop.f32.mrf.mxu0
      %1495 = vdwg.mxu0
      %v1496 = vpack.c.bf16 %v1493, %v1490
      %s1497 = scalar_lea.vmem %s9, 64
      %v1498 = vld [vmem:[%s1497] sm:$0xf]
      %v1499 = vld [vmem:[%s1497 + $0x4] sm:$0xf]
      %v1500 = vld [vmem:[%s1497 + $0x8] sm:$0xf]
      %v1501 = vld [vmem:[%s1497 + $0xc] sm:$0xf]
      %v1502 = vld [vmem:[%s1497 + $0x10] sm:$0xf]
      %v1503 = vld [vmem:[%s1497 + $0x14] sm:$0xf]
      %v1504 = vld [vmem:[%s1497 + $0x18] sm:$0xf]
      %v1505 = vld [vmem:[%s1497 + $0x1c] sm:$0xf]
      %v1506 = vld [vmem:[%s1497 + $0x20] sm:$0xf]
      %v1507 = vld [vmem:[%s1497 + $0x24] sm:$0xf]
      %v1508 = vld [vmem:[%s1497 + $0x28] sm:$0xf]
      %v1509 = vld [vmem:[%s1497 + $0x2c] sm:$0xf]
      %v1510 = vld [vmem:[%s1497 + $0x30] sm:$0xf]
      %v1511 = vld [vmem:[%s1497 + $0x34] sm:$0xf]
      %v1512 = vld [vmem:[%s1497 + $0x38] sm:$0xf]
      %v1513 = vld [vmem:[%s1497 + $0x3c] sm:$0xf]
      %v1530 = vunpack.c.l.b16 %v1498
      %v1531 = vunpack.c.l.b16 %v1499
      %v1532 = vunpack.c.l.b16 %v1500
      %v1533 = vunpack.c.l.b16 %v1501
      %v1534 = vunpack.c.l.b16 %v1502
      %v1535 = vunpack.c.l.b16 %v1503
      %v1536 = vunpack.c.l.b16 %v1504
      %v1537 = vunpack.c.l.b16 %v1505
      %v1538 = vunpack.c.l.b16 %v1506
      %v1539 = vunpack.c.l.b16 %v1507
      %v1540 = vunpack.c.l.b16 %v1508
      %v1541 = vunpack.c.l.b16 %v1509
      %v1542 = vunpack.c.l.b16 %v1510
      %v1543 = vunpack.c.l.b16 %v1511
      %v1544 = vunpack.c.l.b16 %v1512
      %v1545 = vunpack.c.l.b16 %v1513
      %v1546 = vpack.c.b16 %v1531, %v1530
      %v1547 = vpack.c.b16 %v1533, %v1532
      %v1548 = vpack.c.b16 %v1535, %v1534
      %v1549 = vpack.c.b16 %v1537, %v1536
      %v1550 = vpack.c.b16 %v1539, %v1538
      %v1551 = vpack.c.b16 %v1541, %v1540
      %v1552 = vpack.c.b16 %v1543, %v1542
      %v1553 = vpack.c.b16 %v1545, %v1544
      %1562 = vmatprep.subr.bf16.mxu0 0
      %1563 = vmatpush1.bf16.msra.mxu0 %v1553
      %1564 = vmatprep.subr.bf16.mxu0 0
      %1565 = vmatpush1.bf16.msra.mxu0 %v1552
      %1566 = vmatprep.subr.bf16.mxu0 0
      %1567 = vmatpush1.bf16.msra.mxu0 %v1551
      %1568 = vmatprep.subr.bf16.mxu0 0
      %1569 = vmatpush1.bf16.msra.mxu0 %v1550
      %1570 = vmatprep.subr.bf16.mxu0 0
      %1571 = vmatpush1.bf16.msra.mxu0 %v1549
      %1572 = vmatprep.subr.bf16.mxu0 0
      %1573 = vmatpush1.bf16.msra.mxu0 %v1548
      %1574 = vmatprep.subr.bf16.mxu0 0
      %1575 = vmatpush1.bf16.msra.mxu0 %v1547
      %1576 = vmatprep.subr.bf16.mxu0 0
      %1577 = vmatpush1.bf16.msra.mxu0 %v1546
      %1578 = vmatprep.subr.bf16.mxu0 0
      %1579 = vmatpush2.bf16.msra.mxu0 0
      %1580 = vmatprep.subr.bf16.mxu0 0
      %1581 = vmatpush2.bf16.msra.mxu0 0
      %1582 = vmatprep.subr.bf16.mxu0 0
      %1583 = vmatpush2.bf16.msra.mxu0 0
      %1584 = vmatprep.subr.bf16.mxu0 0
      %1585 = vmatpush2.bf16.msra.mxu0 0
      %1586 = vmatprep.subr.bf16.mxu0 0
      %1587 = vmatpush2.bf16.msra.mxu0 0
      %1588 = vmatprep.subr.bf16.mxu0 0
      %1589 = vmatpush2.bf16.msra.mxu0 0
      %1590 = vmatprep.subr.bf16.mxu0 0
      %1591 = vmatpush2.bf16.msra.mxu0 0
      %1592 = vmatprep.subr.bf16.mxu0 0
      %1593 = vmatpush2.bf16.msra.mxu0 0
      %1594 = vmatprep.mubr.bf16.mxu0 0
      %1595 = vmatmul.mubr.bf16.gmra.mxu0 %v1496
      %v1596 = vpop.f32.mrf.mxu0
      %v1597 = vadd.f32 0.0, %v1596
      %v1598 = vpop.f32.mrf.mxu0
      %v1599 = vpop.f32.mrf.mxu0
      %v1600 = vadd.f32 0.0, %v1599
      %v1601 = vpop.f32.mrf.mxu0
      %1602 = vdwg.mxu0
      %v1619 = vunpack.c.l.b16 %v1428
      %v1620 = vunpack.c.l.b16 %v1429
      %v1621 = vunpack.c.l.b16 %v1430
      %v1622 = vunpack.c.l.b16 %v1431
      %v1623 = vunpack.c.l.b16 %v1432
      %v1624 = vunpack.c.l.b16 %v1433
      %v1625 = vunpack.c.l.b16 %v1434
      %v1626 = vunpack.c.l.b16 %v1435
      %v1627 = vunpack.c.l.b16 %v1436
      %v1628 = vunpack.c.l.b16 %v1437
      %v1629 = vunpack.c.l.b16 %v1438
      %v1630 = vunpack.c.l.b16 %v1439
      %v1631 = vunpack.c.l.b16 %v1440
      %v1632 = vunpack.c.l.b16 %v1441
      %v1633 = vunpack.c.l.b16 %v1442
      %v1634 = vunpack.c.l.b16 %v1443
      %v1635 = vpack.c.b16 %v1620, %v1619
      %v1636 = vpack.c.b16 %v1622, %v1621
      %v1637 = vpack.c.b16 %v1624, %v1623
      %v1638 = vpack.c.b16 %v1626, %v1625
      %v1639 = vpack.c.b16 %v1628, %v1627
      %v1640 = vpack.c.b16 %v1630, %v1629
      %v1641 = vpack.c.b16 %v1632, %v1631
      %v1642 = vpack.c.b16 %v1634, %v1633
      %1651 = vmatprep.subr.bf16.mxu0 0
      %1652 = vmatpush1.bf16.msra.mxu0 %v1642
      %1653 = vmatprep.subr.bf16.mxu0 0
      %1654 = vmatpush1.bf16.msra.mxu0 %v1641
      %1655 = vmatprep.subr.bf16.mxu0 0
      %1656 = vmatpush1.bf16.msra.mxu0 %v1640
      %1657 = vmatprep.subr.bf16.mxu0 0
      %1658 = vmatpush1.bf16.msra.mxu0 %v1639
      %1659 = vmatprep.subr.bf16.mxu0 0
      %1660 = vmatpush1.bf16.msra.mxu0 %v1638
      %1661 = vmatprep.subr.bf16.mxu0 0
      %1662 = vmatpush1.bf16.msra.mxu0 %v1637
      %1663 = vmatprep.subr.bf16.mxu0 0
      %1664 = vmatpush1.bf16.msra.mxu0 %v1636
      %1665 = vmatprep.subr.bf16.mxu0 0
      %1666 = vmatpush1.bf16.msra.mxu0 %v1635
      %1667 = vmatprep.subr.bf16.mxu0 0
      %1668 = vmatpush2.bf16.msra.mxu0 0
      %1669 = vmatprep.subr.bf16.mxu0 0
      %1670 = vmatpush2.bf16.msra.mxu0 0
      %1671 = vmatprep.subr.bf16.mxu0 0
      %1672 = vmatpush2.bf16.msra.mxu0 0
      %1673 = vmatprep.subr.bf16.mxu0 0
      %1674 = vmatpush2.bf16.msra.mxu0 0
      %1675 = vmatprep.subr.bf16.mxu0 0
      %1676 = vmatpush2.bf16.msra.mxu0 0
      %1677 = vmatprep.subr.bf16.mxu0 0
      %1678 = vmatpush2.bf16.msra.mxu0 0
      %1679 = vmatprep.subr.bf16.mxu0 0
      %1680 = vmatpush2.bf16.msra.mxu0 0
      %1681 = vmatprep.subr.bf16.mxu0 0
      %1682 = vmatpush2.bf16.msra.mxu0 0
      %1683 = vmatprep.mubr.bf16.mxu0 0
      %1684 = vmatmul.mubr.bf16.gmra.mxu0 %v1427
      %v1685 = vpop.f32.mrf.mxu0
      %v1686 = vadd.f32 %v1597, %v1685
      %v1687 = vpop.f32.mrf.mxu0
      %v1688 = vpop.f32.mrf.mxu0
      %v1689 = vadd.f32 %v1600, %v1688
      %v1690 = vpop.f32.mrf.mxu0
      %1691 = vdwg.mxu0
      %s1692 = scalar_lea.vmem %s8, 16
      %v1693 = vld [vmem:[%s1692] sm:$0xf]
      %v1694 = vld [vmem:[%s1692 + $0x4] sm:$0xf]
      %v1697 = vunpack.c.l.b16 %v1693
      %v1698 = vunpack.c.l.b16 %v1694
      %v1699 = vpack.c.b16 %v1698, %v1697
      %v1701 = vsel %vm1382, %v1699, 0
      %1703 = vmatprep.subr.bf16.mxu0 0
      %1704 = vmatpush1.bf16.msra.mxu0 0
      %1705 = vmatprep.subr.bf16.mxu0 0
      %1706 = vmatpush1.bf16.msra.mxu0 0
      %1707 = vmatprep.subr.bf16.mxu0 0
      %1708 = vmatpush1.bf16.msra.mxu0 0
      %1709 = vmatprep.subr.bf16.mxu0 0
      %1710 = vmatpush1.bf16.msra.mxu0 0
      %1711 = vmatprep.subr.bf16.mxu0 0
      %1712 = vmatpush1.bf16.msra.mxu0 0
      %1713 = vmatprep.subr.bf16.mxu0 0
      %1714 = vmatpush1.bf16.msra.mxu0 0
      %1715 = vmatprep.subr.bf16.mxu0 0
      %1716 = vmatpush1.bf16.msra.mxu0 %v1374
      %1717 = vmatprep.subr.bf16.mxu0 0
      %1718 = vmatpush1.bf16.msra.mxu0 %v1373
      %1719 = vmatprep.subr.bf16.mxu0 0
      %1720 = vmatpush2.bf16.msra.mxu0 0
      %1721 = vmatprep.subr.bf16.mxu0 0
      %1722 = vmatpush2.bf16.msra.mxu0 0
      %1723 = vmatprep.subr.bf16.mxu0 0
      %1724 = vmatpush2.bf16.msra.mxu0 0
      %1725 = vmatprep.subr.bf16.mxu0 0
      %1726 = vmatpush2.bf16.msra.mxu0 0
      %1727 = vmatprep.subr.bf16.mxu0 0
      %1728 = vmatpush2.bf16.msra.mxu0 0
      %1729 = vmatprep.subr.bf16.mxu0 0
      %1730 = vmatpush2.bf16.msra.mxu0 0
      %1731 = vmatprep.subr.bf16.mxu0 0
      %1732 = vmatpush2.bf16.msra.mxu0 0
      %1733 = vmatprep.subr.bf16.mxu0 0
      %1734 = vmatpush2.bf16.msra.mxu0 0
      %1735 = vmatprep.mubr.bf16.mxu0 0
      %1736 = vmatmul.mubr.bf16.gmra.mxu0 %v1701
      %v1737 = vpop.f32.mrf.mxu0
      %v1738 = vadd.f32 0.0, %v1737
      %v1739 = vpop.f32.mrf.mxu0
      %v1740 = vpop.f32.mrf.mxu0
      %v1741 = vadd.f32 0.0, %v1740
      %v1742 = vpop.f32.mrf.mxu0
      %1743 = vdwg.mxu0
      %v1744 = vpack.c.bf16 %v1741, %v1738
      %s1745 = scalar_lea.vmem %s9, 128
      %v1746 = vld [vmem:[%s1745] sm:$0xf]
      %v1747 = vld [vmem:[%s1745 + $0x4] sm:$0xf]
      %v1748 = vld [vmem:[%s1745 + $0x8] sm:$0xf]
      %v1749 = vld [vmem:[%s1745 + $0xc] sm:$0xf]
      %v1750 = vld [vmem:[%s1745 + $0x10] sm:$0xf]
      %v1751 = vld [vmem:[%s1745 + $0x14] sm:$0xf]
      %v1752 = vld [vmem:[%s1745 + $0x18] sm:$0xf]
      %v1753 = vld [vmem:[%s1745 + $0x1c] sm:$0xf]
      %v1754 = vld [vmem:[%s1745 + $0x20] sm:$0xf]
      %v1755 = vld [vmem:[%s1745 + $0x24] sm:$0xf]
      %v1756 = vld [vmem:[%s1745 + $0x28] sm:$0xf]
      %v1757 = vld [vmem:[%s1745 + $0x2c] sm:$0xf]
      %v1758 = vld [vmem:[%s1745 + $0x30] sm:$0xf]
      %v1759 = vld [vmem:[%s1745 + $0x34] sm:$0xf]
      %v1760 = vld [vmem:[%s1745 + $0x38] sm:$0xf]
      %v1761 = vld [vmem:[%s1745 + $0x3c] sm:$0xf]
      %v1778 = vunpack.c.l.b16 %v1746
      %v1779 = vunpack.c.l.b16 %v1747
      %v1780 = vunpack.c.l.b16 %v1748
      %v1781 = vunpack.c.l.b16 %v1749
      %v1782 = vunpack.c.l.b16 %v1750
      %v1783 = vunpack.c.l.b16 %v1751
      %v1784 = vunpack.c.l.b16 %v1752
      %v1785 = vunpack.c.l.b16 %v1753
      %v1786 = vunpack.c.l.b16 %v1754
      %v1787 = vunpack.c.l.b16 %v1755
      %v1788 = vunpack.c.l.b16 %v1756
      %v1789 = vunpack.c.l.b16 %v1757
      %v1790 = vunpack.c.l.b16 %v1758
      %v1791 = vunpack.c.l.b16 %v1759
      %v1792 = vunpack.c.l.b16 %v1760
      %v1793 = vunpack.c.l.b16 %v1761
      %v1794 = vpack.c.b16 %v1779, %v1778
      %v1795 = vpack.c.b16 %v1781, %v1780
      %v1796 = vpack.c.b16 %v1783, %v1782
      %v1797 = vpack.c.b16 %v1785, %v1784
      %v1798 = vpack.c.b16 %v1787, %v1786
      %v1799 = vpack.c.b16 %v1789, %v1788
      %v1800 = vpack.c.b16 %v1791, %v1790
      %v1801 = vpack.c.b16 %v1793, %v1792
      %1810 = vmatprep.subr.bf16.mxu0 0
      %1811 = vmatpush1.bf16.msra.mxu0 %v1801
      %1812 = vmatprep.subr.bf16.mxu0 0
      %1813 = vmatpush1.bf16.msra.mxu0 %v1800
      %1814 = vmatprep.subr.bf16.mxu0 0
      %1815 = vmatpush1.bf16.msra.mxu0 %v1799
      %1816 = vmatprep.subr.bf16.mxu0 0
      %1817 = vmatpush1.bf16.msra.mxu0 %v1798
      %1818 = vmatprep.subr.bf16.mxu0 0
      %1819 = vmatpush1.bf16.msra.mxu0 %v1797
      %1820 = vmatprep.subr.bf16.mxu0 0
      %1821 = vmatpush1.bf16.msra.mxu0 %v1796
      %1822 = vmatprep.subr.bf16.mxu0 0
      %1823 = vmatpush1.bf16.msra.mxu0 %v1795
      %1824 = vmatprep.subr.bf16.mxu0 0
      %1825 = vmatpush1.bf16.msra.mxu0 %v1794
      %1826 = vmatprep.subr.bf16.mxu0 0
      %1827 = vmatpush2.bf16.msra.mxu0 0
      %1828 = vmatprep.subr.bf16.mxu0 0
      %1829 = vmatpush2.bf16.msra.mxu0 0
      %1830 = vmatprep.subr.bf16.mxu0 0
      %1831 = vmatpush2.bf16.msra.mxu0 0
      %1832 = vmatprep.subr.bf16.mxu0 0
      %1833 = vmatpush2.bf16.msra.mxu0 0
      %1834 = vmatprep.subr.bf16.mxu0 0
      %1835 = vmatpush2.bf16.msra.mxu0 0
      %1836 = vmatprep.subr.bf16.mxu0 0
      %1837 = vmatpush2.bf16.msra.mxu0 0
      %1838 = vmatprep.subr.bf16.mxu0 0
      %1839 = vmatpush2.bf16.msra.mxu0 0
      %1840 = vmatprep.subr.bf16.mxu0 0
      %1841 = vmatpush2.bf16.msra.mxu0 0
      %1842 = vmatprep.mubr.bf16.mxu0 0
      %1843 = vmatmul.mubr.bf16.gmra.mxu0 %v1744
      %v1844 = vpop.f32.mrf.mxu0
      %v1845 = vadd.f32 0.0, %v1844
      %v1846 = vpop.f32.mrf.mxu0
      %v1847 = vpop.f32.mrf.mxu0
      %v1848 = vadd.f32 0.0, %v1847
      %v1849 = vpop.f32.mrf.mxu0
      %1850 = vdwg.mxu0
      %v1851 = vadd.f32 %v1686, %v1845
      %v1852 = vadd.f32 %v1689, %v1848
      %s1853 = scalar_lea.vmem %s8, 24
      %v1854 = vld [vmem:[%s1853] sm:$0xf]
      %v1855 = vld [vmem:[%s1853 + $0x4] sm:$0xf]
      %v1858 = vunpack.c.l.b16 %v1854
      %v1859 = vunpack.c.l.b16 %v1855
      %v1860 = vpack.c.b16 %v1859, %v1858
      %v1862 = vsel %vm1382, %v1860, 0
      %1864 = vmatprep.subr.bf16.mxu0 0
      %1865 = vmatpush1.bf16.msra.mxu0 0
      %1866 = vmatprep.subr.bf16.mxu0 0
      %1867 = vmatpush1.bf16.msra.mxu0 0
      %1868 = vmatprep.subr.bf16.mxu0 0
      %1869 = vmatpush1.bf16.msra.mxu0 0
      %1870 = vmatprep.subr.bf16.mxu0 0
      %1871 = vmatpush1.bf16.msra.mxu0 0
      %1872 = vmatprep.subr.bf16.mxu0 0
      %1873 = vmatpush1.bf16.msra.mxu0 0
      %1874 = vmatprep.subr.bf16.mxu0 0
      %1875 = vmatpush1.bf16.msra.mxu0 0
      %1876 = vmatprep.subr.bf16.mxu0 0
      %1877 = vmatpush1.bf16.msra.mxu0 %v1374
      %1878 = vmatprep.subr.bf16.mxu0 0
      %1879 = vmatpush1.bf16.msra.mxu0 %v1373
      %1880 = vmatprep.subr.bf16.mxu0 0
      %1881 = vmatpush2.bf16.msra.mxu0 0
      %1882 = vmatprep.subr.bf16.mxu0 0
      %1883 = vmatpush2.bf16.msra.mxu0 0
      %1884 = vmatprep.subr.bf16.mxu0 0
      %1885 = vmatpush2.bf16.msra.mxu0 0
      %1886 = vmatprep.subr.bf16.mxu0 0
      %1887 = vmatpush2.bf16.msra.mxu0 0
      %1888 = vmatprep.subr.bf16.mxu0 0
      %1889 = vmatpush2.bf16.msra.mxu0 0
      %1890 = vmatprep.subr.bf16.mxu0 0
      %1891 = vmatpush2.bf16.msra.mxu0 0
      %1892 = vmatprep.subr.bf16.mxu0 0
      %1893 = vmatpush2.bf16.msra.mxu0 0
      %1894 = vmatprep.subr.bf16.mxu0 0
      %1895 = vmatpush2.bf16.msra.mxu0 0
      %1896 = vmatprep.mubr.bf16.mxu0 0
      %1897 = vmatmul.mubr.bf16.gmra.mxu0 %v1862
      %v1898 = vpop.f32.mrf.mxu0
      %v1899 = vadd.f32 0.0, %v1898
      %v1900 = vpop.f32.mrf.mxu0
      %v1901 = vpop.f32.mrf.mxu0
      %v1902 = vadd.f32 0.0, %v1901
      %v1903 = vpop.f32.mrf.mxu0
      %1904 = vdwg.mxu0
      %v1905 = vpack.c.bf16 %v1902, %v1899
      %s1906 = scalar_lea.vmem %s9, 192
      %v1907 = vld [vmem:[%s1906] sm:$0xf]
      %v1908 = vld [vmem:[%s1906 + $0x4] sm:$0xf]
      %v1909 = vld [vmem:[%s1906 + $0x8] sm:$0xf]
      %v1910 = vld [vmem:[%s1906 + $0xc] sm:$0xf]
      %v1911 = vld [vmem:[%s1906 + $0x10] sm:$0xf]
      %v1912 = vld [vmem:[%s1906 + $0x14] sm:$0xf]
      %v1913 = vld [vmem:[%s1906 + $0x18] sm:$0xf]
      %v1914 = vld [vmem:[%s1906 + $0x1c] sm:$0xf]
      %v1915 = vld [vmem:[%s1906 + $0x20] sm:$0xf]
      %v1916 = vld [vmem:[%s1906 + $0x24] sm:$0xf]
      %v1917 = vld [vmem:[%s1906 + $0x28] sm:$0xf]
      %v1918 = vld [vmem:[%s1906 + $0x2c] sm:$0xf]
      %v1919 = vld [vmem:[%s1906 + $0x30] sm:$0xf]
      %v1920 = vld [vmem:[%s1906 + $0x34] sm:$0xf]
      %v1921 = vld [vmem:[%s1906 + $0x38] sm:$0xf]
      %v1922 = vld [vmem:[%s1906 + $0x3c] sm:$0xf]
      %v1939 = vunpack.c.l.b16 %v1907
      %v1940 = vunpack.c.l.b16 %v1908
      %v1941 = vunpack.c.l.b16 %v1909
      %v1942 = vunpack.c.l.b16 %v1910
      %v1943 = vunpack.c.l.b16 %v1911
      %v1944 = vunpack.c.l.b16 %v1912
      %v1945 = vunpack.c.l.b16 %v1913
      %v1946 = vunpack.c.l.b16 %v1914
      %v1947 = vunpack.c.l.b16 %v1915
      %v1948 = vunpack.c.l.b16 %v1916
      %v1949 = vunpack.c.l.b16 %v1917
      %v1950 = vunpack.c.l.b16 %v1918
      %v1951 = vunpack.c.l.b16 %v1919
      %v1952 = vunpack.c.l.b16 %v1920
      %v1953 = vunpack.c.l.b16 %v1921
      %v1954 = vunpack.c.l.b16 %v1922
      %v1955 = vpack.c.b16 %v1940, %v1939
      %v1956 = vpack.c.b16 %v1942, %v1941
      %v1957 = vpack.c.b16 %v1944, %v1943
      %v1958 = vpack.c.b16 %v1946, %v1945
      %v1959 = vpack.c.b16 %v1948, %v1947
      %v1960 = vpack.c.b16 %v1950, %v1949
      %v1961 = vpack.c.b16 %v1952, %v1951
      %v1962 = vpack.c.b16 %v1954, %v1953
      %1971 = vmatprep.subr.bf16.mxu0 0
      %1972 = vmatpush1.bf16.msra.mxu0 %v1962
      %1973 = vmatprep.subr.bf16.mxu0 0
      %1974 = vmatpush1.bf16.msra.mxu0 %v1961
      %1975 = vmatprep.subr.bf16.mxu0 0
      %1976 = vmatpush1.bf16.msra.mxu0 %v1960
      %1977 = vmatprep.subr.bf16.mxu0 0
      %1978 = vmatpush1.bf16.msra.mxu0 %v1959
      %1979 = vmatprep.subr.bf16.mxu0 0
      %1980 = vmatpush1.bf16.msra.mxu0 %v1958
      %1981 = vmatprep.subr.bf16.mxu0 0
      %1982 = vmatpush1.bf16.msra.mxu0 %v1957
      %1983 = vmatprep.subr.bf16.mxu0 0
      %1984 = vmatpush1.bf16.msra.mxu0 %v1956
      %1985 = vmatprep.subr.bf16.mxu0 0
      %1986 = vmatpush1.bf16.msra.mxu0 %v1955
      %1987 = vmatprep.subr.bf16.mxu0 0
      %1988 = vmatpush2.bf16.msra.mxu0 0
      %1989 = vmatprep.subr.bf16.mxu0 0
      %1990 = vmatpush2.bf16.msra.mxu0 0
      %1991 = vmatprep.subr.bf16.mxu0 0
      %1992 = vmatpush2.bf16.msra.mxu0 0
      %1993 = vmatprep.subr.bf16.mxu0 0
      %1994 = vmatpush2.bf16.msra.mxu0 0
      %1995 = vmatprep.subr.bf16.mxu0 0
      %1996 = vmatpush2.bf16.msra.mxu0 0
      %1997 = vmatprep.subr.bf16.mxu0 0
      %1998 = vmatpush2.bf16.msra.mxu0 0
      %1999 = vmatprep.subr.bf16.mxu0 0
      %2000 = vmatpush2.bf16.msra.mxu0 0
      %2001 = vmatprep.subr.bf16.mxu0 0
      %2002 = vmatpush2.bf16.msra.mxu0 0
      %2003 = vmatprep.mubr.bf16.mxu0 0
      %2004 = vmatmul.mubr.bf16.gmra.mxu0 %v1905
      %v2005 = vpop.f32.mrf.mxu0
      %v2006 = vadd.f32 0.0, %v2005
      %v2007 = vpop.f32.mrf.mxu0
      %v2008 = vpop.f32.mrf.mxu0
      %v2009 = vadd.f32 0.0, %v2008
      %v2010 = vpop.f32.mrf.mxu0
      %2011 = vdwg.mxu0
      %v2012 = vadd.f32 %v1851, %v2006
      %v2013 = vadd.f32 %v1852, %v2009
      %v2014 = vld [vmem:[%s10] sm:$0x1]
      %v2016 = vlaneseq
      %v2017 = vshrl.u32 %v2016, 7
      %v2018 = vsub.s32 0, %v2017
      %v2019 = vrot.slane %v2014, %v2018
      %v2021 = vadd.f32 %v2012, %v2019
      %v2022 = vadd.f32 %v2013, %v2019
      %v2023 = vpack.c.bf16 %v2022, %v2021
      %v2025 = vunpack.c.l.b16 %v2023
      %v2026 = vunpack.c.h.b16 %v2023
      %v2027 = vpack.c.b16 %v2025, %v2025
      %v2028 = vpack.c.b16 %v2026, %v2026
      %2031 = vst [vmem:[%s388] sm:$0xf] %v2027
      %2032 = vst [vmem:[%s388 + $0x4] sm:$0xf] %v2028
      %s2033 = smul.u32 2, %s22
      %p2034 = scmp.lt.s32.totalorder %s2033, 3
      %s2035 = scalar_select %p2034, %s2033, 3
      %s2036 = smul.addr %s2035, 4
      %s2037 = scalar_lea.vmem %s11, %s2036
      // Predicated region
      $region65: #{convnext2d_forward.4} parent=63 // pred_check
        %p2038 = pneg %p276
      $region66: #{convnext2d_forward.4} parent=63 // pred_check_branch
        %2040 = sbr.rel (%p2038) target = $region68
      $region67: #{convnext2d_forward.4} parent=63 // pred_region
        %s2041 = smul.u32 2, %s22
      $region68: #{convnext2d_forward.4} parent=63 // pred_fallthru
        _
    $region64: #{convnext2d_forward.4} parent=5 // pred_fallthru
      _
    %p2042 = scmp.le.s32.totalorder 2, %s17
    // Predicated region
    $region69: #{convnext2d_forward.4} parent=5 // pred_check
      %p2043 = pneg %p2042
    $region70: #{convnext2d_forward.4} parent=5 // pred_check_branch
      %2045 = sbr.rel (%p2043) target = $region72
    $region71: #{convnext2d_forward.4} parent=5 // pred_region
      %s2046 = ssub.s32 %s17, 2
      // Predicated region
      $region73: #{convnext2d_forward.4} parent=71 // pred_check
        %p2047 = pneg %p282
      $region74: #{convnext2d_forward.4} parent=71 // pred_check_branch
        %2049 = sbr.rel (%p2047) target = $region76
      $region75: #{convnext2d_forward.4} parent=71 // pred_region
        %s2050 = smul.u32 2, %s23
        %p2051 = scmp.lt.s32.totalorder %s2050, 3
        %s2052 = scalar_select %p2051, %s2050, 3
        %s2053 = smul.addr %s2052, 4
        %s2054 = scalar_lea.vmem %s11, %s2053
      $region76: #{convnext2d_forward.4} parent=71 // pred_fallthru
        _
    $region72: #{convnext2d_forward.4} parent=5 // pred_fallthru
      _
  $region6: #{convnext2d_forward.4} parent=0 // loop_footer
    %s21 = sadd.s32 1, %s17
  $region7: #{convnext2d_forward.4} parent=0 // loop_footer_branch
    %16 = sbr.rel target = $region3
  $region8: #{convnext2d_forward.4} parent=0 // loop_exit
    _

</llo_original>
